<compile_context>
chip_gen: v7x
topology: tpu7x:2x2x1
jax: 0.10.0
libtpu: 0.0.40
codegen_flags: <defaults>
</compile_context>

<pallas_src>
import functools

import jax
import jax.numpy as jnp
from jax.experimental import pallas as pl
from jax.experimental.pallas import tpu as pltpu

EPS = 1e-5
PACK = 2                        # row-pair packing factor (lane densification)
DEFAULT_TILE_ROWS = 2048        # packed rows per grid step (multiple of 16)


@functools.lru_cache(maxsize=1)
def _vmem_limit_bytes():
    """Generation-aware scoped-VMEM budget: ~75% of physical, capped at 96 MiB.

    v7x has 64 MiB VMEM per TensorCore -> ~48 MiB budget; v5e/v6e have 128 MiB
    -> 96 MiB.  Falls back to 48 MiB if the query is unavailable.
    """
    cap = 64 * 1024 * 1024
    try:
        cap = int(pltpu.get_tpu_info().vmem_capacity_bytes)
    except Exception:
        pass
    return max(32 * 1024 * 1024, min(cap * 3 // 4, 96 * 1024 * 1024))


def _round_up(v, m):
    return (v + m - 1) // m * m


def _pack_rows(x, n_pad):
    """[N, C] -> [n_pad/PACK, PACK*C]: zero-pad rows, then a free row-major reshape."""
    n, c = x.shape
    x = jnp.pad(x, ((0, n_pad - n), (0, 0)))
    return x.reshape(n_pad // PACK, PACK * c)


def _pack_weight(w):
    """[Cin, Cout] -> block-diagonal [PACK*Cin, PACK*Cout], cast to bf16 for the MXU."""
    cin, cout = w.shape
    z = jnp.zeros((cin, cout), w.dtype)
    rows = []
    for k in range(PACK):
        rows.append(jnp.concatenate([w if j == k else z for j in range(PACK)], axis=1))
    return jnp.concatenate(rows, axis=0).astype(jnp.bfloat16)


def _pack_vec(v):
    """[C] -> [1, PACK*C]: same per-channel value for every packed half."""
    return jnp.tile(v, PACK)[None, :].astype(jnp.float32)


def _bn_affine(gamma, beta, mean, inv_std):
    """BatchNorm as a per-channel affine: y = x * scale + shift."""
    scale = gamma * inv_std
    return scale, beta - mean * scale


def _pad_row_through_stage(prev_pad, w, c, scale=None, shift=None, relu=False):
    """Value a zero-input padded row takes after one stage, replicating the
    kernel's bf16 arithmetic and the bf16 rounding applied at store time.
    Used to subtract padded-row contamination from the batch statistics."""
    h = prev_pad
    if scale is not None:
        h = h * scale + shift
    if relu:
        h = jnp.maximum(h, 0.0)
    y = jnp.dot(h.astype(jnp.bfloat16), w.astype(jnp.bfloat16),
                preferred_element_type=jnp.float32) + c
    return y.astype(jnp.bfloat16).astype(jnp.float32)


def _combine_stats(psum, psq, n, c, pad_row, n_padded):
    """Per-tile packed partial sums -> per-channel batch mean and rsqrt(var+eps).

    Padded rows all contribute the same constant `pad_row`, so their effect is
    removed on the host instead of masking inside the kernel.
    """
    s = psum.sum(axis=(0, 1)).reshape(PACK, c).sum(axis=0)
    sq = psq.sum(axis=(0, 1)).reshape(PACK, c).sum(axis=0)
    if n_padded:
        s = s - n_padded * pad_row
        sq = sq - n_padded * (pad_row * pad_row)
    mean = s / n
    var = jnp.maximum(sq / n - mean * mean, 0.0)    # biased variance (training BN)
    return mean, jax.lax.rsqrt(var + EPS)


def _mlp_stage(x, w, b, *, scale=None, shift=None, relu=False,
               collect_stats=True, out_dtype=jnp.bfloat16, tile):
    """One fused stage over row-packed data:

        y = (relu(x * scale + shift) if affine else x) @ W + b        (per tile)

    plus, optionally, per-tile partial sum / sum-of-squares of the *stored*
    (rounded) y for the next BatchNorm.  x: [R, Cin] (f32 or bf16) with R a
    multiple of `tile`; w: [Cin, Cout] bf16 (VMEM-resident); b/scale/shift:
    [1, C*] f32 (resident).
    """
    rows, cin = x.shape
    cout = w.shape[1]
    grid = (rows // tile,)
    has_affine = scale is not None

    def kernel(*refs):
        if has_affine:
            x_ref, sc_ref, sh_ref, w_ref, b_ref = refs[:5]
            out_refs = refs[5:]
        else:
            x_ref, w_ref, b_ref = refs[:3]
            out_refs = refs[3:]

        h = x_ref[...]
        if has_affine:
            # Folded BatchNorm affine in f32 (v5e has no bf16 VPU path).
            h = h.astype(jnp.float32) * sc_ref[...] + sh_ref[...]
        if relu:
            h = jnp.maximum(h, 0.0)
        # bf16 operands on the MXU, f32 accumulation.
        y = jnp.dot(h.astype(jnp.bfloat16), w_ref[...],
                    preferred_element_type=jnp.float32) + b_ref[...]

        if collect_stats:
            o_ref, sum_ref, sq_ref = out_refs
        else:
            (o_ref,) = out_refs
        yo = y.astype(o_ref.dtype)
        o_ref[...] = yo

        if collect_stats:
            # Stats are taken from the stored (bf16-rounded) value so the BN
            # affine derived from them matches what the next stage consumes.
            # Row reductions run on the MXU (ones @ y): the MXU has large slack
            # in this memory-bound kernel, freeing VPU/XLU bundle slots.
            yf = yo.astype(jnp.float32)
            ones = jnp.ones((1, tile), jnp.float32)
            sum_ref[...] = jnp.dot(ones, yf,
                                   preferred_element_type=jnp.float32)[None]
            sq_ref[...] = jnp.dot(ones, yf * yf,
                                  preferred_element_type=jnp.float32)[None]

    def resident(a):
        return pl.BlockSpec(a.shape, lambda i: (0, 0))     # stays in VMEM across steps

    inputs = [x] + ([scale, shift] if has_affine else []) + [w, b]
    in_specs = [pl.BlockSpec((tile, cin), lambda i: (i, 0))]
    in_specs += [resident(a) for a in inputs[1:]]

    h_shape = jax.ShapeDtypeStruct((rows, cout), out_dtype)
    h_spec = pl.BlockSpec((tile, cout), lambda i: (i, 0))
    if collect_stats:
        stat = jax.ShapeDtypeStruct((grid[0], 1, cout), jnp.float32)
        stat_spec = pl.BlockSpec((1, 1, cout), lambda i: (i, 0, 0))
        out_shape = (h_shape, stat, stat)
        out_specs = (h_spec, stat_spec, stat_spec)
    else:
        out_shape = h_shape
        out_specs = h_spec

    return pl.pallas_call(
        kernel,
        grid=grid,
        out_shape=out_shape,
        in_specs=in_specs,
        out_specs=out_specs,
        compiler_params=pltpu.CompilerParams(
            dimension_semantics=("parallel",),
            vmem_limit_bytes=_vmem_limit_bytes()),
    )(*inputs)


def pointnet_forward(x, params, *, tile_rows=DEFAULT_TILE_ROWS):
    """Training-mode forward pass of the PointNet point-feature MLP.

    x: [N, fea_dim] float32.  params: see init_params (Linear weights are
    pre-transposed to [C_in, C_out]; all per-channel vectors are 1-D).
    """
    assert tile_rows > 0 and tile_rows % 16 == 0   # bf16 activations: 16-row sublane tiles
    n, c0 = x.shape
    d1 = params["w1"].shape[1]
    d2 = params["w2"].shape[1]
    d3 = params["w3"].shape[1]
    out_dim = params["w4"].shape[1]

    packed = _round_up(n, PACK) // PACK
    tile = min(tile_rows, _round_up(packed, 16))
    rows = _round_up(packed, tile)
    n_pad = rows * PACK
    n_padded = n_pad - n                          # zero-padded (fake) points

    xp = _pack_rows(x, n_pad)                     # [rows, PACK*c0], lane-packed pairs

    # ---- BatchNorm1d(fea_dim): tiny [N, fea_dim] stats done with plain jnp,
    #      folded exactly into Linear1 (no ReLU between BN0 and Linear1). -----
    mean0 = jnp.mean(x, axis=0)
    var0 = jnp.var(x, axis=0)                     # biased (training-mode BN)
    inv0 = jax.lax.rsqrt(var0 + EPS)
    s0, t0 = _bn_affine(params["g0"], params["b0"], mean0, inv0)
    w1 = params["w1"] * s0[:, None]
    c1 = params["c1"] + t0 @ params["w1"]

    # ---- Linear(fea_dim, 64) + stats for BN(64) -----------------------------
    h1, ps1, pq1 = _mlp_stage(xp, _pack_weight(w1), _pack_vec(c1),
                              collect_stats=True, tile=tile)
    pad1 = _pad_row_through_stage(jnp.zeros((c0,), jnp.float32), w1, c1)
    mean1, inv1 = _combine_stats(ps1, pq1, n, d1, pad1, n_padded)
    a1, t1 = _bn_affine(params["g1"], params["b1"], mean1, inv1)

    # ---- BN(64) + ReLU + Linear(64, 128) + stats for BN(128) ----------------
    h2, ps2, pq2 = _mlp_stage(h1, _pack_weight(params["w2"]), _pack_vec(params["c2"]),
                              scale=_pack_vec(a1), shift=_pack_vec(t1), relu=True,
                              collect_stats=True, tile=tile)
    pad2 = _pad_row_through_stage(pad1, params["w2"], params["c2"],
                                  scale=a1, shift=t1, relu=True)
    mean2, inv2 = _combine_stats(ps2, pq2, n, d2, pad2, n_padded)
    a2, t2 = _bn_affine(params["g2"], params["b2"], mean2, inv2)

    # ---- BN(128) + ReLU + Linear(128, 256) + stats for BN(256) --------------
    h3, ps3, pq3 = _mlp_stage(h2, _pack_weight(params["w3"]), _pack_vec(params["c3"]),
                              scale=_pack_vec(a2), shift=_pack_vec(t2), relu=True,
                              collect_stats=True, tile=tile)
    pad3 = _pad_row_through_stage(pad2, params["w3"], params["c3"],
                                  scale=a2, shift=t2, relu=True)
    mean3, inv3 = _combine_stats(ps3, pq3, n, d3, pad3, n_padded)
    a3, t3 = _bn_affine(params["g3"], params["b3"], mean3, inv3)

    # ---- BN(256) + ReLU + Linear(256, out_dim) (f32 output, no stats) -------
    outp = _mlp_stage(h3, _pack_weight(params["w4"]), _pack_vec(params["c4"]),
                      scale=_pack_vec(a3), shift=_pack_vec(t3), relu=True,
                      collect_stats=False, out_dtype=jnp.float32, tile=tile)

    # Free row-major unpack ([rows, PACK*out] -> [n_pad, out]) + drop padding.
    return outp.reshape(n_pad, out_dim)[:n]


def pointnet_reference(x, params):
    """Pure-JAX f32 reference with identical (training-mode BN) semantics."""
    def bn(h, g, b):
        mean = jnp.mean(h, axis=0)
        var = jnp.mean(h * h, axis=0) - mean * mean
        return (h - mean) * jax.lax.rsqrt(var + EPS) * g + b

    h = bn(x, params["g0"], params["b0"])
    h = h @ params["w1"] + params["c1"]
    h = jax.nn.relu(bn(h, params["g1"], params["b1"]))
    h = h @ params["w2"] + params["c2"]
    h = jax.nn.relu(bn(h, params["g2"], params["b2"]))
    h = h @ params["w3"] + params["c3"]
    h = jax.nn.relu(bn(h, params["g3"], params["b3"]))
    return h @ params["w4"] + params["c4"]


def init_params(key, fea_dim, out_dim):
    """Deterministic synthetic parameters.  Linear weights are pre-transposed to
    [C_in, C_out]; biases / BN gamma / BN beta are 1-D per-channel vectors."""
    dims = [fea_dim, 64, 128, 256, out_dim]
    keys = jax.random.split(key, 16)
    p = {}
    p["g0"] = 1.0 + 0.1 * jax.random.normal(keys[0], (fea_dim,), jnp.float32)
    p["b0"] = 0.1 * jax.random.normal(keys[1], (fea_dim,), jnp.float32)
    ki = 2
    for li in range(1, 5):
        cin, cout = dims[li - 1], dims[li]
        scale = 1.0 / jnp.sqrt(jnp.float32(cin))
        p[f"w{li}"] = scale * jax.random.normal(keys[ki], (cin, cout), jnp.float32)
        p[f"c{li}"] = scale * jax.random.normal(keys[ki + 1], (cout,), jnp.float32)
        ki += 2
        if li < 4:                                 # hidden layers have BN
            p[f"g{li}"] = 1.0 + 0.1 * jax.random.normal(keys[ki], (cout,), jnp.float32)
            p[f"b{li}"] = 0.1 * jax.random.normal(keys[ki + 1], (cout,), jnp.float32)
            ki += 2
    return p


if __name__ == "__main__":
    key = jax.random.PRNGKey(0)
    k_x, k_p = jax.random.split(key)

    N = 777          # deliberately not tile-aligned, to exercise padding correction
    FEA_DIM = 9      # cfg.DATA_CONFIG.DATALOADER.DATA_DIM
    OUT_DIM = 64     # cfg.MODEL.VFE.OUT_CHANNEL

    x = jax.random.normal(k_x, (N, FEA_DIM), jnp.float32)
    params = init_params(k_p, FEA_DIM, OUT_DIM)

    # Small tile so the demo runs a multi-step grid; production default is 2048.
    fwd = jax.jit(functools.partial(pointnet_forward, tile_rows=64))
    out = fwd(x, params)
    jax.block_until_ready(out)
    assert out.shape == (N, OUT_DIM)

    ref = pointnet_reference(x, params)
    max_err = float(jnp.max(jnp.abs(out - ref)))
    # Tolerance sized for bf16 MXU operands + bf16 inter-stage activations
    # versus the pure-f32 reference.
    assert max_err < 0.3, f"max |kernel - reference| = {max_err}"
    print("KERNEL_OK")
</pallas_src>

<mosaic_0001>
module attributes {stable_mosaic.version = 11 : i64} {
  func.func @kernel(%arg0: i32, %arg1: memref<64x18xf32, #tpu.memory_space<vmem>>, %arg2: memref<18x128xbf16, #tpu.memory_space<vmem>>, %arg3: memref<1x128xf32, #tpu.memory_space<vmem>>, %arg4: memref<64x128xbf16, #tpu.memory_space<vmem>>, %arg5: memref<1x1x128xf32, #tpu.memory_space<vmem>>, %arg6: memref<1x1x128xf32, #tpu.memory_space<vmem>>) attributes {dimension_semantics = [#tpu.dimension_semantics<parallel>], iteration_bounds = array<i64: 7>, scalar_prefetch = 0 : i64, scratch_operands = 0 : i64, tpu.core_type = #tpu.core_type<tc>, window_params = [{transform_indices = @transform_0, window_bounds = array<i64: 64, 18>}, {pipeline_mode = #tpu.pipeline_mode<synchronous>, transform_indices = @transform_1, window_bounds = array<i64: 18, 128>}, {pipeline_mode = #tpu.pipeline_mode<synchronous>, transform_indices = @transform_2, window_bounds = array<i64: 1, 128>}, {transform_indices = @transform_3, window_bounds = array<i64: 64, 128>}, {transform_indices = @transform_4, window_bounds = array<i64: 1, 1, 128>}, {transform_indices = @transform_5, window_bounds = array<i64: 1, 1, 128>}]} {
    %c0 = arith.constant 0 : index
    %c0_0 = arith.constant 0 : index
    %0 = vector.load %arg1[%c0, %c0_0] : memref<64x18xf32, #tpu.memory_space<vmem>>, vector<64x18xf32>
    %1 = arith.truncf %0 : vector<64x18xf32> to vector<64x18xbf16>
    %c0_1 = arith.constant 0 : index
    %c0_2 = arith.constant 0 : index
    %2 = vector.load %arg2[%c0_1, %c0_2] : memref<18x128xbf16, #tpu.memory_space<vmem>>, vector<18x128xbf16>
    %cst = arith.constant dense<0.000000e+00> : vector<64x128xf32>
    %3 = tpu.matmul %1, %2, %cst {dimension_numbers = #tpu.dot_dimension_numbers<[1], [0], [0], [1], [0, 0, 1, 1], [], []>} : vector<64x18xbf16>, vector<18x128xbf16>, vector<64x128xf32> -> vector<64x128xf32>
    %c0_3 = arith.constant 0 : index
    %c0_4 = arith.constant 0 : index
    %4 = vector.load %arg3[%c0_3, %c0_4] : memref<1x128xf32, #tpu.memory_space<vmem>>, vector<1x128xf32>
    %5 = vector.broadcast %4 : vector<1x128xf32> to vector<64x128xf32>
    %6 = arith.addf %3, %5 : vector<64x128xf32>
    %7 = arith.truncf %6 : vector<64x128xf32> to vector<64x128xbf16>
    %c0_5 = arith.constant 0 : index
    %c0_6 = arith.constant 0 : index
    %8 = vector.load %arg4[%c0_5, %c0_6] : memref<64x128xbf16, #tpu.memory_space<vmem>>, vector<64x128xbf16>
    tpu.vector_store %arg4[%c0_5, %c0_6], %7 {strides = array<i32>} : memref<64x128xbf16, #tpu.memory_space<vmem>>, vector<64x128xbf16>,
    %9 = arith.extf %7 : vector<64x128xbf16> to vector<64x128xf32>
    %cst_7 = arith.constant 1.000000e+00 : f32
    %10 = vector.broadcast %cst_7 : f32 to vector<1x64xf32>
    %cst_8 = arith.constant dense<0.000000e+00> : vector<1x128xf32>
    %11 = tpu.matmul %10, %9, %cst_8 {dimension_numbers = #tpu.dot_dimension_numbers<[1], [0], [0], [1], [0, 0, 1, 1], [], []>} : vector<1x64xf32>, vector<64x128xf32>, vector<1x128xf32> -> vector<1x128xf32>
    %12 = vector.shape_cast %11 : vector<1x128xf32> to vector<1x1x128xf32>
    %c0_9 = arith.constant 0 : index
    %c0_10 = arith.constant 0 : index
    %c0_11 = arith.constant 0 : index
    %13 = vector.load %arg5[%c0_9, %c0_10, %c0_11] : memref<1x1x128xf32, #tpu.memory_space<vmem>>, vector<1x1x128xf32>
    tpu.vector_store %arg5[%c0_9, %c0_10, %c0_11], %12 {strides = array<i32>} : memref<1x1x128xf32, #tpu.memory_space<vmem>>, vector<1x1x128xf32>,
    %14 = arith.mulf %9, %9 : vector<64x128xf32>
    %cst_12 = arith.constant dense<0.000000e+00> : vector<1x128xf32>
    %15 = tpu.matmul %10, %14, %cst_12 {dimension_numbers = #tpu.dot_dimension_numbers<[1], [0], [0], [1], [0, 0, 1, 1], [], []>} : vector<1x64xf32>, vector<64x128xf32>, vector<1x128xf32> -> vector<1x128xf32>
    %16 = vector.shape_cast %15 : vector<1x128xf32> to vector<1x1x128xf32>
    %c0_13 = arith.constant 0 : index
    %c0_14 = arith.constant 0 : index
    %c0_15 = arith.constant 0 : index
    %17 = vector.load %arg6[%c0_13, %c0_14, %c0_15] : memref<1x1x128xf32, #tpu.memory_space<vmem>>, vector<1x1x128xf32>
    tpu.vector_store %arg6[%c0_13, %c0_14, %c0_15], %16 {strides = array<i32>} : memref<1x1x128xf32, #tpu.memory_space<vmem>>, vector<1x1x128xf32>,
    return
  }
  func.func @transform_0(%arg0: i32) -> (i32, i32) {
    %c0_i32 = arith.constant 0 : i32
    %c0_i32_0 = arith.constant 0 : i32
    return %arg0, %c0_i32 : i32, i32
  }
  func.func @transform_1(%arg0: i32) -> (i32, i32) {
    %c0_i32 = arith.constant 0 : i32
    %c0_i32_0 = arith.constant 0 : i32
    %c0_i32_1 = arith.constant 0 : i32
    return %c0_i32, %c0_i32_0 : i32, i32
  }
  func.func @transform_2(%arg0: i32) -> (i32, i32) {
    %c0_i32 = arith.constant 0 : i32
    %c0_i32_0 = arith.constant 0 : i32
    %c0_i32_1 = arith.constant 0 : i32
    return %c0_i32, %c0_i32_0 : i32, i32
  }
  func.func @transform_3(%arg0: i32) -> (i32, i32) {
    %c0_i32 = arith.constant 0 : i32
    %c0_i32_0 = arith.constant 0 : i32
    return %arg0, %c0_i32 : i32, i32
  }
  func.func @transform_4(%arg0: i32) -> (i32, i32, i32) {
    %c0_i32 = arith.constant 0 : i32
    %c0_i32_0 = arith.constant 0 : i32
    %c0_i32_1 = arith.constant 0 : i32
    return %arg0, %c0_i32, %c0_i32_0 : i32, i32, i32
  }
  func.func @transform_5(%arg0: i32) -> (i32, i32, i32) {
    %c0_i32 = arith.constant 0 : i32
    %c0_i32_0 = arith.constant 0 : i32
    %c0_i32_1 = arith.constant 0 : i32
    return %arg0, %c0_i32, %c0_i32_0 : i32, i32, i32
  }
}

module attributes {stable_mosaic.version = 11 : i64} {
  func.func @kernel(%arg0: i32, %arg1: memref<64x128xbf16, #tpu.memory_space<vmem>>, %arg2: memref<1x128xf32, #tpu.memory_space<vmem>>, %arg3: memref<1x128xf32, #tpu.memory_space<vmem>>, %arg4: memref<128x256xbf16, #tpu.memory_space<vmem>>, %arg5: memref<1x256xf32, #tpu.memory_space<vmem>>, %arg6: memref<64x256xbf16, #tpu.memory_space<vmem>>, %arg7: memref<1x1x256xf32, #tpu.memory_space<vmem>>, %arg8: memref<1x1x256xf32, #tpu.memory_space<vmem>>) attributes {dimension_semantics = [#tpu.dimension_semantics<parallel>], iteration_bounds = array<i64: 7>, scalar_prefetch = 0 : i64, scratch_operands = 0 : i64, tpu.core_type = #tpu.core_type<tc>, window_params = [{transform_indices = @transform_0, window_bounds = array<i64: 64, 128>}, {pipeline_mode = #tpu.pipeline_mode<synchronous>, transform_indices = @transform_1, window_bounds = array<i64: 1, 128>}, {pipeline_mode = #tpu.pipeline_mode<synchronous>, transform_indices = @transform_2, window_bounds = array<i64: 1, 128>}, {pipeline_mode = #tpu.pipeline_mode<synchronous>, transform_indices = @transform_3, window_bounds = array<i64: 128, 256>}, {pipeline_mode = #tpu.pipeline_mode<synchronous>, transform_indices = @transform_4, window_bounds = array<i64: 1, 256>}, {transform_indices = @transform_5, window_bounds = array<i64: 64, 256>}, {transform_indices = @transform_6, window_bounds = array<i64: 1, 1, 256>}, {transform_indices = @transform_7, window_bounds = array<i64: 1, 1, 256>}]} {
    %c0 = arith.constant 0 : index
    %c0_0 = arith.constant 0 : index
    %0 = vector.load %arg1[%c0, %c0_0] : memref<64x128xbf16, #tpu.memory_space<vmem>>, vector<64x128xbf16>
    %1 = arith.extf %0 : vector<64x128xbf16> to vector<64x128xf32>
    %c0_1 = arith.constant 0 : index
    %c0_2 = arith.constant 0 : index
    %2 = vector.load %arg2[%c0_1, %c0_2] : memref<1x128xf32, #tpu.memory_space<vmem>>, vector<1x128xf32>
    %3 = vector.broadcast %2 : vector<1x128xf32> to vector<64x128xf32>
    %4 = arith.mulf %1, %3 : vector<64x128xf32>
    %c0_3 = arith.constant 0 : index
    %c0_4 = arith.constant 0 : index
    %5 = vector.load %arg3[%c0_3, %c0_4] : memref<1x128xf32, #tpu.memory_space<vmem>>, vector<1x128xf32>
    %6 = vector.broadcast %5 : vector<1x128xf32> to vector<64x128xf32>
    %7 = arith.addf %4, %6 : vector<64x128xf32>
    %cst = arith.constant 0.000000e+00 : f32
    %8 = vector.broadcast %cst : f32 to vector<64x128xf32>
    %9 = arith.maximumf %7, %8 : vector<64x128xf32>
    %10 = arith.truncf %9 : vector<64x128xf32> to vector<64x128xbf16>
    %c0_5 = arith.constant 0 : index
    %c0_6 = arith.constant 0 : index
    %11 = vector.load %arg4[%c0_5, %c0_6] : memref<128x256xbf16, #tpu.memory_space<vmem>>, vector<128x256xbf16>
    %cst_7 = arith.constant dense<0.000000e+00> : vector<64x256xf32>
    %12 = tpu.matmul %10, %11, %cst_7 {dimension_numbers = #tpu.dot_dimension_numbers<[1], [0], [0], [1], [0, 0, 1, 1], [], []>} : vector<64x128xbf16>, vector<128x256xbf16>, vector<64x256xf32> -> vector<64x256xf32>
    %c0_8 = arith.constant 0 : index
    %c0_9 = arith.constant 0 : index
    %13 = vector.load %arg5[%c0_8, %c0_9] : memref<1x256xf32, #tpu.memory_space<vmem>>, vector<1x256xf32>
    %14 = vector.broadcast %13 : vector<1x256xf32> to vector<64x256xf32>
    %15 = arith.addf %12, %14 : vector<64x256xf32>
    %16 = arith.truncf %15 : vector<64x256xf32> to vector<64x256xbf16>
    %c0_10 = arith.constant 0 : index
    %c0_11 = arith.constant 0 : index
    %17 = vector.load %arg6[%c0_10, %c0_11] : memref<64x256xbf16, #tpu.memory_space<vmem>>, vector<64x256xbf16>
    tpu.vector_store %arg6[%c0_10, %c0_11], %16 {strides = array<i32>} : memref<64x256xbf16, #tpu.memory_space<vmem>>, vector<64x256xbf16>,
    %18 = arith.extf %16 : vector<64x256xbf16> to vector<64x256xf32>
    %cst_12 = arith.constant 1.000000e+00 : f32
    %19 = vector.broadcast %cst_12 : f32 to vector<1x64xf32>
    %cst_13 = arith.constant dense<0.000000e+00> : vector<1x256xf32>
    %20 = tpu.matmul %19, %18, %cst_13 {dimension_numbers = #tpu.dot_dimension_numbers<[1], [0], [0], [1], [0, 0, 1, 1], [], []>} : vector<1x64xf32>, vector<64x256xf32>, vector<1x256xf32> -> vector<1x256xf32>
    %21 = vector.shape_cast %20 : vector<1x256xf32> to vector<1x1x256xf32>
    %c0_14 = arith.constant 0 : index
    %c0_15 = arith.constant 0 : index
    %c0_16 = arith.constant 0 : index
    %22 = vector.load %arg7[%c0_14, %c0_15, %c0_16] : memref<1x1x256xf32, #tpu.memory_space<vmem>>, vector<1x1x256xf32>
    tpu.vector_store %arg7[%c0_14, %c0_15, %c0_16], %21 {strides = array<i32>} : memref<1x1x256xf32, #tpu.memory_space<vmem>>, vector<1x1x256xf32>,
    %23 = arith.mulf %18, %18 : vector<64x256xf32>
    %cst_17 = arith.constant dense<0.000000e+00> : vector<1x256xf32>
    %24 = tpu.matmul %19, %23, %cst_17 {dimension_numbers = #tpu.dot_dimension_numbers<[1], [0], [0], [1], [0, 0, 1, 1], [], []>} : vector<1x64xf32>, vector<64x256xf32>, vector<1x256xf32> -> vector<1x256xf32>
    %25 = vector.shape_cast %24 : vector<1x256xf32> to vector<1x1x256xf32>
    %c0_18 = arith.constant 0 : index
    %c0_19 = arith.constant 0 : index
    %c0_20 = arith.constant 0 : index
    %26 = vector.load %arg8[%c0_18, %c0_19, %c0_20] : memref<1x1x256xf32, #tpu.memory_space<vmem>>, vector<1x1x256xf32>
    tpu.vector_store %arg8[%c0_18, %c0_19, %c0_20], %25 {strides = array<i32>} : memref<1x1x256xf32, #tpu.memory_space<vmem>>, vector<1x1x256xf32>,
    return
  }
  func.func @transform_0(%arg0: i32) -> (i32, i32) {
    %c0_i32 = arith.constant 0 : i32
    %c0_i32_0 = arith.constant 0 : i32
    return %arg0, %c0_i32 : i32, i32
  }
  func.func @transform_1(%arg0: i32) -> (i32, i32) {
    %c0_i32 = arith.constant 0 : i32
    %c0_i32_0 = arith.constant 0 : i32
    %c0_i32_1 = arith.constant 0 : i32
    return %c0_i32, %c0_i32_0 : i32, i32
  }
  func.func @transform_2(%arg0: i32) -> (i32, i32) {
    %c0_i32 = arith.constant 0 : i32
    %c0_i32_0 = arith.constant 0 : i32
    %c0_i32_1 = arith.constant 0 : i32
    return %c0_i32, %c0_i32_0 : i32, i32
  }
  func.func @transform_3(%arg0: i32) -> (i32, i32) {
    %c0_i32 = arith.constant 0 : i32
    %c0_i32_0 = arith.constant 0 : i32
    %c0_i32_1 = arith.constant 0 : i32
    return %c0_i32, %c0_i32_0 : i32, i32
  }
  func.func @transform_4(%arg0: i32) -> (i32, i32) {
    %c0_i32 = arith.constant 0 : i32
    %c0_i32_0 = arith.constant 0 : i32
    %c0_i32_1 = arith.constant 0 : i32
    return %c0_i32, %c0_i32_0 : i32, i32
  }
  func.func @transform_5(%arg0: i32) -> (i32, i32) {
    %c0_i32 = arith.constant 0 : i32
    %c0_i32_0 = arith.constant 0 : i32
    return %arg0, %c0_i32 : i32, i32
  }
  func.func @transform_6(%arg0: i32) -> (i32, i32, i32) {
    %c0_i32 = arith.constant 0 : i32
    %c0_i32_0 = arith.constant 0 : i32
    %c0_i32_1 = arith.constant 0 : i32
    return %arg0, %c0_i32, %c0_i32_0 : i32, i32, i32
  }
  func.func @transform_7(%arg0: i32) -> (i32, i32, i32) {
    %c0_i32 = arith.constant 0 : i32
    %c0_i32_0 = arith.constant 0 : i32
    %c0_i32_1 = arith.constant 0 : i32
    return %arg0, %c0_i32, %c0_i32_0 : i32, i32, i32
  }
}

module attributes {stable_mosaic.version = 11 : i64} {
  func.func @kernel(%arg0: i32, %arg1: memref<64x256xbf16, #tpu.memory_space<vmem>>, %arg2: memref<1x256xf32, #tpu.memory_space<vmem>>, %arg3: memref<1x256xf32, #tpu.memory_space<vmem>>, %arg4: memref<256x512xbf16, #tpu.memory_space<vmem>>, %arg5: memref<1x512xf32, #tpu.memory_space<vmem>>, %arg6: memref<64x512xbf16, #tpu.memory_space<vmem>>, %arg7: memref<1x1x512xf32, #tpu.memory_space<vmem>>, %arg8: memref<1x1x512xf32, #tpu.memory_space<vmem>>) attributes {dimension_semantics = [#tpu.dimension_semantics<parallel>], iteration_bounds = array<i64: 7>, scalar_prefetch = 0 : i64, scratch_operands = 0 : i64, tpu.core_type = #tpu.core_type<tc>, window_params = [{transform_indices = @transform_0, window_bounds = array<i64: 64, 256>}, {pipeline_mode = #tpu.pipeline_mode<synchronous>, transform_indices = @transform_1, window_bounds = array<i64: 1, 256>}, {pipeline_mode = #tpu.pipeline_mode<synchronous>, transform_indices = @transform_2, window_bounds = array<i64: 1, 256>}, {pipeline_mode = #tpu.pipeline_mode<synchronous>, transform_indices = @transform_3, window_bounds = array<i64: 256, 512>}, {pipeline_mode = #tpu.pipeline_mode<synchronous>, transform_indices = @transform_4, window_bounds = array<i64: 1, 512>}, {transform_indices = @transform_5, window_bounds = array<i64: 64, 512>}, {transform_indices = @transform_6, window_bounds = array<i64: 1, 1, 512>}, {transform_indices = @transform_7, window_bounds = array<i64: 1, 1, 512>}]} {
    %c0 = arith.constant 0 : index
    %c0_0 = arith.constant 0 : index
    %0 = vector.load %arg1[%c0, %c0_0] : memref<64x256xbf16, #tpu.memory_space<vmem>>, vector<64x256xbf16>
    %1 = arith.extf %0 : vector<64x256xbf16> to vector<64x256xf32>
    %c0_1 = arith.constant 0 : index
    %c0_2 = arith.constant 0 : index
    %2 = vector.load %arg2[%c0_1, %c0_2] : memref<1x256xf32, #tpu.memory_space<vmem>>, vector<1x256xf32>
    %3 = vector.broadcast %2 : vector<1x256xf32> to vector<64x256xf32>
    %4 = arith.mulf %1, %3 : vector<64x256xf32>
    %c0_3 = arith.constant 0 : index
    %c0_4 = arith.constant 0 : index
    %5 = vector.load %arg3[%c0_3, %c0_4] : memref<1x256xf32, #tpu.memory_space<vmem>>, vector<1x256xf32>
    %6 = vector.broadcast %5 : vector<1x256xf32> to vector<64x256xf32>
    %7 = arith.addf %4, %6 : vector<64x256xf32>
    %cst = arith.constant 0.000000e+00 : f32
    %8 = vector.broadcast %cst : f32 to vector<64x256xf32>
    %9 = arith.maximumf %7, %8 : vector<64x256xf32>
    %10 = arith.truncf %9 : vector<64x256xf32> to vector<64x256xbf16>
    %c0_5 = arith.constant 0 : index
    %c0_6 = arith.constant 0 : index
    %11 = vector.load %arg4[%c0_5, %c0_6] : memref<256x512xbf16, #tpu.memory_space<vmem>>, vector<256x512xbf16>
    %cst_7 = arith.constant dense<0.000000e+00> : vector<64x512xf32>
    %12 = tpu.matmul %10, %11, %cst_7 {dimension_numbers = #tpu.dot_dimension_numbers<[1], [0], [0], [1], [0, 0, 1, 1], [], []>} : vector<64x256xbf16>, vector<256x512xbf16>, vector<64x512xf32> -> vector<64x512xf32>
    %c0_8 = arith.constant 0 : index
    %c0_9 = arith.constant 0 : index
    %13 = vector.load %arg5[%c0_8, %c0_9] : memref<1x512xf32, #tpu.memory_space<vmem>>, vector<1x512xf32>
    %14 = vector.broadcast %13 : vector<1x512xf32> to vector<64x512xf32>
    %15 = arith.addf %12, %14 : vector<64x512xf32>
    %16 = arith.truncf %15 : vector<64x512xf32> to vector<64x512xbf16>
    %c0_10 = arith.constant 0 : index
    %c0_11 = arith.constant 0 : index
    %17 = vector.load %arg6[%c0_10, %c0_11] : memref<64x512xbf16, #tpu.memory_space<vmem>>, vector<64x512xbf16>
    tpu.vector_store %arg6[%c0_10, %c0_11], %16 {strides = array<i32>} : memref<64x512xbf16, #tpu.memory_space<vmem>>, vector<64x512xbf16>,
    %18 = arith.extf %16 : vector<64x512xbf16> to vector<64x512xf32>
    %cst_12 = arith.constant 1.000000e+00 : f32
    %19 = vector.broadcast %cst_12 : f32 to vector<1x64xf32>
    %cst_13 = arith.constant dense<0.000000e+00> : vector<1x512xf32>
    %20 = tpu.matmul %19, %18, %cst_13 {dimension_numbers = #tpu.dot_dimension_numbers<[1], [0], [0], [1], [0, 0, 1, 1], [], []>} : vector<1x64xf32>, vector<64x512xf32>, vector<1x512xf32> -> vector<1x512xf32>
    %21 = vector.shape_cast %20 : vector<1x512xf32> to vector<1x1x512xf32>
    %c0_14 = arith.constant 0 : index
    %c0_15 = arith.constant 0 : index
    %c0_16 = arith.constant 0 : index
    %22 = vector.load %arg7[%c0_14, %c0_15, %c0_16] : memref<1x1x512xf32, #tpu.memory_space<vmem>>, vector<1x1x512xf32>
    tpu.vector_store %arg7[%c0_14, %c0_15, %c0_16], %21 {strides = array<i32>} : memref<1x1x512xf32, #tpu.memory_space<vmem>>, vector<1x1x512xf32>,
    %23 = arith.mulf %18, %18 : vector<64x512xf32>
    %cst_17 = arith.constant dense<0.000000e+00> : vector<1x512xf32>
    %24 = tpu.matmul %19, %23, %cst_17 {dimension_numbers = #tpu.dot_dimension_numbers<[1], [0], [0], [1], [0, 0, 1, 1], [], []>} : vector<1x64xf32>, vector<64x512xf32>, vector<1x512xf32> -> vector<1x512xf32>
    %25 = vector.shape_cast %24 : vector<1x512xf32> to vector<1x1x512xf32>
    %c0_18 = arith.constant 0 : index
    %c0_19 = arith.constant 0 : index
    %c0_20 = arith.constant 0 : index
    %26 = vector.load %arg8[%c0_18, %c0_19, %c0_20] : memref<1x1x512xf32, #tpu.memory_space<vmem>>, vector<1x1x512xf32>
    tpu.vector_store %arg8[%c0_18, %c0_19, %c0_20], %25 {strides = array<i32>} : memref<1x1x512xf32, #tpu.memory_space<vmem>>, vector<1x1x512xf32>,
    return
  }
  func.func @transform_0(%arg0: i32) -> (i32, i32) {
    %c0_i32 = arith.constant 0 : i32
    %c0_i32_0 = arith.constant 0 : i32
    return %arg0, %c0_i32 : i32, i32
  }
  func.func @transform_1(%arg0: i32) -> (i32, i32) {
    %c0_i32 = arith.constant 0 : i32
    %c0_i32_0 = arith.constant 0 : i32
    %c0_i32_1 = arith.constant 0 : i32
    return %c0_i32, %c0_i32_0 : i32, i32
  }
  func.func @transform_2(%arg0: i32) -> (i32, i32) {
    %c0_i32 = arith.constant 0 : i32
    %c0_i32_0 = arith.constant 0 : i32
    %c0_i32_1 = arith.constant 0 : i32
    return %c0_i32, %c0_i32_0 : i32, i32
  }
  func.func @transform_3(%arg0: i32) -> (i32, i32) {
    %c0_i32 = arith.constant 0 : i32
    %c0_i32_0 = arith.constant 0 : i32
    %c0_i32_1 = arith.constant 0 : i32
    return %c0_i32, %c0_i32_0 : i32, i32
  }
  func.func @transform_4(%arg0: i32) -> (i32, i32) {
    %c0_i32 = arith.constant 0 : i32
    %c0_i32_0 = arith.constant 0 : i32
    %c0_i32_1 = arith.constant 0 : i32
    return %c0_i32, %c0_i32_0 : i32, i32
  }
  func.func @transform_5(%arg0: i32) -> (i32, i32) {
    %c0_i32 = arith.constant 0 : i32
    %c0_i32_0 = arith.constant 0 : i32
    return %arg0, %c0_i32 : i32, i32
  }
  func.func @transform_6(%arg0: i32) -> (i32, i32, i32) {
    %c0_i32 = arith.constant 0 : i32
    %c0_i32_0 = arith.constant 0 : i32
    %c0_i32_1 = arith.constant 0 : i32
    return %arg0, %c0_i32, %c0_i32_0 : i32, i32, i32
  }
  func.func @transform_7(%arg0: i32) -> (i32, i32, i32) {
    %c0_i32 = arith.constant 0 : i32
    %c0_i32_0 = arith.constant 0 : i32
    %c0_i32_1 = arith.constant 0 : i32
    return %arg0, %c0_i32, %c0_i32_0 : i32, i32, i32
  }
}

module attributes {stable_mosaic.version = 11 : i64} {
  func.func @kernel(%arg0: i32, %arg1: memref<64x512xbf16, #tpu.memory_space<vmem>>, %arg2: memref<1x512xf32, #tpu.memory_space<vmem>>, %arg3: memref<1x512xf32, #tpu.memory_space<vmem>>, %arg4: memref<512x128xbf16, #tpu.memory_space<vmem>>, %arg5: memref<1x128xf32, #tpu.memory_space<vmem>>, %arg6: memref<64x128xf32, #tpu.memory_space<vmem>>) attributes {dimension_semantics = [#tpu.dimension_semantics<parallel>], iteration_bounds = array<i64: 7>, scalar_prefetch = 0 : i64, scratch_operands = 0 : i64, tpu.core_type = #tpu.core_type<tc>, window_params = [{transform_indices = @transform_0, window_bounds = array<i64: 64, 512>}, {pipeline_mode = #tpu.pipeline_mode<synchronous>, transform_indices = @transform_1, window_bounds = array<i64: 1, 512>}, {pipeline_mode = #tpu.pipeline_mode<synchronous>, transform_indices = @transform_2, window_bounds = array<i64: 1, 512>}, {pipeline_mode = #tpu.pipeline_mode<synchronous>, transform_indices = @transform_3, window_bounds = array<i64: 512, 128>}, {pipeline_mode = #tpu.pipeline_mode<synchronous>, transform_indices = @transform_4, window_bounds = array<i64: 1, 128>}, {transform_indices = @transform_5, window_bounds = array<i64: 64, 128>}]} {
    %c0 = arith.constant 0 : index
    %c0_0 = arith.constant 0 : index
    %0 = vector.load %arg1[%c0, %c0_0] : memref<64x512xbf16, #tpu.memory_space<vmem>>, vector<64x512xbf16>
    %1 = arith.extf %0 : vector<64x512xbf16> to vector<64x512xf32>
    %c0_1 = arith.constant 0 : index
    %c0_2 = arith.constant 0 : index
    %2 = vector.load %arg2[%c0_1, %c0_2] : memref<1x512xf32, #tpu.memory_space<vmem>>, vector<1x512xf32>
    %3 = vector.broadcast %2 : vector<1x512xf32> to vector<64x512xf32>
    %4 = arith.mulf %1, %3 : vector<64x512xf32>
    %c0_3 = arith.constant 0 : index
    %c0_4 = arith.constant 0 : index
    %5 = vector.load %arg3[%c0_3, %c0_4] : memref<1x512xf32, #tpu.memory_space<vmem>>, vector<1x512xf32>
    %6 = vector.broadcast %5 : vector<1x512xf32> to vector<64x512xf32>
    %7 = arith.addf %4, %6 : vector<64x512xf32>
    %cst = arith.constant 0.000000e+00 : f32
    %8 = vector.broadcast %cst : f32 to vector<64x512xf32>
    %9 = arith.maximumf %7, %8 : vector<64x512xf32>
    %10 = arith.truncf %9 : vector<64x512xf32> to vector<64x512xbf16>
    %c0_5 = arith.constant 0 : index
    %c0_6 = arith.constant 0 : index
    %11 = vector.load %arg4[%c0_5, %c0_6] : memref<512x128xbf16, #tpu.memory_space<vmem>>, vector<512x128xbf16>
    %cst_7 = arith.constant dense<0.000000e+00> : vector<64x128xf32>
    %12 = tpu.matmul %10, %11, %cst_7 {dimension_numbers = #tpu.dot_dimension_numbers<[1], [0], [0], [1], [0, 0, 1, 1], [], []>} : vector<64x512xbf16>, vector<512x128xbf16>, vector<64x128xf32> -> vector<64x128xf32>
    %c0_8 = arith.constant 0 : index
    %c0_9 = arith.constant 0 : index
    %13 = vector.load %arg5[%c0_8, %c0_9] : memref<1x128xf32, #tpu.memory_space<vmem>>, vector<1x128xf32>
    %14 = vector.broadcast %13 : vector<1x128xf32> to vector<64x128xf32>
    %15 = arith.addf %12, %14 : vector<64x128xf32>
    %c0_10 = arith.constant 0 : index
    %c0_11 = arith.constant 0 : index
    %16 = vector.load %arg6[%c0_10, %c0_11] : memref<64x128xf32, #tpu.memory_space<vmem>>, vector<64x128xf32>
    tpu.vector_store %arg6[%c0_10, %c0_11], %15 {strides = array<i32>} : memref<64x128xf32, #tpu.memory_space<vmem>>, vector<64x128xf32>,
    return
  }
  func.func @transform_0(%arg0: i32) -> (i32, i32) {
    %c0_i32 = arith.constant 0 : i32
    %c0_i32_0 = arith.constant 0 : i32
    return %arg0, %c0_i32 : i32, i32
  }
  func.func @transform_1(%arg0: i32) -> (i32, i32) {
    %c0_i32 = arith.constant 0 : i32
    %c0_i32_0 = arith.constant 0 : i32
    %c0_i32_1 = arith.constant 0 : i32
    return %c0_i32, %c0_i32_0 : i32, i32
  }
  func.func @transform_2(%arg0: i32) -> (i32, i32) {
    %c0_i32 = arith.constant 0 : i32
    %c0_i32_0 = arith.constant 0 : i32
    %c0_i32_1 = arith.constant 0 : i32
    return %c0_i32, %c0_i32_0 : i32, i32
  }
  func.func @transform_3(%arg0: i32) -> (i32, i32) {
    %c0_i32 = arith.constant 0 : i32
    %c0_i32_0 = arith.constant 0 : i32
    %c0_i32_1 = arith.constant 0 : i32
    return %c0_i32, %c0_i32_0 : i32, i32
  }
  func.func @transform_4(%arg0: i32) -> (i32, i32) {
    %c0_i32 = arith.constant 0 : i32
    %c0_i32_0 = arith.constant 0 : i32
    %c0_i32_1 = arith.constant 0 : i32
    return %c0_i32, %c0_i32_0 : i32, i32
  }
  func.func @transform_5(%arg0: i32) -> (i32, i32) {
    %c0_i32 = arith.constant 0 : i32
    %c0_i32_0 = arith.constant 0 : i32
    return %arg0, %c0_i32 : i32, i32
  }
}

</mosaic_0001>

<llo_original>
// kernel: tile.53
$region0: #{tile.53}
  #allocation0 [shape = 's32[1]{0}', space=sflag, size = 0x4, scoped, tag = 'scoped memory for tile.53']
  %s0 = inlined_call_operand.vmem [shape: f32[64], index: 0, kind: input, shape index: {}]
  %s1 = inlined_call_operand.vmem [shape: f32[2,64], index: 1, kind: output, shape index: {}]
  // Predicated region
  $region2: #{tile.53} parent=0 // pred_check
    _
  $region3: #{tile.53} parent=0 // pred_check_branch
    %3 = sbr.rel (0) target = $region5
  $region4: #{tile.53} parent=0 // pred_region
    _
  $region5: #{tile.53} parent=0 // pred_fallthru
    _
  %v4 = vld [vmem:[%s0] ss:$0 sm:$0xff]
  %5 = vst [vmem:[%s1] sm:$0x3] %v4

// kernel: tile.54
$region0: #{tile.54}
  %s0 = inlined_call_operand.vmem [shape: f32[2,64], index: 0, kind: input, shape index: {}]
  %s1 = inlined_call_operand.vmem [shape: f32[1,128], index: 1, kind: output, shape index: {}]
  $region1: #{tile.54} parent=0
    #allocation0 [shape = 'u8[4096]{0}', space=vmem, size = 0x1000, scoped, tag = 'scoped mem for output reshape']
    #allocation1 [shape = 'u8[4096]{0}', space=vmem, size = 0x1000, scoped, tag = 'scoped mem for input reshape']
    %s3 = sshllo.u32 0, 2
    %v4 = vld [vmem:[%s0] sm:%s3]
    %5 = vst [vmem:[#allocation1] sm:%s3] %v4
    %v6 = vld [vmem:[#allocation1] sm:$0x1]
    %vm7 = vcmask 523264
    %8 = vst.msk [vmem:[#allocation0] sm:$0x1] %vm7, %v6
    %s9 = scalar_lea.vmem [#allocation1], 1
    %v10 = vld [vmem:[%s9] sm:$0x1]
    %11 = vrot.lane.b32.xlu0 %v10, 64
    %v12 = vpop.permute.xlu0 %11
    %vm13 = vcmask 1048064
    %14 = vst.msk [vmem:[#allocation0] sm:$0x1] %vm13, %v12
    %s16 = sshllo.u32 0, 1
    %v18 = vld [vmem:[#allocation0] sm:%s16]
    %s19 = sshllo.u32 0, 1
    %20 = vst [vmem:[%s1] sm:%s19] %v18

// kernel: tile.58
$region0: #{tile.58}
  #allocation0 [shape = 's32[1]{0}', space=sflag, size = 0x4, scoped, tag = 'scoped memory for tile.58']
  %s0 = inlined_call_operand.vmem [shape: f32[128], index: 0, kind: input, shape index: {}]
  %s1 = inlined_call_operand.vmem [shape: f32[2,128], index: 1, kind: output, shape index: {}]
  // Predicated region
  $region2: #{tile.58} parent=0 // pred_check
    _
  $region3: #{tile.58} parent=0 // pred_check_branch
    %3 = sbr.rel (0) target = $region5
  $region4: #{tile.58} parent=0 // pred_region
    _
  $region5: #{tile.58} parent=0 // pred_fallthru
    _
  %v4 = vld [vmem:[%s0] ss:$0 sm:$0xff]
  %5 = vst [vmem:[%s1] sm:$0x3] %v4

// kernel: pointnet_forward.4
$region0: #{pointnet_forward.4}
  #allocation0 [shape = 'u32[]', space=smem, size = 0x4, offset = 0x4, fixed_abs, tag = 'smem constant byte address 0x4 - core index']
  #allocation1 [shape = 'u32[144,128]{1,0:T(1,128)}', space=vmem, size = 0x12000, scoped, tag = 'internal scratch']
  %s0 = inlined_call_operand.vmem [shape: f32[448,18], index: 0, kind: input, shape index: {}]
  %s1 = inlined_call_operand.vmem [shape: bf16[18,128], index: 1, kind: input, shape index: {}]
  %s2 = inlined_call_operand.vmem [shape: f32[1,128], index: 2, kind: input, shape index: {}]
  %s3 = inlined_call_operand.vmem [shape: bf16[448,128], index: 3, kind: output, shape index: {0}]
  %s4 = inlined_call_operand.vmem [shape: f32[7,1,128], index: 4, kind: output, shape index: {1}]
  %s5 = inlined_call_operand.vmem [shape: f32[7,1,128], index: 5, kind: output, shape index: {2}]
  %6 = xla_tuple %s3, %s4, %s5
  %s7 = sld [smem:[#allocation0]]
  $region61: #{pointnet_forward.4} parent=0
    _
  %s9 = ssub.s32 1, %s7
  %s10 = scalar_select 0, %s9, %s7
  loop: start=0, step=1, limit=9
  $region2: #{pointnet_forward.4} parent=0 // loop_pre_header
    _
  $region3: #{pointnet_forward.4} parent=0 // loop_header
    %s12 = sphi 0, %s16
    %p13 = scmp.ge.s32.totalorder %s12, 9
    %s22 = sphi 0, %s24
    %s25 = sphi 0, %s22
    %s26 = sphi 0, %s25
    %s42 = sphi 0, %s26
    %s46 = sphi 0, %s46
    %s48 = sphi 0, %s46
    %s49 = sphi 0, %s48
    %s63 = sphi 0, %s49
    %s67 = sphi 0, %s67
    %s69 = sphi 0, %s67
    %s70 = sphi 0, %s69
    %s84 = sphi 0, %s70
    %s90 = sphi 0, %s92
    %s93 = sphi 0, %s90
    %s94 = sphi 0, %s93
    %s110 = sphi 0, %s94
    %s116 = sphi 0, %s118
    %s119 = sphi 0, %s116
    %s120 = sphi 0, %s119
    %s136 = sphi 0, %s120
    %s142 = sphi 0, %s144
    %s145 = sphi 0, %s142
    %s146 = sphi 0, %s145
    %s162 = sphi 0, %s146
  $region4: #{pointnet_forward.4} parent=0 // loop_header_branch
    %15 = sbr.rel (%p13) target = $region8
  $region5: #{pointnet_forward.4} parent=0 // loop_body
    %s17 = ssub.s32 %s12, 1
    %s18 = ssub.s32 %s12, 2
    %s19 = sadd.s32 %s12, 1
    %s20 = ssub.s32 %s12, %s19
    %p21 = scmp.eq.s32.totalorder %s20, 0
    %s23 = sadd.s32 %s22, 1
    %s24 = scalar_select %p21, %s22, %s23
    %p27 = pneg %p21
    %p28 = scmp.eq.s32.totalorder %s12, 6
    %p29 = por %p27, %p28
    %p30 = scmp.ne.s32.totalorder %s22, %s25
    %p31 = scmp.eq.s32.totalorder %s12, 0
    %p32 = por %p30, %p31
    %p33 = scmp.ne.s32.totalorder %s22, %s25
    %p34 = scmp.eq.s32.totalorder %s17, 6
    %p35 = por %p33, %p34
    %p36 = scmp.ne.s32.totalorder %s25, %s26
    %p37 = scmp.eq.s32.totalorder %s17, 0
    %p38 = por %p36, %p37
    %p39 = scmp.ne.s32.totalorder %s25, %s26
    %p40 = scmp.eq.s32.totalorder %s18, 6
    %p41 = por %p39, %p40
    %p43 = scmp.ne.s32.totalorder %s26, %s42
    %p44 = scmp.eq.s32.totalorder %s18, 0
    %p45 = por %p43, %p44
    %s47 = sadd.s32 %s46, 1
    %p50 = scmp.eq.s32.totalorder %s12, 6
    %p51 = scmp.ne.s32.totalorder %s46, %s48
    %p52 = scmp.eq.s32.totalorder %s12, 0
    %p53 = por %p51, %p52
    %p54 = scmp.ne.s32.totalorder %s46, %s48
    %p55 = scmp.eq.s32.totalorder %s17, 6
    %p56 = por %p54, %p55
    %p57 = scmp.ne.s32.totalorder %s48, %s49
    %p58 = scmp.eq.s32.totalorder %s17, 0
    %p59 = por %p57, %p58
    %p60 = scmp.ne.s32.totalorder %s48, %s49
    %p61 = scmp.eq.s32.totalorder %s18, 6
    %p62 = por %p60, %p61
    %p64 = scmp.ne.s32.totalorder %s49, %s63
    %p65 = scmp.eq.s32.totalorder %s18, 0
    %p66 = por %p64, %p65
    %s68 = sadd.s32 %s67, 1
    %p71 = scmp.eq.s32.totalorder %s12, 6
    %p72 = scmp.ne.s32.totalorder %s67, %s69
    %p73 = scmp.eq.s32.totalorder %s12, 0
    %p74 = por %p72, %p73
    %p75 = scmp.ne.s32.totalorder %s67, %s69
    %p76 = scmp.eq.s32.totalorder %s17, 6
    %p77 = por %p75, %p76
    %p78 = scmp.ne.s32.totalorder %s69, %s70
    %p79 = scmp.eq.s32.totalorder %s17, 0
    %p80 = por %p78, %p79
    %p81 = scmp.ne.s32.totalorder %s69, %s70
    %p82 = scmp.eq.s32.totalorder %s18, 6
    %p83 = por %p81, %p82
    %p85 = scmp.ne.s32.totalorder %s70, %s84
    %p86 = scmp.eq.s32.totalorder %s18, 0
    %p87 = por %p85, %p86
    %s88 = ssub.s32 %s12, %s19
    %p89 = scmp.eq.s32.totalorder %s88, 0
    %s91 = sadd.s32 %s90, 1
    %s92 = scalar_select %p89, %s90, %s91
    %p95 = pneg %p89
    %p96 = scmp.eq.s32.totalorder %s12, 6
    %p97 = por %p95, %p96
    %p98 = scmp.ne.s32.totalorder %s90, %s93
    %p99 = scmp.eq.s32.totalorder %s12, 0
    %p100 = por %p98, %p99
    %p101 = scmp.ne.s32.totalorder %s90, %s93
    %p102 = scmp.eq.s32.totalorder %s17, 6
    %p103 = por %p101, %p102
    %p104 = scmp.ne.s32.totalorder %s93, %s94
    %p105 = scmp.eq.s32.totalorder %s17, 0
    %p106 = por %p104, %p105
    %p107 = scmp.ne.s32.totalorder %s93, %s94
    %p108 = scmp.eq.s32.totalorder %s18, 6
    %p109 = por %p107, %p108
    %p111 = scmp.ne.s32.totalorder %s94, %s110
    %p112 = scmp.eq.s32.totalorder %s18, 0
    %p113 = por %p111, %p112
    %s114 = ssub.s32 %s12, %s19
    %p115 = scmp.eq.s32.totalorder %s114, 0
    %s117 = sadd.s32 %s116, 1
    %s118 = scalar_select %p115, %s116, %s117
    %p121 = pneg %p115
    %p122 = scmp.eq.s32.totalorder %s12, 6
    %p123 = por %p121, %p122
    %p124 = scmp.ne.s32.totalorder %s116, %s119
    %p125 = scmp.eq.s32.totalorder %s12, 0
    %p126 = por %p124, %p125
    %p127 = scmp.ne.s32.totalorder %s116, %s119
    %p128 = scmp.eq.s32.totalorder %s17, 6
    %p129 = por %p127, %p128
    %p130 = scmp.ne.s32.totalorder %s119, %s120
    %p131 = scmp.eq.s32.totalorder %s17, 0
    %p132 = por %p130, %p131
    %p133 = scmp.ne.s32.totalorder %s119, %s120
    %p134 = scmp.eq.s32.totalorder %s18, 6
    %p135 = por %p133, %p134
    %p137 = scmp.ne.s32.totalorder %s120, %s136
    %p138 = scmp.eq.s32.totalorder %s18, 0
    %p139 = por %p137, %p138
    %s140 = ssub.s32 %s12, %s19
    %p141 = scmp.eq.s32.totalorder %s140, 0
    %s143 = sadd.s32 %s142, 1
    %s144 = scalar_select %p141, %s142, %s143
    %p147 = pneg %p141
    %p148 = scmp.eq.s32.totalorder %s12, 6
    %p149 = por %p147, %p148
    %p150 = scmp.ne.s32.totalorder %s142, %s145
    %p151 = scmp.eq.s32.totalorder %s12, 0
    %p152 = por %p150, %p151
    %p153 = scmp.ne.s32.totalorder %s142, %s145
    %p154 = scmp.eq.s32.totalorder %s17, 6
    %p155 = por %p153, %p154
    %p156 = scmp.ne.s32.totalorder %s145, %s146
    %p157 = scmp.eq.s32.totalorder %s17, 0
    %p158 = por %p156, %p157
    %p159 = scmp.ne.s32.totalorder %s145, %s146
    %p160 = scmp.eq.s32.totalorder %s18, 6
    %p161 = por %p159, %p160
    %p163 = scmp.ne.s32.totalorder %s146, %s162
    %p164 = scmp.eq.s32.totalorder %s18, 0
    %p165 = por %p163, %p164
    %p166 = scmp.le.s32.totalorder 1, %s12
    %p167 = scmp.lt.s32.totalorder %s12, 8
    %p168 = pnand %p166, %p167
    %p169 = pneg %p168
    // Predicated region
    $region9: #{pointnet_forward.4} parent=5 // pred_check
      _
    $region10: #{pointnet_forward.4} parent=5 // pred_check_branch
      %171 = sbr.rel (%p168) target = $region12
    $region11: #{pointnet_forward.4} parent=5 // pred_region
      %s172 = ssub.s32 %s12, 1
      // Predicated region
      $region13: #{pointnet_forward.4} parent=11 // pred_check
        %p173 = pneg %p59
      $region14: #{pointnet_forward.4} parent=11 // pred_check_branch
        %175 = sbr.rel (%p173) target = $region16
      $region15: #{pointnet_forward.4} parent=11 // pred_region
        _
      $region16: #{pointnet_forward.4} parent=11 // pred_fallthru
        _
      // Predicated region
      $region17: #{pointnet_forward.4} parent=11 // pred_check
        %p176 = pneg %p80
      $region18: #{pointnet_forward.4} parent=11 // pred_check_branch
        %178 = sbr.rel (%p176) target = $region20
      $region19: #{pointnet_forward.4} parent=11 // pred_region
        _
      $region20: #{pointnet_forward.4} parent=11 // pred_fallthru
        _
    $region12: #{pointnet_forward.4} parent=5 // pred_fallthru
      _
    %p179 = scmp.lt.s32.totalorder %s12, 7
    // Predicated region
    $region21: #{pointnet_forward.4} parent=5 // pred_check
      %p180 = pneg %p179
    $region22: #{pointnet_forward.4} parent=5 // pred_check_branch
      %182 = sbr.rel (%p180) target = $region24
    $region23: #{pointnet_forward.4} parent=5 // pred_region
      // Predicated region
      $region25: #{pointnet_forward.4} parent=23 // pred_check
        %p183 = pneg %p32
      $region26: #{pointnet_forward.4} parent=23 // pred_check_branch
        %185 = sbr.rel (%p183) target = $region28
      $region27: #{pointnet_forward.4} parent=23 // pred_region
        %s186 = smul.u32 8, %s12
        %p187 = scmp.lt.s32.totalorder %s186, 55
        %s188 = scalar_select %p187, %s186, 55
        %s189 = smul.addr %s188, 8
        %s190 = scalar_lea.vmem %s0, %s189
        %s191 = smul.u32 8, %s12
      $region28: #{pointnet_forward.4} parent=23 // pred_fallthru
        _
    $region24: #{pointnet_forward.4} parent=5 // pred_fallthru
      _
    %p192 = scmp.le.s32.totalorder 1, %s12
    %p193 = scmp.lt.s32.totalorder %s12, 8
    %p194 = pnand %p192, %p193
    %p195 = pneg %p194
    // Predicated region
    $region29: #{pointnet_forward.4} parent=5 // pred_check
      _
    $region30: #{pointnet_forward.4} parent=5 // pred_check_branch
      %197 = sbr.rel (%p194) target = $region32
    $region31: #{pointnet_forward.4} parent=5 // pred_region
      %s198 = ssub.s32 %s12, 1
      %s199 = smul.u32 8, %s17
      %p200 = scmp.lt.s32.totalorder %s199, 55
      %s201 = scalar_select %p200, %s199, 55
      %s202 = smul.addr %s201, 8
      %s203 = scalar_lea.vmem %s0, %s202
      %p204 = pneg %p38
      %p205 = pneg %p35
      %p206 = pneg %p59
      %p207 = pneg %p56
      %p208 = pneg %p80
      %p209 = pneg %p77
      %p210 = pneg %p106
      %p211 = pneg %p103
      %s212 = smul.u32 8, %s17
      %p213 = scmp.lt.s32.totalorder %s212, 55
      %s214 = scalar_select %p213, %s212, 55
      %s215 = smul.addr %s214, 4
      %s216 = scalar_lea.vmem %s3, %s215
      %p217 = pneg %p132
      %p218 = pneg %p129
      %p219 = scmp.lt.s32.totalorder %s17, 6
      %s220 = scalar_select %p219, %s17, 6
      %s221 = scalar_lea.vmem %s4, %s220
      %p222 = pneg %p158
      %p223 = pneg %p155
      %p224 = scmp.lt.s32.totalorder %s17, 6
      %s225 = scalar_select %p224, %s17, 6
      %s226 = scalar_lea.vmem %s5, %s225
      %s227 = smul.u32 8, %s17
      %p228 = scmp.lt.s32.totalorder %s227, 55
      %s229 = scalar_select %p228, %s227, 55
      %s230 = smul.addr %s229, 8
      %s231 = scalar_lea.vmem %s0, %s230
      %s232 = smul.u32 8, %s17
      %s233 = smul.u32 8, %s17
      %p234 = scmp.lt.s32.totalorder %s233, 55
      %s235 = scalar_select %p234, %s233, 55
      %s236 = smul.addr %s235, 4
      %s237 = scalar_lea.vmem %s3, %s236
      %s238 = smul.u32 8, %s17
      %p239 = scmp.lt.s32.totalorder %s17, 6
      %s240 = scalar_select %p239, %s17, 6
      %s241 = scalar_lea.vmem %s4, %s240
      %p242 = scmp.lt.s32.totalorder %s17, 6
      %s243 = scalar_select %p242, %s17, 6
      %s244 = scalar_lea.vmem %s5, %s243
      %v246 = vld [vmem:[%s231] sm:$0xff]
      %v247 = vld [vmem:[%s231 + $0x8] sm:$0xff]
      %v248 = vld [vmem:[%s231 + $0x10] sm:$0xff]
      %v249 = vld [vmem:[%s231 + $0x18] sm:$0xff]
      %v250 = vld [vmem:[%s231 + $0x20] sm:$0xff]
      %v251 = vld [vmem:[%s231 + $0x28] sm:$0xff]
      %v252 = vld [vmem:[%s231 + $0x30] sm:$0xff]
      %v253 = vld [vmem:[%s231 + $0x38] sm:$0xff]
      %v254 = vpack.c.bf16 %v247, %v246
      %v255 = vpack.c.bf16 %v249, %v248
      %v256 = vpack.c.bf16 %v251, %v250
      %v257 = vpack.c.bf16 %v253, %v252
      %v258 = vld [vmem:[%s1] sm:$0xf]
      %v259 = vld [vmem:[%s1 + $0x4] sm:$0xf]
      %v260 = vld [vmem:[%s1 + $0x8] sm:$0x1]
      %v261 = vld [vmem:[%s2] sm:$0x1]
      %v263 = vlaneseq
      %v264 = vshrl.u32 %v263, 7
      %v265 = vsub.s32 0, %v264
      %v266 = vrot.slane %v261, %v265
      %v271 = vunpack.c.l.b16 %v258
      %v272 = vunpack.c.l.b16 %v259
      %v273 = vunpack.c.l.b16 %v260
      %v274 = vpack.c.b16 %v272, %v271
      %v275 = vpack.c.b16 %v273, %v273
      %vm277 = vcmask 146432
      %v279 = vsel %vm277, %v254, 0
      %v282 = vsel %vm277, %v255, 0
      %v285 = vsel %vm277, %v256, 0
      %v288 = vsel %vm277, %v257, 0
      %vm290 = vcmask 1040384
      %v292 = vsel %vm290, %v275, 0
      %294 = vmatprep.subr.bf16.mxu0 0
      %295 = vmatpush1.bf16.msra.mxu0 %v274
      %296 = vmatprep.subr.bf16.mxu0 0
      %297 = vmatpush1.bf16.msra.mxu0 %v292
      %298 = vmatprep.subr.bf16.mxu0 0
      %299 = vmatpush1.bf16.msra.mxu0 0
      %300 = vmatprep.subr.bf16.mxu0 0
      %301 = vmatpush1.bf16.msra.mxu0 0
      %302 = vmatprep.subr.bf16.mxu0 0
      %303 = vmatpush1.bf16.msra.mxu0 0
      %304 = vmatprep.subr.bf16.mxu0 0
      %305 = vmatpush1.bf16.msra.mxu0 0
      %306 = vmatprep.subr.bf16.mxu0 0
      %307 = vmatpush1.bf16.msra.mxu0 0
      %308 = vmatprep.subr.bf16.mxu0 0
      %309 = vmatpush1.bf16.msra.mxu0 0
      %310 = vmatprep.subr.bf16.mxu0 0
      %311 = vmatpush1.bf16.msra.mxu0 0
      %312 = vmatprep.subr.bf16.mxu0 0
      %313 = vmatpush1.bf16.msra.mxu0 0
      %314 = vmatprep.subr.bf16.mxu0 0
      %315 = vmatpush1.bf16.msra.mxu0 0
      %316 = vmatprep.subr.bf16.mxu0 0
      %317 = vmatpush1.bf16.msra.mxu0 0
      %318 = vmatprep.subr.bf16.mxu0 0
      %319 = vmatpush1.bf16.msra.mxu0 0
      %320 = vmatprep.subr.bf16.mxu0 0
      %321 = vmatpush1.bf16.msra.mxu0 0
      %322 = vmatprep.subr.bf16.mxu0 0
      %323 = vmatpush1.bf16.msra.mxu0 0
      %324 = vmatprep.subr.bf16.mxu0 0
      %325 = vmatpush1.bf16.msra.mxu0 0
      %326 = vmatprep.mubr.bf16.mxu0 0
      %327 = vmatmul.mubr.bf16.gmra.mrb[0].mxu0 %v279
      %v328 = vpop.f32.mrb[0].mxu0
      %v329 = vadd.f32 %v266, %v328
      %v330 = vpop.f32.mrb[0].mxu0
      %v331 = vpop.f32.mrb[0].mxu0
      %v332 = vadd.f32 %v266, %v331
      %v333 = vpop.f32.mrb[0].mxu0
      %334 = vmatprep.mubr.bf16.mxu0 0
      %335 = vmatmul.mubr.bf16.gmra.mrb[0].mxu0 %v282
      %v336 = vpop.f32.mrb[0].mxu0
      %v337 = vadd.f32 %v266, %v336
      %v338 = vpop.f32.mrb[0].mxu0
      %v339 = vpop.f32.mrb[0].mxu0
      %v340 = vadd.f32 %v266, %v339
      %v341 = vpop.f32.mrb[0].mxu0
      %342 = vmatprep.mubr.bf16.mxu0 0
      %343 = vmatmul.mubr.bf16.gmra.mrb[0].mxu0 %v285
      %v344 = vpop.f32.mrb[0].mxu0
      %v345 = vadd.f32 %v266, %v344
      %v346 = vpop.f32.mrb[0].mxu0
      %v347 = vpop.f32.mrb[0].mxu0
      %v348 = vadd.f32 %v266, %v347
      %v349 = vpop.f32.mrb[0].mxu0
      %350 = vmatprep.mubr.bf16.mxu0 0
      %351 = vmatmul.mubr.bf16.gmra.mrb[0].mxu0 %v288
      %v352 = vpop.f32.mrb[0].mxu0
      %v353 = vadd.f32 %v266, %v352
      %v354 = vpop.f32.mrb[0].mxu0
      %v355 = vpop.f32.mrb[0].mxu0
      %v356 = vadd.f32 %v266, %v355
      %v357 = vpop.f32.mrb[0].mxu0
      %358 = vdwg.mxu0
      %v359 = vpack.c.bf16 %v332, %v329
      %v360 = vpack.c.bf16 %v340, %v337
      %v361 = vpack.c.bf16 %v348, %v345
      %v362 = vpack.c.bf16 %v356, %v353
      %v367 = vunpack.c.l.b16 %v359
      %v368 = vunpack.c.h.b16 %v359
      %v369 = vunpack.c.l.b16 %v360
      %v370 = vunpack.c.h.b16 %v360
      %v371 = vunpack.c.l.b16 %v361
      %v372 = vunpack.c.h.b16 %v361
      %v373 = vunpack.c.l.b16 %v362
      %v374 = vunpack.c.h.b16 %v362
      %v375 = vpack.c.b16 %v367, %v367
      %v376 = vpack.c.b16 %v368, %v368
      %v377 = vpack.c.b16 %v369, %v369
      %v378 = vpack.c.b16 %v370, %v370
      %v379 = vpack.c.b16 %v371, %v371
      %v380 = vpack.c.b16 %v372, %v372
      %v381 = vpack.c.b16 %v373, %v373
      %v382 = vpack.c.b16 %v374, %v374
      %391 = vst [vmem:[%s237] sm:$0xf] %v375
      %392 = vst [vmem:[%s237 + $0x4] sm:$0xf] %v376
      %393 = vst [vmem:[%s237 + $0x8] sm:$0xf] %v377
      %394 = vst [vmem:[%s237 + $0xc] sm:$0xf] %v378
      %395 = vst [vmem:[%s237 + $0x10] sm:$0xf] %v379
      %396 = vst [vmem:[%s237 + $0x14] sm:$0xf] %v380
      %397 = vst [vmem:[%s237 + $0x18] sm:$0xf] %v381
      %398 = vst [vmem:[%s237 + $0x1c] sm:$0xf] %v382
      %v399 = vunpack.c.l.bf16 %v359
      %v400 = vunpack.c.h.bf16 %v359
      %v401 = vunpack.c.l.bf16 %v360
      %v402 = vunpack.c.h.bf16 %v360
      %v403 = vunpack.c.l.bf16 %v361
      %v404 = vunpack.c.h.bf16 %v361
      %v405 = vunpack.c.l.bf16 %v362
      %v406 = vunpack.c.h.bf16 %v362
      %vm407 = vcmask 523264
      %v409 = vsel %vm407, 1.0, 0
      %411 = vmatprep.subr.mxu0 0.0
      %412 = vmatpush1.msra.mxu0 %v399
      %413 = vmatprep.subr.mxu0 0.0
      %414 = vmatpush1.msra.mxu0 %v400
      %415 = vmatprep.subr.mxu0 0.0
      %416 = vmatpush1.msra.mxu0 %v401
      %417 = vmatprep.subr.mxu0 0.0
      %418 = vmatpush1.msra.mxu0 %v402
      %419 = vmatprep.subr.mxu0 0.0
      %420 = vmatpush1.msra.mxu0 %v403
      %421 = vmatprep.subr.mxu0 0.0
      %422 = vmatpush1.msra.mxu0 %v404
      %423 = vmatprep.subr.mxu0 0.0
      %424 = vmatpush1.msra.mxu0 %v405
      %425 = vmatprep.subr.mxu0 0.0
      %426 = vmatpush1.msra.mxu0 %v406
      %427 = vmatprep.subr.mxu0 0.0
      %428 = vmatpush1.msra.mxu0 0.0
      %429 = vmatprep.subr.mxu0 0.0
      %430 = vmatpush1.msra.mxu0 0.0
      %431 = vmatprep.subr.mxu0 0.0
      %432 = vmatpush1.msra.mxu0 0.0
      %433 = vmatprep.subr.mxu0 0.0
      %434 = vmatpush1.msra.mxu0 0.0
      %435 = vmatprep.subr.mxu0 0.0
      %436 = vmatpush1.msra.mxu0 0.0
      %437 = vmatprep.subr.mxu0 0.0
      %438 = vmatpush1.msra.mxu0 0.0
      %439 = vmatprep.subr.mxu0 0.0
      %440 = vmatpush1.msra.mxu0 0.0
      %441 = vmatprep.subr.mxu0 0.0
      %442 = vmatpush1.msra.mxu0 0.0
      %443 = vmatprep.subr.mxu0 0.0
      %444 = vmatpush1.msra.mxu0 0.0
      %445 = vmatprep.subr.mxu0 0.0
      %446 = vmatpush1.msra.mxu0 0.0
      %447 = vmatprep.subr.mxu0 0.0
      %448 = vmatpush1.msra.mxu0 0.0
      %449 = vmatprep.subr.mxu0 0.0
      %450 = vmatpush1.msra.mxu0 0.0
      %451 = vmatprep.subr.mxu0 0.0
      %452 = vmatpush1.msra.mxu0 0.0
      %453 = vmatprep.subr.mxu0 0.0
      %454 = vmatpush1.msra.mxu0 0.0
      %455 = vmatprep.subr.mxu0 0.0
      %456 = vmatpush1.msra.mxu0 0.0
      %457 = vmatprep.subr.mxu0 0.0
      %458 = vmatpush1.msra.mxu0 0.0
      %459 = vmatprep.subr.mxu0 0.0
      %460 = vmatpush1.msra.mxu0 0.0
      %461 = vmatprep.subr.mxu0 0.0
      %462 = vmatpush1.msra.mxu0 0.0
      %463 = vmatprep.subr.mxu0 0.0
      %464 = vmatpush1.msra.mxu0 0.0
      %465 = vmatprep.subr.mxu0 0.0
      %466 = vmatpush1.msra.mxu0 0.0
      %467 = vmatprep.subr.mxu0 0.0
      %468 = vmatpush1.msra.mxu0 0.0
      %469 = vmatprep.subr.mxu0 0.0
      %470 = vmatpush1.msra.mxu0 0.0
      %471 = vmatprep.subr.mxu0 0.0
      %472 = vmatpush1.msra.mxu0 0.0
      %473 = vmatprep.subr.mxu0 0.0
      %474 = vmatpush1.msra.mxu0 0.0
      %475 = vmatprep.mubr.f32.mxu0 0.0
      %476 = vmatmul.mubr.f32.gmra.mrb[0].mxu0 %v409
      %v477 = vpop.f32.mrb[0].mxu0
      %v478 = vadd.f32 0.0, %v477
      %v479 = vpop.f32.mrb[0].mxu0
      %480 = vdwg.mxu0
      %481 = vst [vmem:[%s241] sm:$0x1] %v478
      %v482 = vmul.f32 %v399, %v399
      %v483 = vmul.f32 %v400, %v400
      %v484 = vmul.f32 %v401, %v401
      %v485 = vmul.f32 %v402, %v402
      %v486 = vmul.f32 %v403, %v403
      %v487 = vmul.f32 %v404, %v404
      %v488 = vmul.f32 %v405, %v405
      %v489 = vmul.f32 %v406, %v406
      %490 = vmatprep.subr.mxu0 0.0
      %491 = vmatpush1.msra.mxu0 %v482
      %492 = vmatprep.subr.mxu0 0.0
      %493 = vmatpush1.msra.mxu0 %v483
      %494 = vmatprep.subr.mxu0 0.0
      %495 = vmatpush1.msra.mxu0 %v484
      %496 = vmatprep.subr.mxu0 0.0
      %497 = vmatpush1.msra.mxu0 %v485
      %498 = vmatprep.subr.mxu0 0.0
      %499 = vmatpush1.msra.mxu0 %v486
      %500 = vmatprep.subr.mxu0 0.0
      %501 = vmatpush1.msra.mxu0 %v487
      %502 = vmatprep.subr.mxu0 0.0
      %503 = vmatpush1.msra.mxu0 %v488
      %504 = vmatprep.subr.mxu0 0.0
      %505 = vmatpush1.msra.mxu0 %v489
      %506 = vmatprep.subr.mxu0 0.0
      %507 = vmatpush1.msra.mxu0 0.0
      %508 = vmatprep.subr.mxu0 0.0
      %509 = vmatpush1.msra.mxu0 0.0
      %510 = vmatprep.subr.mxu0 0.0
      %511 = vmatpush1.msra.mxu0 0.0
      %512 = vmatprep.subr.mxu0 0.0
      %513 = vmatpush1.msra.mxu0 0.0
      %514 = vmatprep.subr.mxu0 0.0
      %515 = vmatpush1.msra.mxu0 0.0
      %516 = vmatprep.subr.mxu0 0.0
      %517 = vmatpush1.msra.mxu0 0.0
      %518 = vmatprep.subr.mxu0 0.0
      %519 = vmatpush1.msra.mxu0 0.0
      %520 = vmatprep.subr.mxu0 0.0
      %521 = vmatpush1.msra.mxu0 0.0
      %522 = vmatprep.subr.mxu0 0.0
      %523 = vmatpush1.msra.mxu0 0.0
      %524 = vmatprep.subr.mxu0 0.0
      %525 = vmatpush1.msra.mxu0 0.0
      %526 = vmatprep.subr.mxu0 0.0
      %527 = vmatpush1.msra.mxu0 0.0
      %528 = vmatprep.subr.mxu0 0.0
      %529 = vmatpush1.msra.mxu0 0.0
      %530 = vmatprep.subr.mxu0 0.0
      %531 = vmatpush1.msra.mxu0 0.0
      %532 = vmatprep.subr.mxu0 0.0
      %533 = vmatpush1.msra.mxu0 0.0
      %534 = vmatprep.subr.mxu0 0.0
      %535 = vmatpush1.msra.mxu0 0.0
      %536 = vmatprep.subr.mxu0 0.0
      %537 = vmatpush1.msra.mxu0 0.0
      %538 = vmatprep.subr.mxu0 0.0
      %539 = vmatpush1.msra.mxu0 0.0
      %540 = vmatprep.subr.mxu0 0.0
      %541 = vmatpush1.msra.mxu0 0.0
      %542 = vmatprep.subr.mxu0 0.0
      %543 = vmatpush1.msra.mxu0 0.0
      %544 = vmatprep.subr.mxu0 0.0
      %545 = vmatpush1.msra.mxu0 0.0
      %546 = vmatprep.subr.mxu0 0.0
      %547 = vmatpush1.msra.mxu0 0.0
      %548 = vmatprep.subr.mxu0 0.0
      %549 = vmatpush1.msra.mxu0 0.0
      %550 = vmatprep.subr.mxu0 0.0
      %551 = vmatpush1.msra.mxu0 0.0
      %552 = vmatprep.subr.mxu0 0.0
      %553 = vmatpush1.msra.mxu0 0.0
      %554 = vmatprep.mubr.f32.mxu0 0.0
      %555 = vmatmul.mubr.f32.gmra.mrb[0].mxu0 %v409
      %v556 = vpop.f32.mrb[0].mxu0
      %v557 = vadd.f32 0.0, %v556
      %v558 = vpop.f32.mrb[0].mxu0
      %559 = vdwg.mxu0
      %560 = vst [vmem:[%s244] sm:$0x1] %v557
      %s561 = smul.u32 8, %s17
      %p562 = scmp.lt.s32.totalorder %s561, 55
      %s563 = scalar_select %p562, %s561, 55
      %s564 = smul.addr %s563, 4
      %s565 = scalar_lea.vmem %s3, %s564
      %p566 = scmp.lt.s32.totalorder %s17, 6
      %s567 = scalar_select %p566, %s17, 6
      %s568 = scalar_lea.vmem %s4, %s567
      %p569 = scmp.lt.s32.totalorder %s17, 6
      %s570 = scalar_select %p569, %s17, 6
      %s571 = scalar_lea.vmem %s5, %s570
      // Predicated region
      $region33: #{pointnet_forward.4} parent=31 // pred_check
        %p572 = pneg %p103
      $region34: #{pointnet_forward.4} parent=31 // pred_check_branch
        %574 = sbr.rel (%p572) target = $region36
      $region35: #{pointnet_forward.4} parent=31 // pred_region
        %s575 = smul.u32 8, %s17
      $region36: #{pointnet_forward.4} parent=31 // pred_fallthru
        _
      // Predicated region
      $region37: #{pointnet_forward.4} parent=31 // pred_check
        %p576 = pneg %p129
      $region38: #{pointnet_forward.4} parent=31 // pred_check_branch
        %578 = sbr.rel (%p576) target = $region40
      $region39: #{pointnet_forward.4} parent=31 // pred_region
        _
      $region40: #{pointnet_forward.4} parent=31 // pred_fallthru
        _
      // Predicated region
      $region41: #{pointnet_forward.4} parent=31 // pred_check
        %p579 = pneg %p155
      $region42: #{pointnet_forward.4} parent=31 // pred_check_branch
        %581 = sbr.rel (%p579) target = $region44
      $region43: #{pointnet_forward.4} parent=31 // pred_region
        _
      $region44: #{pointnet_forward.4} parent=31 // pred_fallthru
        _
    $region32: #{pointnet_forward.4} parent=5 // pred_fallthru
      _
    %p582 = scmp.le.s32.totalorder 2, %s12
    // Predicated region
    $region45: #{pointnet_forward.4} parent=5 // pred_check
      %p583 = pneg %p582
    $region46: #{pointnet_forward.4} parent=5 // pred_check_branch
      %585 = sbr.rel (%p583) target = $region48
    $region47: #{pointnet_forward.4} parent=5 // pred_region
      %s586 = ssub.s32 %s12, 2
      // Predicated region
      $region49: #{pointnet_forward.4} parent=47 // pred_check
        %p587 = pneg %p109
      $region50: #{pointnet_forward.4} parent=47 // pred_check_branch
        %589 = sbr.rel (%p587) target = $region52
      $region51: #{pointnet_forward.4} parent=47 // pred_region
        %s590 = smul.u32 8, %s18
        %p591 = scmp.lt.s32.totalorder %s590, 55
        %s592 = scalar_select %p591, %s590, 55
        %s593 = smul.addr %s592, 4
        %s594 = scalar_lea.vmem %s3, %s593
      $region52: #{pointnet_forward.4} parent=47 // pred_fallthru
        _
      // Predicated region
      $region53: #{pointnet_forward.4} parent=47 // pred_check
        %p595 = pneg %p135
      $region54: #{pointnet_forward.4} parent=47 // pred_check_branch
        %597 = sbr.rel (%p595) target = $region56
      $region55: #{pointnet_forward.4} parent=47 // pred_region
        %p598 = scmp.lt.s32.totalorder %s18, 6
        %s599 = scalar_select %p598, %s18, 6
        %s600 = scalar_lea.vmem %s4, %s599
      $region56: #{pointnet_forward.4} parent=47 // pred_fallthru
        _
      // Predicated region
      $region57: #{pointnet_forward.4} parent=47 // pred_check
        %p601 = pneg %p161
      $region58: #{pointnet_forward.4} parent=47 // pred_check_branch
        %603 = sbr.rel (%p601) target = $region60
      $region59: #{pointnet_forward.4} parent=47 // pred_region
        %p604 = scmp.lt.s32.totalorder %s18, 6
        %s605 = scalar_select %p604, %s18, 6
        %s606 = scalar_lea.vmem %s5, %s605
      $region60: #{pointnet_forward.4} parent=47 // pred_fallthru
        _
    $region48: #{pointnet_forward.4} parent=5 // pred_fallthru
      _
  $region6: #{pointnet_forward.4} parent=0 // loop_footer
    %s16 = sadd.s32 1, %s12
  $region7: #{pointnet_forward.4} parent=0 // loop_footer_branch
    %11 = sbr.rel target = $region3
  $region8: #{pointnet_forward.4} parent=0 // loop_exit
    _

// kernel: pointnet_forward.5
$region0: #{pointnet_forward.5}
  #allocation0 [shape = 'u32[]', space=smem, size = 0x4, offset = 0x4, fixed_abs, tag = 'smem constant byte address 0x4 - core index']
  #allocation1 [shape = 'u32[144,128]{1,0:T(1,128)}', space=vmem, size = 0x12000, scoped, tag = 'internal scratch']
  %s0 = inlined_call_operand.vmem [shape: bf16[448,128], index: 0, kind: input, shape index: {}]
  %s1 = inlined_call_operand.vmem [shape: f32[1,128], index: 1, kind: input, shape index: {}]
  %s2 = inlined_call_operand.vmem [shape: f32[1,128], index: 2, kind: input, shape index: {}]
  %s3 = inlined_call_operand.vmem [shape: bf16[128,256], index: 3, kind: input, shape index: {}]
  %s4 = inlined_call_operand.vmem [shape: f32[1,256], index: 4, kind: input, shape index: {}]
  %s5 = inlined_call_operand.vmem [shape: bf16[448,256], index: 5, kind: output, shape index: {0}]
  %s6 = inlined_call_operand.vmem [shape: f32[7,1,256], index: 6, kind: output, shape index: {1}]
  %s7 = inlined_call_operand.vmem [shape: f32[7,1,256], index: 7, kind: output, shape index: {2}]
  %8 = xla_tuple %s5, %s6, %s7
  %s9 = sld [smem:[#allocation0]]
  $region69: #{pointnet_forward.5} parent=0
    _
  %s11 = ssub.s32 1, %s9
  %s12 = scalar_select 0, %s11, %s9
  loop: start=0, step=1, limit=9
  $region2: #{pointnet_forward.5} parent=0 // loop_pre_header
    _
  $region3: #{pointnet_forward.5} parent=0 // loop_header
    %s14 = sphi 0, %s18
    %p15 = scmp.ge.s32.totalorder %s14, 9
    %s24 = sphi 0, %s26
    %s27 = sphi 0, %s24
    %s28 = sphi 0, %s27
    %s44 = sphi 0, %s28
    %s48 = sphi 0, %s48
    %s50 = sphi 0, %s48
    %s51 = sphi 0, %s50
    %s65 = sphi 0, %s51
    %s69 = sphi 0, %s69
    %s71 = sphi 0, %s69
    %s72 = sphi 0, %s71
    %s86 = sphi 0, %s72
    %s90 = sphi 0, %s90
    %s92 = sphi 0, %s90
    %s93 = sphi 0, %s92
    %s107 = sphi 0, %s93
    %s111 = sphi 0, %s111
    %s113 = sphi 0, %s111
    %s114 = sphi 0, %s113
    %s128 = sphi 0, %s114
    %s134 = sphi 0, %s136
    %s137 = sphi 0, %s134
    %s138 = sphi 0, %s137
    %s154 = sphi 0, %s138
    %s160 = sphi 0, %s162
    %s163 = sphi 0, %s160
    %s164 = sphi 0, %s163
    %s180 = sphi 0, %s164
    %s186 = sphi 0, %s188
    %s189 = sphi 0, %s186
    %s190 = sphi 0, %s189
    %s206 = sphi 0, %s190
  $region4: #{pointnet_forward.5} parent=0 // loop_header_branch
    %17 = sbr.rel (%p15) target = $region8
  $region5: #{pointnet_forward.5} parent=0 // loop_body
    %s19 = ssub.s32 %s14, 1
    %s20 = ssub.s32 %s14, 2
    %s21 = sadd.s32 %s14, 1
    %s22 = ssub.s32 %s14, %s21
    %p23 = scmp.eq.s32.totalorder %s22, 0
    %s25 = sadd.s32 %s24, 1
    %s26 = scalar_select %p23, %s24, %s25
    %p29 = pneg %p23
    %p30 = scmp.eq.s32.totalorder %s14, 6
    %p31 = por %p29, %p30
    %p32 = scmp.ne.s32.totalorder %s24, %s27
    %p33 = scmp.eq.s32.totalorder %s14, 0
    %p34 = por %p32, %p33
    %p35 = scmp.ne.s32.totalorder %s24, %s27
    %p36 = scmp.eq.s32.totalorder %s19, 6
    %p37 = por %p35, %p36
    %p38 = scmp.ne.s32.totalorder %s27, %s28
    %p39 = scmp.eq.s32.totalorder %s19, 0
    %p40 = por %p38, %p39
    %p41 = scmp.ne.s32.totalorder %s27, %s28
    %p42 = scmp.eq.s32.totalorder %s20, 6
    %p43 = por %p41, %p42
    %p45 = scmp.ne.s32.totalorder %s28, %s44
    %p46 = scmp.eq.s32.totalorder %s20, 0
    %p47 = por %p45, %p46
    %s49 = sadd.s32 %s48, 1
    %p52 = scmp.eq.s32.totalorder %s14, 6
    %p53 = scmp.ne.s32.totalorder %s48, %s50
    %p54 = scmp.eq.s32.totalorder %s14, 0
    %p55 = por %p53, %p54
    %p56 = scmp.ne.s32.totalorder %s48, %s50
    %p57 = scmp.eq.s32.totalorder %s19, 6
    %p58 = por %p56, %p57
    %p59 = scmp.ne.s32.totalorder %s50, %s51
    %p60 = scmp.eq.s32.totalorder %s19, 0
    %p61 = por %p59, %p60
    %p62 = scmp.ne.s32.totalorder %s50, %s51
    %p63 = scmp.eq.s32.totalorder %s20, 6
    %p64 = por %p62, %p63
    %p66 = scmp.ne.s32.totalorder %s51, %s65
    %p67 = scmp.eq.s32.totalorder %s20, 0
    %p68 = por %p66, %p67
    %s70 = sadd.s32 %s69, 1
    %p73 = scmp.eq.s32.totalorder %s14, 6
    %p74 = scmp.ne.s32.totalorder %s69, %s71
    %p75 = scmp.eq.s32.totalorder %s14, 0
    %p76 = por %p74, %p75
    %p77 = scmp.ne.s32.totalorder %s69, %s71
    %p78 = scmp.eq.s32.totalorder %s19, 6
    %p79 = por %p77, %p78
    %p80 = scmp.ne.s32.totalorder %s71, %s72
    %p81 = scmp.eq.s32.totalorder %s19, 0
    %p82 = por %p80, %p81
    %p83 = scmp.ne.s32.totalorder %s71, %s72
    %p84 = scmp.eq.s32.totalorder %s20, 6
    %p85 = por %p83, %p84
    %p87 = scmp.ne.s32.totalorder %s72, %s86
    %p88 = scmp.eq.s32.totalorder %s20, 0
    %p89 = por %p87, %p88
    %s91 = sadd.s32 %s90, 1
    %p94 = scmp.eq.s32.totalorder %s14, 6
    %p95 = scmp.ne.s32.totalorder %s90, %s92
    %p96 = scmp.eq.s32.totalorder %s14, 0
    %p97 = por %p95, %p96
    %p98 = scmp.ne.s32.totalorder %s90, %s92
    %p99 = scmp.eq.s32.totalorder %s19, 6
    %p100 = por %p98, %p99
    %p101 = scmp.ne.s32.totalorder %s92, %s93
    %p102 = scmp.eq.s32.totalorder %s19, 0
    %p103 = por %p101, %p102
    %p104 = scmp.ne.s32.totalorder %s92, %s93
    %p105 = scmp.eq.s32.totalorder %s20, 6
    %p106 = por %p104, %p105
    %p108 = scmp.ne.s32.totalorder %s93, %s107
    %p109 = scmp.eq.s32.totalorder %s20, 0
    %p110 = por %p108, %p109
    %s112 = sadd.s32 %s111, 1
    %p115 = scmp.eq.s32.totalorder %s14, 6
    %p116 = scmp.ne.s32.totalorder %s111, %s113
    %p117 = scmp.eq.s32.totalorder %s14, 0
    %p118 = por %p116, %p117
    %p119 = scmp.ne.s32.totalorder %s111, %s113
    %p120 = scmp.eq.s32.totalorder %s19, 6
    %p121 = por %p119, %p120
    %p122 = scmp.ne.s32.totalorder %s113, %s114
    %p123 = scmp.eq.s32.totalorder %s19, 0
    %p124 = por %p122, %p123
    %p125 = scmp.ne.s32.totalorder %s113, %s114
    %p126 = scmp.eq.s32.totalorder %s20, 6
    %p127 = por %p125, %p126
    %p129 = scmp.ne.s32.totalorder %s114, %s128
    %p130 = scmp.eq.s32.totalorder %s20, 0
    %p131 = por %p129, %p130
    %s132 = ssub.s32 %s14, %s21
    %p133 = scmp.eq.s32.totalorder %s132, 0
    %s135 = sadd.s32 %s134, 1
    %s136 = scalar_select %p133, %s134, %s135
    %p139 = pneg %p133
    %p140 = scmp.eq.s32.totalorder %s14, 6
    %p141 = por %p139, %p140
    %p142 = scmp.ne.s32.totalorder %s134, %s137
    %p143 = scmp.eq.s32.totalorder %s14, 0
    %p144 = por %p142, %p143
    %p145 = scmp.ne.s32.totalorder %s134, %s137
    %p146 = scmp.eq.s32.totalorder %s19, 6
    %p147 = por %p145, %p146
    %p148 = scmp.ne.s32.totalorder %s137, %s138
    %p149 = scmp.eq.s32.totalorder %s19, 0
    %p150 = por %p148, %p149
    %p151 = scmp.ne.s32.totalorder %s137, %s138
    %p152 = scmp.eq.s32.totalorder %s20, 6
    %p153 = por %p151, %p152
    %p155 = scmp.ne.s32.totalorder %s138, %s154
    %p156 = scmp.eq.s32.totalorder %s20, 0
    %p157 = por %p155, %p156
    %s158 = ssub.s32 %s14, %s21
    %p159 = scmp.eq.s32.totalorder %s158, 0
    %s161 = sadd.s32 %s160, 1
    %s162 = scalar_select %p159, %s160, %s161
    %p165 = pneg %p159
    %p166 = scmp.eq.s32.totalorder %s14, 6
    %p167 = por %p165, %p166
    %p168 = scmp.ne.s32.totalorder %s160, %s163
    %p169 = scmp.eq.s32.totalorder %s14, 0
    %p170 = por %p168, %p169
    %p171 = scmp.ne.s32.totalorder %s160, %s163
    %p172 = scmp.eq.s32.totalorder %s19, 6
    %p173 = por %p171, %p172
    %p174 = scmp.ne.s32.totalorder %s163, %s164
    %p175 = scmp.eq.s32.totalorder %s19, 0
    %p176 = por %p174, %p175
    %p177 = scmp.ne.s32.totalorder %s163, %s164
    %p178 = scmp.eq.s32.totalorder %s20, 6
    %p179 = por %p177, %p178
    %p181 = scmp.ne.s32.totalorder %s164, %s180
    %p182 = scmp.eq.s32.totalorder %s20, 0
    %p183 = por %p181, %p182
    %s184 = ssub.s32 %s14, %s21
    %p185 = scmp.eq.s32.totalorder %s184, 0
    %s187 = sadd.s32 %s186, 1
    %s188 = scalar_select %p185, %s186, %s187
    %p191 = pneg %p185
    %p192 = scmp.eq.s32.totalorder %s14, 6
    %p193 = por %p191, %p192
    %p194 = scmp.ne.s32.totalorder %s186, %s189
    %p195 = scmp.eq.s32.totalorder %s14, 0
    %p196 = por %p194, %p195
    %p197 = scmp.ne.s32.totalorder %s186, %s189
    %p198 = scmp.eq.s32.totalorder %s19, 6
    %p199 = por %p197, %p198
    %p200 = scmp.ne.s32.totalorder %s189, %s190
    %p201 = scmp.eq.s32.totalorder %s19, 0
    %p202 = por %p200, %p201
    %p203 = scmp.ne.s32.totalorder %s189, %s190
    %p204 = scmp.eq.s32.totalorder %s20, 6
    %p205 = por %p203, %p204
    %p207 = scmp.ne.s32.totalorder %s190, %s206
    %p208 = scmp.eq.s32.totalorder %s20, 0
    %p209 = por %p207, %p208
    %p210 = scmp.le.s32.totalorder 1, %s14
    %p211 = scmp.lt.s32.totalorder %s14, 8
    %p212 = pnand %p210, %p211
    %p213 = pneg %p212
    // Predicated region
    $region9: #{pointnet_forward.5} parent=5 // pred_check
      _
    $region10: #{pointnet_forward.5} parent=5 // pred_check_branch
      %215 = sbr.rel (%p212) target = $region12
    $region11: #{pointnet_forward.5} parent=5 // pred_region
      %s216 = ssub.s32 %s14, 1
      // Predicated region
      $region13: #{pointnet_forward.5} parent=11 // pred_check
        %p217 = pneg %p61
      $region14: #{pointnet_forward.5} parent=11 // pred_check_branch
        %219 = sbr.rel (%p217) target = $region16
      $region15: #{pointnet_forward.5} parent=11 // pred_region
        _
      $region16: #{pointnet_forward.5} parent=11 // pred_fallthru
        _
      // Predicated region
      $region17: #{pointnet_forward.5} parent=11 // pred_check
        %p220 = pneg %p82
      $region18: #{pointnet_forward.5} parent=11 // pred_check_branch
        %222 = sbr.rel (%p220) target = $region20
      $region19: #{pointnet_forward.5} parent=11 // pred_region
        _
      $region20: #{pointnet_forward.5} parent=11 // pred_fallthru
        _
      // Predicated region
      $region21: #{pointnet_forward.5} parent=11 // pred_check
        %p223 = pneg %p103
      $region22: #{pointnet_forward.5} parent=11 // pred_check_branch
        %225 = sbr.rel (%p223) target = $region24
      $region23: #{pointnet_forward.5} parent=11 // pred_region
        _
      $region24: #{pointnet_forward.5} parent=11 // pred_fallthru
        _
      // Predicated region
      $region25: #{pointnet_forward.5} parent=11 // pred_check
        %p226 = pneg %p124
      $region26: #{pointnet_forward.5} parent=11 // pred_check_branch
        %228 = sbr.rel (%p226) target = $region28
      $region27: #{pointnet_forward.5} parent=11 // pred_region
        _
      $region28: #{pointnet_forward.5} parent=11 // pred_fallthru
        _
    $region12: #{pointnet_forward.5} parent=5 // pred_fallthru
      _
    %p229 = scmp.lt.s32.totalorder %s14, 7
    // Predicated region
    $region29: #{pointnet_forward.5} parent=5 // pred_check
      %p230 = pneg %p229
    $region30: #{pointnet_forward.5} parent=5 // pred_check_branch
      %232 = sbr.rel (%p230) target = $region32
    $region31: #{pointnet_forward.5} parent=5 // pred_region
      // Predicated region
      $region33: #{pointnet_forward.5} parent=31 // pred_check
        %p233 = pneg %p34
      $region34: #{pointnet_forward.5} parent=31 // pred_check_branch
        %235 = sbr.rel (%p233) target = $region36
      $region35: #{pointnet_forward.5} parent=31 // pred_region
        %s236 = smul.u32 8, %s14
        %p237 = scmp.lt.s32.totalorder %s236, 55
        %s238 = scalar_select %p237, %s236, 55
        %s239 = smul.addr %s238, 4
        %s240 = scalar_lea.vmem %s0, %s239
        %s241 = smul.u32 8, %s14
      $region36: #{pointnet_forward.5} parent=31 // pred_fallthru
        _
    $region32: #{pointnet_forward.5} parent=5 // pred_fallthru
      _
    %p242 = scmp.le.s32.totalorder 1, %s14
    %p243 = scmp.lt.s32.totalorder %s14, 8
    %p244 = pnand %p242, %p243
    %p245 = pneg %p244
    // Predicated region
    $region37: #{pointnet_forward.5} parent=5 // pred_check
      _
    $region38: #{pointnet_forward.5} parent=5 // pred_check_branch
      %247 = sbr.rel (%p244) target = $region40
    $region39: #{pointnet_forward.5} parent=5 // pred_region
      %s248 = ssub.s32 %s14, 1
      %s249 = smul.u32 8, %s19
      %p250 = scmp.lt.s32.totalorder %s249, 55
      %s251 = scalar_select %p250, %s249, 55
      %s252 = smul.addr %s251, 4
      %s253 = scalar_lea.vmem %s0, %s252
      %p254 = pneg %p40
      %p255 = pneg %p37
      %p256 = pneg %p61
      %p257 = pneg %p58
      %p258 = pneg %p82
      %p259 = pneg %p79
      %p260 = pneg %p103
      %p261 = pneg %p100
      %p262 = pneg %p124
      %p263 = pneg %p121
      %p264 = pneg %p150
      %p265 = pneg %p147
      %s266 = smul.u32 8, %s19
      %p267 = scmp.lt.s32.totalorder %s266, 55
      %s268 = scalar_select %p267, %s266, 55
      %s269 = smul.addr %s268, 2
      %s270 = smul.addr %s269, 4
      %s271 = scalar_lea.vmem %s5, %s270
      %p272 = pneg %p176
      %p273 = pneg %p173
      %p274 = scmp.lt.s32.totalorder %s19, 6
      %s275 = scalar_select %p274, %s19, 6
      %s276 = smul.addr %s275, 2
      %s277 = scalar_lea.vmem %s6, %s276
      %p278 = pneg %p202
      %p279 = pneg %p199
      %p280 = scmp.lt.s32.totalorder %s19, 6
      %s281 = scalar_select %p280, %s19, 6
      %s282 = smul.addr %s281, 2
      %s283 = scalar_lea.vmem %s7, %s282
      %s284 = smul.u32 8, %s19
      %p285 = scmp.lt.s32.totalorder %s284, 55
      %s286 = scalar_select %p285, %s284, 55
      %s287 = smul.addr %s286, 4
      %s288 = scalar_lea.vmem %s0, %s287
      %s289 = smul.u32 8, %s19
      %s290 = smul.u32 8, %s19
      %p291 = scmp.lt.s32.totalorder %s290, 55
      %s292 = scalar_select %p291, %s290, 55
      %s293 = smul.addr %s292, 2
      %s294 = smul.addr %s293, 4
      %s295 = scalar_lea.vmem %s5, %s294
      %s296 = smul.u32 8, %s19
      %p297 = scmp.lt.s32.totalorder %s19, 6
      %s298 = scalar_select %p297, %s19, 6
      %s299 = smul.addr %s298, 2
      %s300 = scalar_lea.vmem %s6, %s299
      %p301 = scmp.lt.s32.totalorder %s19, 6
      %s302 = scalar_select %p301, %s19, 6
      %s303 = smul.addr %s302, 2
      %s304 = scalar_lea.vmem %s7, %s303
      %v306 = vld [vmem:[%s288] sm:$0xf]
      %v307 = vld [vmem:[%s288 + $0x4] sm:$0xf]
      %v308 = vld [vmem:[%s288 + $0x8] sm:$0xf]
      %v309 = vld [vmem:[%s288 + $0xc] sm:$0xf]
      %v310 = vld [vmem:[%s288 + $0x10] sm:$0xf]
      %v311 = vld [vmem:[%s288 + $0x14] sm:$0xf]
      %v312 = vld [vmem:[%s288 + $0x18] sm:$0xf]
      %v313 = vld [vmem:[%s288 + $0x1c] sm:$0xf]
      %v314 = vunpack.c.l.bf16 %v306
      %v315 = vunpack.c.l.bf16 %v307
      %v316 = vunpack.c.l.bf16 %v308
      %v317 = vunpack.c.l.bf16 %v309
      %v318 = vunpack.c.l.bf16 %v310
      %v319 = vunpack.c.l.bf16 %v311
      %v320 = vunpack.c.l.bf16 %v312
      %v321 = vunpack.c.l.bf16 %v313
      %v322 = vld [vmem:[%s1] sm:$0x1]
      %v324 = vlaneseq
      %v325 = vshrl.u32 %v324, 7
      %v326 = vsub.s32 0, %v325
      %v327 = vrot.slane %v322, %v326
      %v329 = vmul.f32 %v314, %v327
      %v330 = vmul.f32 %v315, %v327
      %v331 = vmul.f32 %v316, %v327
      %v332 = vmul.f32 %v317, %v327
      %v333 = vmul.f32 %v318, %v327
      %v334 = vmul.f32 %v319, %v327
      %v335 = vmul.f32 %v320, %v327
      %v336 = vmul.f32 %v321, %v327
      %v337 = vld [vmem:[%s2] sm:$0x1]
      %v339 = vlaneseq
      %v340 = vshrl.u32 %v339, 7
      %v341 = vsub.s32 0, %v340
      %v342 = vrot.slane %v337, %v341
      %v344 = vadd.f32 %v329, %v342
      %v345 = vadd.f32 %v330, %v342
      %v346 = vadd.f32 %v331, %v342
      %v347 = vadd.f32 %v332, %v342
      %v348 = vadd.f32 %v333, %v342
      %v349 = vadd.f32 %v334, %v342
      %v350 = vadd.f32 %v335, %v342
      %v351 = vadd.f32 %v336, %v342
      %v352 = vmax.f32 %v344, 0.0
      %v353 = vmax.f32 %v345, 0.0
      %v354 = vmax.f32 %v346, 0.0
      %v355 = vmax.f32 %v347, 0.0
      %v356 = vmax.f32 %v348, 0.0
      %v357 = vmax.f32 %v349, 0.0
      %v358 = vmax.f32 %v350, 0.0
      %v359 = vmax.f32 %v351, 0.0
      %v360 = vpack.c.bf16 %v353, %v352
      %v361 = vpack.c.bf16 %v355, %v354
      %v362 = vpack.c.bf16 %v357, %v356
      %v363 = vpack.c.bf16 %v359, %v358
      %v364 = vld [vmem:[%s3] sm:$0xff]
      %v365 = vld [vmem:[%s3 + $0x8] sm:$0xff]
      %v366 = vld [vmem:[%s3 + $0x10] sm:$0xff]
      %v367 = vld [vmem:[%s3 + $0x18] sm:$0xff]
      %v368 = vld [vmem:[%s3 + $0x20] sm:$0xff]
      %v369 = vld [vmem:[%s3 + $0x28] sm:$0xff]
      %v370 = vld [vmem:[%s3 + $0x30] sm:$0xff]
      %v371 = vld [vmem:[%s3 + $0x38] sm:$0xff]
      %v372 = vld [vmem:[%s3 + $0x40] sm:$0xff]
      %v373 = vld [vmem:[%s3 + $0x48] sm:$0xff]
      %v374 = vld [vmem:[%s3 + $0x50] sm:$0xff]
      %v375 = vld [vmem:[%s3 + $0x58] sm:$0xff]
      %v376 = vld [vmem:[%s3 + $0x60] sm:$0xff]
      %v377 = vld [vmem:[%s3 + $0x68] sm:$0xff]
      %v378 = vld [vmem:[%s3 + $0x70] sm:$0xff]
      %v379 = vld [vmem:[%s3 + $0x78] sm:$0xff]
      %v380 = vld [vmem:[%s4] sm:$0x3]
      %v382 = vlaneseq
      %v383 = vshrl.u32 %v382, 7
      %v384 = vsub.s32 0, %v383
      %v385 = vrot.slane %v380, %v384
      %v386 = vlaneseq
      %v387 = vshrl.u32 %v386, 7
      %v388 = vsub.s32 1, %v387
      %v389 = vrot.slane %v380, %v388
      %v408 = vunpack.c.l.b16 %v364
      %v409 = vunpack.c.h.b16 %v364
      %v410 = vunpack.c.l.b16 %v365
      %v411 = vunpack.c.h.b16 %v365
      %v412 = vunpack.c.l.b16 %v366
      %v413 = vunpack.c.h.b16 %v366
      %v414 = vunpack.c.l.b16 %v367
      %v415 = vunpack.c.h.b16 %v367
      %v416 = vunpack.c.l.b16 %v368
      %v417 = vunpack.c.h.b16 %v368
      %v418 = vunpack.c.l.b16 %v369
      %v419 = vunpack.c.h.b16 %v369
      %v420 = vunpack.c.l.b16 %v370
      %v421 = vunpack.c.h.b16 %v370
      %v422 = vunpack.c.l.b16 %v371
      %v423 = vunpack.c.h.b16 %v371
      %v424 = vunpack.c.l.b16 %v372
      %v425 = vunpack.c.h.b16 %v372
      %v426 = vunpack.c.l.b16 %v373
      %v427 = vunpack.c.h.b16 %v373
      %v428 = vunpack.c.l.b16 %v374
      %v429 = vunpack.c.h.b16 %v374
      %v430 = vunpack.c.l.b16 %v375
      %v431 = vunpack.c.h.b16 %v375
      %v432 = vunpack.c.l.b16 %v376
      %v433 = vunpack.c.h.b16 %v376
      %v434 = vunpack.c.l.b16 %v377
      %v435 = vunpack.c.h.b16 %v377
      %v436 = vunpack.c.l.b16 %v378
      %v437 = vunpack.c.h.b16 %v378
      %v438 = vunpack.c.l.b16 %v379
      %v439 = vunpack.c.h.b16 %v379
      %v440 = vpack.c.b16 %v410, %v408
      %v441 = vpack.c.b16 %v411, %v409
      %v442 = vpack.c.b16 %v414, %v412
      %v443 = vpack.c.b16 %v415, %v413
      %v444 = vpack.c.b16 %v418, %v416
      %v445 = vpack.c.b16 %v419, %v417
      %v446 = vpack.c.b16 %v422, %v420
      %v447 = vpack.c.b16 %v423, %v421
      %v448 = vpack.c.b16 %v426, %v424
      %v449 = vpack.c.b16 %v427, %v425
      %v450 = vpack.c.b16 %v430, %v428
      %v451 = vpack.c.b16 %v431, %v429
      %v452 = vpack.c.b16 %v434, %v432
      %v453 = vpack.c.b16 %v435, %v433
      %v454 = vpack.c.b16 %v438, %v436
      %v455 = vpack.c.b16 %v439, %v437
      %472 = vmatprep.subr.bf16.mxu0 %v441
      %473 = vmatpush1.bf16.msra.mxu0 %v440
      %474 = vmatprep.subr.bf16.mxu0 %v443
      %475 = vmatpush1.bf16.msra.mxu0 %v442
      %476 = vmatprep.subr.bf16.mxu0 %v445
      %477 = vmatpush1.bf16.msra.mxu0 %v444
      %478 = vmatprep.subr.bf16.mxu0 %v447
      %479 = vmatpush1.bf16.msra.mxu0 %v446
      %480 = vmatprep.subr.bf16.mxu0 %v449
      %481 = vmatpush1.bf16.msra.mxu0 %v448
      %482 = vmatprep.subr.bf16.mxu0 %v451
      %483 = vmatpush1.bf16.msra.mxu0 %v450
      %484 = vmatprep.subr.bf16.mxu0 %v453
      %485 = vmatpush1.bf16.msra.mxu0 %v452
      %486 = vmatprep.subr.bf16.mxu0 %v455
      %487 = vmatpush1.bf16.msra.mxu0 %v454
      %488 = vmatprep.subr.bf16.mxu0 0
      %489 = vmatpush1.bf16.msra.mxu0 0
      %490 = vmatprep.subr.bf16.mxu0 0
      %491 = vmatpush1.bf16.msra.mxu0 0
      %492 = vmatprep.subr.bf16.mxu0 0
      %493 = vmatpush1.bf16.msra.mxu0 0
      %494 = vmatprep.subr.bf16.mxu0 0
      %495 = vmatpush1.bf16.msra.mxu0 0
      %496 = vmatprep.subr.bf16.mxu0 0
      %497 = vmatpush1.bf16.msra.mxu0 0
      %498 = vmatprep.subr.bf16.mxu0 0
      %499 = vmatpush1.bf16.msra.mxu0 0
      %500 = vmatprep.subr.bf16.mxu0 0
      %501 = vmatpush1.bf16.msra.mxu0 0
      %502 = vmatprep.subr.bf16.mxu0 0
      %503 = vmatpush1.bf16.msra.mxu0 0
      %504 = vmatprep.mubr.bf16.mxu0 0
      %505 = vmatmul.mubr.bf16.gmra.mrb[0].mxu0 %v360
      %v506 = vpop.f32.mrb[0].mxu0
      %v507 = vadd.f32 %v385, %v506
      %v508 = vpop.f32.mrb[0].mxu0
      %v509 = vadd.f32 %v389, %v508
      %v510 = vpop.f32.mrb[0].mxu0
      %v511 = vadd.f32 %v385, %v510
      %v512 = vpop.f32.mrb[0].mxu0
      %v513 = vadd.f32 %v389, %v512
      %514 = vmatprep.mubr.bf16.mxu0 0
      %515 = vmatmul.mubr.bf16.gmra.mrb[0].mxu0 %v361
      %v516 = vpop.f32.mrb[0].mxu0
      %v517 = vadd.f32 %v385, %v516
      %v518 = vpop.f32.mrb[0].mxu0
      %v519 = vadd.f32 %v389, %v518
      %v520 = vpop.f32.mrb[0].mxu0
      %v521 = vadd.f32 %v385, %v520
      %v522 = vpop.f32.mrb[0].mxu0
      %v523 = vadd.f32 %v389, %v522
      %524 = vmatprep.mubr.bf16.mxu0 0
      %525 = vmatmul.mubr.bf16.gmra.mrb[0].mxu0 %v362
      %v526 = vpop.f32.mrb[0].mxu0
      %v527 = vadd.f32 %v385, %v526
      %v528 = vpop.f32.mrb[0].mxu0
      %v529 = vadd.f32 %v389, %v528
      %v530 = vpop.f32.mrb[0].mxu0
      %v531 = vadd.f32 %v385, %v530
      %v532 = vpop.f32.mrb[0].mxu0
      %v533 = vadd.f32 %v389, %v532
      %534 = vmatprep.mubr.bf16.mxu0 0
      %535 = vmatmul.mubr.bf16.gmra.mrb[0].mxu0 %v363
      %v536 = vpop.f32.mrb[0].mxu0
      %v537 = vadd.f32 %v385, %v536
      %v538 = vpop.f32.mrb[0].mxu0
      %v539 = vadd.f32 %v389, %v538
      %v540 = vpop.f32.mrb[0].mxu0
      %v541 = vadd.f32 %v385, %v540
      %v542 = vpop.f32.mrb[0].mxu0
      %v543 = vadd.f32 %v389, %v542
      %544 = vdwg.mxu0
      %v545 = vpack.c.bf16 %v511, %v507
      %v546 = vpack.c.bf16 %v513, %v509
      %v547 = vpack.c.bf16 %v521, %v517
      %v548 = vpack.c.bf16 %v523, %v519
      %v549 = vpack.c.bf16 %v531, %v527
      %v550 = vpack.c.bf16 %v533, %v529
      %v551 = vpack.c.bf16 %v541, %v537
      %v552 = vpack.c.bf16 %v543, %v539
      %v561 = vunpack.c.l.b16 %v545
      %v562 = vunpack.c.l.b16 %v546
      %v563 = vunpack.c.h.b16 %v545
      %v564 = vunpack.c.h.b16 %v546
      %v565 = vunpack.c.l.b16 %v547
      %v566 = vunpack.c.l.b16 %v548
      %v567 = vunpack.c.h.b16 %v547
      %v568 = vunpack.c.h.b16 %v548
      %v569 = vunpack.c.l.b16 %v549
      %v570 = vunpack.c.l.b16 %v550
      %v571 = vunpack.c.h.b16 %v549
      %v572 = vunpack.c.h.b16 %v550
      %v573 = vunpack.c.l.b16 %v551
      %v574 = vunpack.c.l.b16 %v552
      %v575 = vunpack.c.h.b16 %v551
      %v576 = vunpack.c.h.b16 %v552
      %v577 = vpack.c.b16 %v562, %v561
      %v578 = vpack.c.b16 %v564, %v563
      %v579 = vpack.c.b16 %v566, %v565
      %v580 = vpack.c.b16 %v568, %v567
      %v581 = vpack.c.b16 %v570, %v569
      %v582 = vpack.c.b16 %v572, %v571
      %v583 = vpack.c.b16 %v574, %v573
      %v584 = vpack.c.b16 %v576, %v575
      %593 = vst [vmem:[%s295] sm:$0xff] %v577
      %594 = vst [vmem:[%s295 + $0x8] sm:$0xff] %v578
      %595 = vst [vmem:[%s295 + $0x10] sm:$0xff] %v579
      %596 = vst [vmem:[%s295 + $0x18] sm:$0xff] %v580
      %597 = vst [vmem:[%s295 + $0x20] sm:$0xff] %v581
      %598 = vst [vmem:[%s295 + $0x28] sm:$0xff] %v582
      %599 = vst [vmem:[%s295 + $0x30] sm:$0xff] %v583
      %600 = vst [vmem:[%s295 + $0x38] sm:$0xff] %v584
      %v601 = vunpack.c.l.bf16 %v545
      %v602 = vunpack.c.l.bf16 %v546
      %v603 = vunpack.c.h.bf16 %v545
      %v604 = vunpack.c.h.bf16 %v546
      %v605 = vunpack.c.l.bf16 %v547
      %v606 = vunpack.c.l.bf16 %v548
      %v607 = vunpack.c.h.bf16 %v547
      %v608 = vunpack.c.h.bf16 %v548
      %v609 = vunpack.c.l.bf16 %v549
      %v610 = vunpack.c.l.bf16 %v550
      %v611 = vunpack.c.h.bf16 %v549
      %v612 = vunpack.c.h.bf16 %v550
      %v613 = vunpack.c.l.bf16 %v551
      %v614 = vunpack.c.l.bf16 %v552
      %v615 = vunpack.c.h.bf16 %v551
      %v616 = vunpack.c.h.bf16 %v552
      %vm617 = vcmask 523264
      %v619 = vsel %vm617, 1.0, 0
      %621 = vmatprep.subr.mxu0 %v602
      %622 = vmatpush1.msra.mxu0 %v601
      %623 = vmatprep.subr.mxu0 %v604
      %624 = vmatpush1.msra.mxu0 %v603
      %625 = vmatprep.subr.mxu0 %v606
      %626 = vmatpush1.msra.mxu0 %v605
      %627 = vmatprep.subr.mxu0 %v608
      %628 = vmatpush1.msra.mxu0 %v607
      %629 = vmatprep.subr.mxu0 %v610
      %630 = vmatpush1.msra.mxu0 %v609
      %631 = vmatprep.subr.mxu0 %v612
      %632 = vmatpush1.msra.mxu0 %v611
      %633 = vmatprep.subr.mxu0 %v614
      %634 = vmatpush1.msra.mxu0 %v613
      %635 = vmatprep.subr.mxu0 %v616
      %636 = vmatpush1.msra.mxu0 %v615
      %637 = vmatprep.subr.mxu0 0.0
      %638 = vmatpush1.msra.mxu0 0.0
      %639 = vmatprep.subr.mxu0 0.0
      %640 = vmatpush1.msra.mxu0 0.0
      %641 = vmatprep.subr.mxu0 0.0
      %642 = vmatpush1.msra.mxu0 0.0
      %643 = vmatprep.subr.mxu0 0.0
      %644 = vmatpush1.msra.mxu0 0.0
      %645 = vmatprep.subr.mxu0 0.0
      %646 = vmatpush1.msra.mxu0 0.0
      %647 = vmatprep.subr.mxu0 0.0
      %648 = vmatpush1.msra.mxu0 0.0
      %649 = vmatprep.subr.mxu0 0.0
      %650 = vmatpush1.msra.mxu0 0.0
      %651 = vmatprep.subr.mxu0 0.0
      %652 = vmatpush1.msra.mxu0 0.0
      %653 = vmatprep.subr.mxu0 0.0
      %654 = vmatpush1.msra.mxu0 0.0
      %655 = vmatprep.subr.mxu0 0.0
      %656 = vmatpush1.msra.mxu0 0.0
      %657 = vmatprep.subr.mxu0 0.0
      %658 = vmatpush1.msra.mxu0 0.0
      %659 = vmatprep.subr.mxu0 0.0
      %660 = vmatpush1.msra.mxu0 0.0
      %661 = vmatprep.subr.mxu0 0.0
      %662 = vmatpush1.msra.mxu0 0.0
      %663 = vmatprep.subr.mxu0 0.0
      %664 = vmatpush1.msra.mxu0 0.0
      %665 = vmatprep.subr.mxu0 0.0
      %666 = vmatpush1.msra.mxu0 0.0
      %667 = vmatprep.subr.mxu0 0.0
      %668 = vmatpush1.msra.mxu0 0.0
      %669 = vmatprep.subr.mxu0 0.0
      %670 = vmatpush1.msra.mxu0 0.0
      %671 = vmatprep.subr.mxu0 0.0
      %672 = vmatpush1.msra.mxu0 0.0
      %673 = vmatprep.subr.mxu0 0.0
      %674 = vmatpush1.msra.mxu0 0.0
      %675 = vmatprep.subr.mxu0 0.0
      %676 = vmatpush1.msra.mxu0 0.0
      %677 = vmatprep.subr.mxu0 0.0
      %678 = vmatpush1.msra.mxu0 0.0
      %679 = vmatprep.subr.mxu0 0.0
      %680 = vmatpush1.msra.mxu0 0.0
      %681 = vmatprep.subr.mxu0 0.0
      %682 = vmatpush1.msra.mxu0 0.0
      %683 = vmatprep.subr.mxu0 0.0
      %684 = vmatpush1.msra.mxu0 0.0
      %685 = vmatprep.mubr.f32.mxu0 0.0
      %686 = vmatmul.mubr.f32.gmra.mrb[0].mxu0 %v619
      %v687 = vpop.f32.mrb[0].mxu0
      %v688 = vadd.f32 0.0, %v687
      %v689 = vpop.f32.mrb[0].mxu0
      %v690 = vadd.f32 0.0, %v689
      %691 = vdwg.mxu0
      %v694 = vcombine.low %v688, %v690
      %v696 = vunpack.c.l.s4 1966171168
      %v697 = vunpack.c.0.s8 %v696
      %v698 = vlaneseq
      %v699 = vshrl.u32 %v698, 7
      %v700 = vsub.s32 %v697, %v699
      %v701 = vrot.slane %v694, %v700
      %v703 = vunpack.c.l.s4 1966171168
      %v704 = vunpack.c.0.s8 %v703
      %v705 = vlaneseq
      %v706 = vshrl.u32 %v705, 7
      %v707 = vsub.s32 %v704, %v706
      %v708 = vrot.slane %v701, %v707
      %v710 = vlaneseq
      %vm711 = vcmp.ge.s32.totalorder %v710, 0
      %vm712 = vcmp.lt.s32.totalorder %v710, 256
      %vm713 = vmand %vm711, %vm712
      %714 = vst.msk [vmem:[%s300] sm:$0x3] %vm713, %v708
      %v715 = vmul.f32 %v601, %v601
      %v716 = vmul.f32 %v602, %v602
      %v717 = vmul.f32 %v603, %v603
      %v718 = vmul.f32 %v604, %v604
      %v719 = vmul.f32 %v605, %v605
      %v720 = vmul.f32 %v606, %v606
      %v721 = vmul.f32 %v607, %v607
      %v722 = vmul.f32 %v608, %v608
      %v723 = vmul.f32 %v609, %v609
      %v724 = vmul.f32 %v610, %v610
      %v725 = vmul.f32 %v611, %v611
      %v726 = vmul.f32 %v612, %v612
      %v727 = vmul.f32 %v613, %v613
      %v728 = vmul.f32 %v614, %v614
      %v729 = vmul.f32 %v615, %v615
      %v730 = vmul.f32 %v616, %v616
      %731 = vmatprep.subr.mxu0 %v716
      %732 = vmatpush1.msra.mxu0 %v715
      %733 = vmatprep.subr.mxu0 %v718
      %734 = vmatpush1.msra.mxu0 %v717
      %735 = vmatprep.subr.mxu0 %v720
      %736 = vmatpush1.msra.mxu0 %v719
      %737 = vmatprep.subr.mxu0 %v722
      %738 = vmatpush1.msra.mxu0 %v721
      %739 = vmatprep.subr.mxu0 %v724
      %740 = vmatpush1.msra.mxu0 %v723
      %741 = vmatprep.subr.mxu0 %v726
      %742 = vmatpush1.msra.mxu0 %v725
      %743 = vmatprep.subr.mxu0 %v728
      %744 = vmatpush1.msra.mxu0 %v727
      %745 = vmatprep.subr.mxu0 %v730
      %746 = vmatpush1.msra.mxu0 %v729
      %747 = vmatprep.subr.mxu0 0.0
      %748 = vmatpush1.msra.mxu0 0.0
      %749 = vmatprep.subr.mxu0 0.0
      %750 = vmatpush1.msra.mxu0 0.0
      %751 = vmatprep.subr.mxu0 0.0
      %752 = vmatpush1.msra.mxu0 0.0
      %753 = vmatprep.subr.mxu0 0.0
      %754 = vmatpush1.msra.mxu0 0.0
      %755 = vmatprep.subr.mxu0 0.0
      %756 = vmatpush1.msra.mxu0 0.0
      %757 = vmatprep.subr.mxu0 0.0
      %758 = vmatpush1.msra.mxu0 0.0
      %759 = vmatprep.subr.mxu0 0.0
      %760 = vmatpush1.msra.mxu0 0.0
      %761 = vmatprep.subr.mxu0 0.0
      %762 = vmatpush1.msra.mxu0 0.0
      %763 = vmatprep.subr.mxu0 0.0
      %764 = vmatpush1.msra.mxu0 0.0
      %765 = vmatprep.subr.mxu0 0.0
      %766 = vmatpush1.msra.mxu0 0.0
      %767 = vmatprep.subr.mxu0 0.0
      %768 = vmatpush1.msra.mxu0 0.0
      %769 = vmatprep.subr.mxu0 0.0
      %770 = vmatpush1.msra.mxu0 0.0
      %771 = vmatprep.subr.mxu0 0.0
      %772 = vmatpush1.msra.mxu0 0.0
      %773 = vmatprep.subr.mxu0 0.0
      %774 = vmatpush1.msra.mxu0 0.0
      %775 = vmatprep.subr.mxu0 0.0
      %776 = vmatpush1.msra.mxu0 0.0
      %777 = vmatprep.subr.mxu0 0.0
      %778 = vmatpush1.msra.mxu0 0.0
      %779 = vmatprep.subr.mxu0 0.0
      %780 = vmatpush1.msra.mxu0 0.0
      %781 = vmatprep.subr.mxu0 0.0
      %782 = vmatpush1.msra.mxu0 0.0
      %783 = vmatprep.subr.mxu0 0.0
      %784 = vmatpush1.msra.mxu0 0.0
      %785 = vmatprep.subr.mxu0 0.0
      %786 = vmatpush1.msra.mxu0 0.0
      %787 = vmatprep.subr.mxu0 0.0
      %788 = vmatpush1.msra.mxu0 0.0
      %789 = vmatprep.subr.mxu0 0.0
      %790 = vmatpush1.msra.mxu0 0.0
      %791 = vmatprep.subr.mxu0 0.0
      %792 = vmatpush1.msra.mxu0 0.0
      %793 = vmatprep.subr.mxu0 0.0
      %794 = vmatpush1.msra.mxu0 0.0
      %795 = vmatprep.mubr.f32.mxu0 0.0
      %796 = vmatmul.mubr.f32.gmra.mrb[0].mxu0 %v619
      %v797 = vpop.f32.mrb[0].mxu0
      %v798 = vadd.f32 0.0, %v797
      %v799 = vpop.f32.mrb[0].mxu0
      %v800 = vadd.f32 0.0, %v799
      %801 = vdwg.mxu0
      %v804 = vcombine.low %v798, %v800
      %v806 = vunpack.c.l.s4 1966171168
      %v807 = vunpack.c.0.s8 %v806
      %v808 = vlaneseq
      %v809 = vshrl.u32 %v808, 7
      %v810 = vsub.s32 %v807, %v809
      %v811 = vrot.slane %v804, %v810
      %v813 = vunpack.c.l.s4 1966171168
      %v814 = vunpack.c.0.s8 %v813
      %v815 = vlaneseq
      %v816 = vshrl.u32 %v815, 7
      %v817 = vsub.s32 %v814, %v816
      %v818 = vrot.slane %v811, %v817
      %820 = vst.msk [vmem:[%s304] sm:$0x3] %vm713, %v818
      %s821 = smul.u32 8, %s19
      %p822 = scmp.lt.s32.totalorder %s821, 55
      %s823 = scalar_select %p822, %s821, 55
      %s824 = smul.addr %s823, 2
      %s825 = smul.addr %s824, 4
      %s826 = scalar_lea.vmem %s5, %s825
      %p827 = scmp.lt.s32.totalorder %s19, 6
      %s828 = scalar_select %p827, %s19, 6
      %s829 = smul.addr %s828, 2
      %s830 = scalar_lea.vmem %s6, %s829
      %p831 = scmp.lt.s32.totalorder %s19, 6
      %s832 = scalar_select %p831, %s19, 6
      %s833 = smul.addr %s832, 2
      %s834 = scalar_lea.vmem %s7, %s833
      // Predicated region
      $region41: #{pointnet_forward.5} parent=39 // pred_check
        %p835 = pneg %p147
      $region42: #{pointnet_forward.5} parent=39 // pred_check_branch
        %837 = sbr.rel (%p835) target = $region44
      $region43: #{pointnet_forward.5} parent=39 // pred_region
        %s838 = smul.u32 8, %s19
      $region44: #{pointnet_forward.5} parent=39 // pred_fallthru
        _
      // Predicated region
      $region45: #{pointnet_forward.5} parent=39 // pred_check
        %p839 = pneg %p173
      $region46: #{pointnet_forward.5} parent=39 // pred_check_branch
        %841 = sbr.rel (%p839) target = $region48
      $region47: #{pointnet_forward.5} parent=39 // pred_region
        _
      $region48: #{pointnet_forward.5} parent=39 // pred_fallthru
        _
      // Predicated region
      $region49: #{pointnet_forward.5} parent=39 // pred_check
        %p842 = pneg %p199
      $region50: #{pointnet_forward.5} parent=39 // pred_check_branch
        %844 = sbr.rel (%p842) target = $region52
      $region51: #{pointnet_forward.5} parent=39 // pred_region
        _
      $region52: #{pointnet_forward.5} parent=39 // pred_fallthru
        _
    $region40: #{pointnet_forward.5} parent=5 // pred_fallthru
      _
    %p845 = scmp.le.s32.totalorder 2, %s14
    // Predicated region
    $region53: #{pointnet_forward.5} parent=5 // pred_check
      %p846 = pneg %p845
    $region54: #{pointnet_forward.5} parent=5 // pred_check_branch
      %848 = sbr.rel (%p846) target = $region56
    $region55: #{pointnet_forward.5} parent=5 // pred_region
      %s849 = ssub.s32 %s14, 2
      // Predicated region
      $region57: #{pointnet_forward.5} parent=55 // pred_check
        %p850 = pneg %p153
      $region58: #{pointnet_forward.5} parent=55 // pred_check_branch
        %852 = sbr.rel (%p850) target = $region60
      $region59: #{pointnet_forward.5} parent=55 // pred_region
        %s853 = smul.u32 8, %s20
        %p854 = scmp.lt.s32.totalorder %s853, 55
        %s855 = scalar_select %p854, %s853, 55
        %s856 = smul.addr %s855, 2
        %s857 = smul.addr %s856, 4
        %s858 = scalar_lea.vmem %s5, %s857
      $region60: #{pointnet_forward.5} parent=55 // pred_fallthru
        _
      // Predicated region
      $region61: #{pointnet_forward.5} parent=55 // pred_check
        %p859 = pneg %p179
      $region62: #{pointnet_forward.5} parent=55 // pred_check_branch
        %861 = sbr.rel (%p859) target = $region64
      $region63: #{pointnet_forward.5} parent=55 // pred_region
        %p862 = scmp.lt.s32.totalorder %s20, 6
        %s863 = scalar_select %p862, %s20, 6
        %s864 = smul.addr %s863, 2
        %s865 = scalar_lea.vmem %s6, %s864
      $region64: #{pointnet_forward.5} parent=55 // pred_fallthru
        _
      // Predicated region
      $region65: #{pointnet_forward.5} parent=55 // pred_check
        %p866 = pneg %p205
      $region66: #{pointnet_forward.5} parent=55 // pred_check_branch
        %868 = sbr.rel (%p866) target = $region68
      $region67: #{pointnet_forward.5} parent=55 // pred_region
        %p869 = scmp.lt.s32.totalorder %s20, 6
        %s870 = scalar_select %p869, %s20, 6
        %s871 = smul.addr %s870, 2
        %s872 = scalar_lea.vmem %s7, %s871
      $region68: #{pointnet_forward.5} parent=55 // pred_fallthru
        _
    $region56: #{pointnet_forward.5} parent=5 // pred_fallthru
      _
  $region6: #{pointnet_forward.5} parent=0 // loop_footer
    %s18 = sadd.s32 1, %s14
  $region7: #{pointnet_forward.5} parent=0 // loop_footer_branch
    %13 = sbr.rel target = $region3
  $region8: #{pointnet_forward.5} parent=0 // loop_exit
    _

// kernel: pointnet_forward.6
$region0: #{pointnet_forward.6}
  #allocation0 [shape = 'u32[]', space=smem, size = 0x4, offset = 0x4, fixed_abs, tag = 'smem constant byte address 0x4 - core index']
  #allocation1 [shape = 'u32[144,128]{1,0:T(1,128)}', space=vmem, size = 0x12000, scoped, tag = 'internal scratch']
  %s0 = inlined_call_operand.vmem [shape: bf16[448,256], index: 0, kind: input, shape index: {}]
  %s1 = inlined_call_operand.vmem [shape: f32[1,256], index: 1, kind: input, shape index: {}]
  %s2 = inlined_call_operand.vmem [shape: f32[1,256], index: 2, kind: input, shape index: {}]
  %s3 = inlined_call_operand.vmem [shape: bf16[256,512], index: 3, kind: input, shape index: {}]
  %s4 = inlined_call_operand.vmem [shape: f32[1,512], index: 4, kind: input, shape index: {}]
  %s5 = inlined_call_operand.vmem [shape: bf16[448,512], index: 5, kind: output, shape index: {0}]
  %s6 = inlined_call_operand.vmem [shape: f32[7,1,512], index: 6, kind: output, shape index: {1}]
  %s7 = inlined_call_operand.vmem [shape: f32[7,1,512], index: 7, kind: output, shape index: {2}]
  %8 = xla_tuple %s5, %s6, %s7
  %s9 = sld [smem:[#allocation0]]
  $region69: #{pointnet_forward.6} parent=0
    _
  %s11 = ssub.s32 1, %s9
  %s12 = scalar_select 0, %s11, %s9
  loop: start=0, step=1, limit=9
  $region2: #{pointnet_forward.6} parent=0 // loop_pre_header
    _
  $region3: #{pointnet_forward.6} parent=0 // loop_header
    %s14 = sphi 0, %s18
    %p15 = scmp.ge.s32.totalorder %s14, 9
    %s24 = sphi 0, %s26
    %s27 = sphi 0, %s24
    %s28 = sphi 0, %s27
    %s44 = sphi 0, %s28
    %s48 = sphi 0, %s48
    %s50 = sphi 0, %s48
    %s51 = sphi 0, %s50
    %s65 = sphi 0, %s51
    %s69 = sphi 0, %s69
    %s71 = sphi 0, %s69
    %s72 = sphi 0, %s71
    %s86 = sphi 0, %s72
    %s90 = sphi 0, %s90
    %s92 = sphi 0, %s90
    %s93 = sphi 0, %s92
    %s107 = sphi 0, %s93
    %s111 = sphi 0, %s111
    %s113 = sphi 0, %s111
    %s114 = sphi 0, %s113
    %s128 = sphi 0, %s114
    %s134 = sphi 0, %s136
    %s137 = sphi 0, %s134
    %s138 = sphi 0, %s137
    %s154 = sphi 0, %s138
    %s160 = sphi 0, %s162
    %s163 = sphi 0, %s160
    %s164 = sphi 0, %s163
    %s180 = sphi 0, %s164
    %s186 = sphi 0, %s188
    %s189 = sphi 0, %s186
    %s190 = sphi 0, %s189
    %s206 = sphi 0, %s190
  $region4: #{pointnet_forward.6} parent=0 // loop_header_branch
    %17 = sbr.rel (%p15) target = $region8
  $region5: #{pointnet_forward.6} parent=0 // loop_body
    %s19 = ssub.s32 %s14, 1
    %s20 = ssub.s32 %s14, 2
    %s21 = sadd.s32 %s14, 1
    %s22 = ssub.s32 %s14, %s21
    %p23 = scmp.eq.s32.totalorder %s22, 0
    %s25 = sadd.s32 %s24, 1
    %s26 = scalar_select %p23, %s24, %s25
    %p29 = pneg %p23
    %p30 = scmp.eq.s32.totalorder %s14, 6
    %p31 = por %p29, %p30
    %p32 = scmp.ne.s32.totalorder %s24, %s27
    %p33 = scmp.eq.s32.totalorder %s14, 0
    %p34 = por %p32, %p33
    %p35 = scmp.ne.s32.totalorder %s24, %s27
    %p36 = scmp.eq.s32.totalorder %s19, 6
    %p37 = por %p35, %p36
    %p38 = scmp.ne.s32.totalorder %s27, %s28
    %p39 = scmp.eq.s32.totalorder %s19, 0
    %p40 = por %p38, %p39
    %p41 = scmp.ne.s32.totalorder %s27, %s28
    %p42 = scmp.eq.s32.totalorder %s20, 6
    %p43 = por %p41, %p42
    %p45 = scmp.ne.s32.totalorder %s28, %s44
    %p46 = scmp.eq.s32.totalorder %s20, 0
    %p47 = por %p45, %p46
    %s49 = sadd.s32 %s48, 1
    %p52 = scmp.eq.s32.totalorder %s14, 6
    %p53 = scmp.ne.s32.totalorder %s48, %s50
    %p54 = scmp.eq.s32.totalorder %s14, 0
    %p55 = por %p53, %p54
    %p56 = scmp.ne.s32.totalorder %s48, %s50
    %p57 = scmp.eq.s32.totalorder %s19, 6
    %p58 = por %p56, %p57
    %p59 = scmp.ne.s32.totalorder %s50, %s51
    %p60 = scmp.eq.s32.totalorder %s19, 0
    %p61 = por %p59, %p60
    %p62 = scmp.ne.s32.totalorder %s50, %s51
    %p63 = scmp.eq.s32.totalorder %s20, 6
    %p64 = por %p62, %p63
    %p66 = scmp.ne.s32.totalorder %s51, %s65
    %p67 = scmp.eq.s32.totalorder %s20, 0
    %p68 = por %p66, %p67
    %s70 = sadd.s32 %s69, 1
    %p73 = scmp.eq.s32.totalorder %s14, 6
    %p74 = scmp.ne.s32.totalorder %s69, %s71
    %p75 = scmp.eq.s32.totalorder %s14, 0
    %p76 = por %p74, %p75
    %p77 = scmp.ne.s32.totalorder %s69, %s71
    %p78 = scmp.eq.s32.totalorder %s19, 6
    %p79 = por %p77, %p78
    %p80 = scmp.ne.s32.totalorder %s71, %s72
    %p81 = scmp.eq.s32.totalorder %s19, 0
    %p82 = por %p80, %p81
    %p83 = scmp.ne.s32.totalorder %s71, %s72
    %p84 = scmp.eq.s32.totalorder %s20, 6
    %p85 = por %p83, %p84
    %p87 = scmp.ne.s32.totalorder %s72, %s86
    %p88 = scmp.eq.s32.totalorder %s20, 0
    %p89 = por %p87, %p88
    %s91 = sadd.s32 %s90, 1
    %p94 = scmp.eq.s32.totalorder %s14, 6
    %p95 = scmp.ne.s32.totalorder %s90, %s92
    %p96 = scmp.eq.s32.totalorder %s14, 0
    %p97 = por %p95, %p96
    %p98 = scmp.ne.s32.totalorder %s90, %s92
    %p99 = scmp.eq.s32.totalorder %s19, 6
    %p100 = por %p98, %p99
    %p101 = scmp.ne.s32.totalorder %s92, %s93
    %p102 = scmp.eq.s32.totalorder %s19, 0
    %p103 = por %p101, %p102
    %p104 = scmp.ne.s32.totalorder %s92, %s93
    %p105 = scmp.eq.s32.totalorder %s20, 6
    %p106 = por %p104, %p105
    %p108 = scmp.ne.s32.totalorder %s93, %s107
    %p109 = scmp.eq.s32.totalorder %s20, 0
    %p110 = por %p108, %p109
    %s112 = sadd.s32 %s111, 1
    %p115 = scmp.eq.s32.totalorder %s14, 6
    %p116 = scmp.ne.s32.totalorder %s111, %s113
    %p117 = scmp.eq.s32.totalorder %s14, 0
    %p118 = por %p116, %p117
    %p119 = scmp.ne.s32.totalorder %s111, %s113
    %p120 = scmp.eq.s32.totalorder %s19, 6
    %p121 = por %p119, %p120
    %p122 = scmp.ne.s32.totalorder %s113, %s114
    %p123 = scmp.eq.s32.totalorder %s19, 0
    %p124 = por %p122, %p123
    %p125 = scmp.ne.s32.totalorder %s113, %s114
    %p126 = scmp.eq.s32.totalorder %s20, 6
    %p127 = por %p125, %p126
    %p129 = scmp.ne.s32.totalorder %s114, %s128
    %p130 = scmp.eq.s32.totalorder %s20, 0
    %p131 = por %p129, %p130
    %s132 = ssub.s32 %s14, %s21
    %p133 = scmp.eq.s32.totalorder %s132, 0
    %s135 = sadd.s32 %s134, 1
    %s136 = scalar_select %p133, %s134, %s135
    %p139 = pneg %p133
    %p140 = scmp.eq.s32.totalorder %s14, 6
    %p141 = por %p139, %p140
    %p142 = scmp.ne.s32.totalorder %s134, %s137
    %p143 = scmp.eq.s32.totalorder %s14, 0
    %p144 = por %p142, %p143
    %p145 = scmp.ne.s32.totalorder %s134, %s137
    %p146 = scmp.eq.s32.totalorder %s19, 6
    %p147 = por %p145, %p146
    %p148 = scmp.ne.s32.totalorder %s137, %s138
    %p149 = scmp.eq.s32.totalorder %s19, 0
    %p150 = por %p148, %p149
    %p151 = scmp.ne.s32.totalorder %s137, %s138
    %p152 = scmp.eq.s32.totalorder %s20, 6
    %p153 = por %p151, %p152
    %p155 = scmp.ne.s32.totalorder %s138, %s154
    %p156 = scmp.eq.s32.totalorder %s20, 0
    %p157 = por %p155, %p156
    %s158 = ssub.s32 %s14, %s21
    %p159 = scmp.eq.s32.totalorder %s158, 0
    %s161 = sadd.s32 %s160, 1
    %s162 = scalar_select %p159, %s160, %s161
    %p165 = pneg %p159
    %p166 = scmp.eq.s32.totalorder %s14, 6
    %p167 = por %p165, %p166
    %p168 = scmp.ne.s32.totalorder %s160, %s163
    %p169 = scmp.eq.s32.totalorder %s14, 0
    %p170 = por %p168, %p169
    %p171 = scmp.ne.s32.totalorder %s160, %s163
    %p172 = scmp.eq.s32.totalorder %s19, 6
    %p173 = por %p171, %p172
    %p174 = scmp.ne.s32.totalorder %s163, %s164
    %p175 = scmp.eq.s32.totalorder %s19, 0
    %p176 = por %p174, %p175
    %p177 = scmp.ne.s32.totalorder %s163, %s164
    %p178 = scmp.eq.s32.totalorder %s20, 6
    %p179 = por %p177, %p178
    %p181 = scmp.ne.s32.totalorder %s164, %s180
    %p182 = scmp.eq.s32.totalorder %s20, 0
    %p183 = por %p181, %p182
    %s184 = ssub.s32 %s14, %s21
    %p185 = scmp.eq.s32.totalorder %s184, 0
    %s187 = sadd.s32 %s186, 1
    %s188 = scalar_select %p185, %s186, %s187
    %p191 = pneg %p185
    %p192 = scmp.eq.s32.totalorder %s14, 6
    %p193 = por %p191, %p192
    %p194 = scmp.ne.s32.totalorder %s186, %s189
    %p195 = scmp.eq.s32.totalorder %s14, 0
    %p196 = por %p194, %p195
    %p197 = scmp.ne.s32.totalorder %s186, %s189
    %p198 = scmp.eq.s32.totalorder %s19, 6
    %p199 = por %p197, %p198
    %p200 = scmp.ne.s32.totalorder %s189, %s190
    %p201 = scmp.eq.s32.totalorder %s19, 0
    %p202 = por %p200, %p201
    %p203 = scmp.ne.s32.totalorder %s189, %s190
    %p204 = scmp.eq.s32.totalorder %s20, 6
    %p205 = por %p203, %p204
    %p207 = scmp.ne.s32.totalorder %s190, %s206
    %p208 = scmp.eq.s32.totalorder %s20, 0
    %p209 = por %p207, %p208
    %p210 = scmp.le.s32.totalorder 1, %s14
    %p211 = scmp.lt.s32.totalorder %s14, 8
    %p212 = pnand %p210, %p211
    %p213 = pneg %p212
    // Predicated region
    $region9: #{pointnet_forward.6} parent=5 // pred_check
      _
    $region10: #{pointnet_forward.6} parent=5 // pred_check_branch
      %215 = sbr.rel (%p212) target = $region12
    $region11: #{pointnet_forward.6} parent=5 // pred_region
      %s216 = ssub.s32 %s14, 1
      // Predicated region
      $region13: #{pointnet_forward.6} parent=11 // pred_check
        %p217 = pneg %p61
      $region14: #{pointnet_forward.6} parent=11 // pred_check_branch
        %219 = sbr.rel (%p217) target = $region16
      $region15: #{pointnet_forward.6} parent=11 // pred_region
        _
      $region16: #{pointnet_forward.6} parent=11 // pred_fallthru
        _
      // Predicated region
      $region17: #{pointnet_forward.6} parent=11 // pred_check
        %p220 = pneg %p82
      $region18: #{pointnet_forward.6} parent=11 // pred_check_branch
        %222 = sbr.rel (%p220) target = $region20
      $region19: #{pointnet_forward.6} parent=11 // pred_region
        _
      $region20: #{pointnet_forward.6} parent=11 // pred_fallthru
        _
      // Predicated region
      $region21: #{pointnet_forward.6} parent=11 // pred_check
        %p223 = pneg %p103
      $region22: #{pointnet_forward.6} parent=11 // pred_check_branch
        %225 = sbr.rel (%p223) target = $region24
      $region23: #{pointnet_forward.6} parent=11 // pred_region
        _
      $region24: #{pointnet_forward.6} parent=11 // pred_fallthru
        _
      // Predicated region
      $region25: #{pointnet_forward.6} parent=11 // pred_check
        %p226 = pneg %p124
      $region26: #{pointnet_forward.6} parent=11 // pred_check_branch
        %228 = sbr.rel (%p226) target = $region28
      $region27: #{pointnet_forward.6} parent=11 // pred_region
        _
      $region28: #{pointnet_forward.6} parent=11 // pred_fallthru
        _
    $region12: #{pointnet_forward.6} parent=5 // pred_fallthru
      _
    %p229 = scmp.lt.s32.totalorder %s14, 7
    // Predicated region
    $region29: #{pointnet_forward.6} parent=5 // pred_check
      %p230 = pneg %p229
    $region30: #{pointnet_forward.6} parent=5 // pred_check_branch
      %232 = sbr.rel (%p230) target = $region32
    $region31: #{pointnet_forward.6} parent=5 // pred_region
      // Predicated region
      $region33: #{pointnet_forward.6} parent=31 // pred_check
        %p233 = pneg %p34
      $region34: #{pointnet_forward.6} parent=31 // pred_check_branch
        %235 = sbr.rel (%p233) target = $region36
      $region35: #{pointnet_forward.6} parent=31 // pred_region
        %s236 = smul.u32 8, %s14
        %p237 = scmp.lt.s32.totalorder %s236, 55
        %s238 = scalar_select %p237, %s236, 55
        %s239 = smul.addr %s238, 2
        %s240 = smul.addr %s239, 4
        %s241 = scalar_lea.vmem %s0, %s240
        %s242 = smul.u32 8, %s14
      $region36: #{pointnet_forward.6} parent=31 // pred_fallthru
        _
    $region32: #{pointnet_forward.6} parent=5 // pred_fallthru
      _
    %p243 = scmp.le.s32.totalorder 1, %s14
    %p244 = scmp.lt.s32.totalorder %s14, 8
    %p245 = pnand %p243, %p244
    %p246 = pneg %p245
    // Predicated region
    $region37: #{pointnet_forward.6} parent=5 // pred_check
      _
    $region38: #{pointnet_forward.6} parent=5 // pred_check_branch
      %248 = sbr.rel (%p245) target = $region40
    $region39: #{pointnet_forward.6} parent=5 // pred_region
      %s249 = ssub.s32 %s14, 1
      %s250 = smul.u32 8, %s19
      %p251 = scmp.lt.s32.totalorder %s250, 55
      %s252 = scalar_select %p251, %s250, 55
      %s253 = smul.addr %s252, 2
      %s254 = smul.addr %s253, 4
      %s255 = scalar_lea.vmem %s0, %s254
      %p256 = pneg %p40
      %p257 = pneg %p37
      %p258 = pneg %p61
      %p259 = pneg %p58
      %p260 = pneg %p82
      %p261 = pneg %p79
      %p262 = pneg %p103
      %p263 = pneg %p100
      %p264 = pneg %p124
      %p265 = pneg %p121
      %p266 = pneg %p150
      %p267 = pneg %p147
      %s268 = smul.u32 8, %s19
      %p269 = scmp.lt.s32.totalorder %s268, 55
      %s270 = scalar_select %p269, %s268, 55
      %s271 = smul.addr %s270, 4
      %s272 = smul.addr %s271, 4
      %s273 = scalar_lea.vmem %s5, %s272
      %p274 = pneg %p176
      %p275 = pneg %p173
      %p276 = scmp.lt.s32.totalorder %s19, 6
      %s277 = scalar_select %p276, %s19, 6
      %s278 = smul.addr %s277, 4
      %s279 = scalar_lea.vmem %s6, %s278
      %p280 = pneg %p202
      %p281 = pneg %p199
      %p282 = scmp.lt.s32.totalorder %s19, 6
      %s283 = scalar_select %p282, %s19, 6
      %s284 = smul.addr %s283, 4
      %s285 = scalar_lea.vmem %s7, %s284
      %s286 = smul.u32 8, %s19
      %p287 = scmp.lt.s32.totalorder %s286, 55
      %s288 = scalar_select %p287, %s286, 55
      %s289 = smul.addr %s288, 2
      %s290 = smul.addr %s289, 4
      %s291 = scalar_lea.vmem %s0, %s290
      %s292 = smul.u32 8, %s19
      %s293 = smul.u32 8, %s19
      %p294 = scmp.lt.s32.totalorder %s293, 55
      %s295 = scalar_select %p294, %s293, 55
      %s296 = smul.addr %s295, 4
      %s297 = smul.addr %s296, 4
      %s298 = scalar_lea.vmem %s5, %s297
      %s299 = smul.u32 8, %s19
      %p300 = scmp.lt.s32.totalorder %s19, 6
      %s301 = scalar_select %p300, %s19, 6
      %s302 = smul.addr %s301, 4
      %s303 = scalar_lea.vmem %s6, %s302
      %p304 = scmp.lt.s32.totalorder %s19, 6
      %s305 = scalar_select %p304, %s19, 6
      %s306 = smul.addr %s305, 4
      %s307 = scalar_lea.vmem %s7, %s306
      %v308 = vld [vmem:[%s291] sm:$0xff]
      %v309 = vld [vmem:[%s291 + $0x8] sm:$0xff]
      %v310 = vld [vmem:[%s291 + $0x10] sm:$0xff]
      %v311 = vld [vmem:[%s291 + $0x18] sm:$0xff]
      %v312 = vld [vmem:[%s291 + $0x20] sm:$0xff]
      %v313 = vld [vmem:[%s291 + $0x28] sm:$0xff]
      %v314 = vld [vmem:[%s291 + $0x30] sm:$0xff]
      %v315 = vld [vmem:[%s291 + $0x38] sm:$0xff]
      %v316 = vunpack.c.l.bf16 %v308
      %v317 = vunpack.c.h.bf16 %v308
      %v318 = vunpack.c.l.bf16 %v309
      %v319 = vunpack.c.h.bf16 %v309
      %v320 = vunpack.c.l.bf16 %v310
      %v321 = vunpack.c.h.bf16 %v310
      %v322 = vunpack.c.l.bf16 %v311
      %v323 = vunpack.c.h.bf16 %v311
      %v324 = vunpack.c.l.bf16 %v312
      %v325 = vunpack.c.h.bf16 %v312
      %v326 = vunpack.c.l.bf16 %v313
      %v327 = vunpack.c.h.bf16 %v313
      %v328 = vunpack.c.l.bf16 %v314
      %v329 = vunpack.c.h.bf16 %v314
      %v330 = vunpack.c.l.bf16 %v315
      %v331 = vunpack.c.h.bf16 %v315
      %v332 = vld [vmem:[%s1] sm:$0x3]
      %v334 = vlaneseq
      %v335 = vshrl.u32 %v334, 7
      %v336 = vsub.s32 0, %v335
      %v337 = vrot.slane %v332, %v336
      %v338 = vlaneseq
      %v339 = vshrl.u32 %v338, 7
      %v340 = vsub.s32 1, %v339
      %v341 = vrot.slane %v332, %v340
      %v344 = vmul.f32 %v316, %v337
      %v345 = vmul.f32 %v317, %v341
      %v346 = vmul.f32 %v318, %v337
      %v347 = vmul.f32 %v319, %v341
      %v348 = vmul.f32 %v320, %v337
      %v349 = vmul.f32 %v321, %v341
      %v350 = vmul.f32 %v322, %v337
      %v351 = vmul.f32 %v323, %v341
      %v352 = vmul.f32 %v324, %v337
      %v353 = vmul.f32 %v325, %v341
      %v354 = vmul.f32 %v326, %v337
      %v355 = vmul.f32 %v327, %v341
      %v356 = vmul.f32 %v328, %v337
      %v357 = vmul.f32 %v329, %v341
      %v358 = vmul.f32 %v330, %v337
      %v359 = vmul.f32 %v331, %v341
      %v360 = vld [vmem:[%s2] sm:$0x3]
      %v362 = vlaneseq
      %v363 = vshrl.u32 %v362, 7
      %v364 = vsub.s32 0, %v363
      %v365 = vrot.slane %v360, %v364
      %v366 = vlaneseq
      %v367 = vshrl.u32 %v366, 7
      %v368 = vsub.s32 1, %v367
      %v369 = vrot.slane %v360, %v368
      %v372 = vadd.f32 %v344, %v365
      %v373 = vadd.f32 %v345, %v369
      %v374 = vadd.f32 %v346, %v365
      %v375 = vadd.f32 %v347, %v369
      %v376 = vadd.f32 %v348, %v365
      %v377 = vadd.f32 %v349, %v369
      %v378 = vadd.f32 %v350, %v365
      %v379 = vadd.f32 %v351, %v369
      %v380 = vadd.f32 %v352, %v365
      %v381 = vadd.f32 %v353, %v369
      %v382 = vadd.f32 %v354, %v365
      %v383 = vadd.f32 %v355, %v369
      %v384 = vadd.f32 %v356, %v365
      %v385 = vadd.f32 %v357, %v369
      %v386 = vadd.f32 %v358, %v365
      %v387 = vadd.f32 %v359, %v369
      %v388 = vmax.f32 %v372, 0.0
      %v389 = vmax.f32 %v373, 0.0
      %v390 = vmax.f32 %v374, 0.0
      %v391 = vmax.f32 %v375, 0.0
      %v392 = vmax.f32 %v376, 0.0
      %v393 = vmax.f32 %v377, 0.0
      %v394 = vmax.f32 %v378, 0.0
      %v395 = vmax.f32 %v379, 0.0
      %v396 = vmax.f32 %v380, 0.0
      %v397 = vmax.f32 %v381, 0.0
      %v398 = vmax.f32 %v382, 0.0
      %v399 = vmax.f32 %v383, 0.0
      %v400 = vmax.f32 %v384, 0.0
      %v401 = vmax.f32 %v385, 0.0
      %v402 = vmax.f32 %v386, 0.0
      %v403 = vmax.f32 %v387, 0.0
      %v404 = vpack.c.bf16 %v390, %v388
      %v405 = vpack.c.bf16 %v391, %v389
      %v406 = vpack.c.bf16 %v394, %v392
      %v407 = vpack.c.bf16 %v395, %v393
      %v408 = vpack.c.bf16 %v398, %v396
      %v409 = vpack.c.bf16 %v399, %v397
      %v410 = vpack.c.bf16 %v402, %v400
      %v411 = vpack.c.bf16 %v403, %v401
      %v412 = vld [vmem:[%s3] sm:$0xff]
      %v413 = vld [vmem:[%s3 + $0x8] sm:$0xff]
      %v414 = vld [vmem:[%s3 + $0x10] sm:$0xff]
      %v415 = vld [vmem:[%s3 + $0x18] sm:$0xff]
      %v416 = vld [vmem:[%s3 + $0x20] sm:$0xff]
      %v417 = vld [vmem:[%s3 + $0x28] sm:$0xff]
      %v418 = vld [vmem:[%s3 + $0x30] sm:$0xff]
      %v419 = vld [vmem:[%s3 + $0x38] sm:$0xff]
      %v420 = vld [vmem:[%s3 + $0x40] sm:$0xff]
      %v421 = vld [vmem:[%s3 + $0x48] sm:$0xff]
      %v422 = vld [vmem:[%s3 + $0x50] sm:$0xff]
      %v423 = vld [vmem:[%s3 + $0x58] sm:$0xff]
      %v424 = vld [vmem:[%s3 + $0x60] sm:$0xff]
      %v425 = vld [vmem:[%s3 + $0x68] sm:$0xff]
      %v426 = vld [vmem:[%s3 + $0x70] sm:$0xff]
      %v427 = vld [vmem:[%s3 + $0x78] sm:$0xff]
      %v428 = vld [vmem:[%s3 + $0x80] sm:$0xff]
      %v429 = vld [vmem:[%s3 + $0x88] sm:$0xff]
      %v430 = vld [vmem:[%s3 + $0x90] sm:$0xff]
      %v431 = vld [vmem:[%s3 + $0x98] sm:$0xff]
      %v432 = vld [vmem:[%s3 + $0xa0] sm:$0xff]
      %v433 = vld [vmem:[%s3 + $0xa8] sm:$0xff]
      %v434 = vld [vmem:[%s3 + $0xb0] sm:$0xff]
      %v435 = vld [vmem:[%s3 + $0xb8] sm:$0xff]
      %v436 = vld [vmem:[%s3 + $0xc0] sm:$0xff]
      %v437 = vld [vmem:[%s3 + $0xc8] sm:$0xff]
      %v438 = vld [vmem:[%s3 + $0xd0] sm:$0xff]
      %v439 = vld [vmem:[%s3 + $0xd8] sm:$0xff]
      %v440 = vld [vmem:[%s3 + $0xe0] sm:$0xff]
      %v441 = vld [vmem:[%s3 + $0xe8] sm:$0xff]
      %v442 = vld [vmem:[%s3 + $0xf0] sm:$0xff]
      %v443 = vld [vmem:[%s3 + $0xf8] sm:$0xff]
      %v444 = vld [vmem:[%s3 + $0x100] sm:$0xff]
      %v445 = vld [vmem:[%s3 + $0x108] sm:$0xff]
      %v446 = vld [vmem:[%s3 + $0x110] sm:$0xff]
      %v447 = vld [vmem:[%s3 + $0x118] sm:$0xff]
      %v448 = vld [vmem:[%s3 + $0x120] sm:$0xff]
      %v449 = vld [vmem:[%s3 + $0x128] sm:$0xff]
      %v450 = vld [vmem:[%s3 + $0x130] sm:$0xff]
      %v451 = vld [vmem:[%s3 + $0x138] sm:$0xff]
      %v452 = vld [vmem:[%s3 + $0x140] sm:$0xff]
      %v453 = vld [vmem:[%s3 + $0x148] sm:$0xff]
      %v454 = vld [vmem:[%s3 + $0x150] sm:$0xff]
      %v455 = vld [vmem:[%s3 + $0x158] sm:$0xff]
      %v456 = vld [vmem:[%s3 + $0x160] sm:$0xff]
      %v457 = vld [vmem:[%s3 + $0x168] sm:$0xff]
      %v458 = vld [vmem:[%s3 + $0x170] sm:$0xff]
      %v459 = vld [vmem:[%s3 + $0x178] sm:$0xff]
      %v460 = vld [vmem:[%s3 + $0x180] sm:$0xff]
      %v461 = vld [vmem:[%s3 + $0x188] sm:$0xff]
      %v462 = vld [vmem:[%s3 + $0x190] sm:$0xff]
      %v463 = vld [vmem:[%s3 + $0x198] sm:$0xff]
      %v464 = vld [vmem:[%s3 + $0x1a0] sm:$0xff]
      %v465 = vld [vmem:[%s3 + $0x1a8] sm:$0xff]
      %v466 = vld [vmem:[%s3 + $0x1b0] sm:$0xff]
      %v467 = vld [vmem:[%s3 + $0x1b8] sm:$0xff]
      %v468 = vld [vmem:[%s3 + $0x1c0] sm:$0xff]
      %v469 = vld [vmem:[%s3 + $0x1c8] sm:$0xff]
      %v470 = vld [vmem:[%s3 + $0x1d0] sm:$0xff]
      %v471 = vld [vmem:[%s3 + $0x1d8] sm:$0xff]
      %v472 = vld [vmem:[%s3 + $0x1e0] sm:$0xff]
      %v473 = vld [vmem:[%s3 + $0x1e8] sm:$0xff]
      %v474 = vld [vmem:[%s3 + $0x1f0] sm:$0xff]
      %v475 = vld [vmem:[%s3 + $0x1f8] sm:$0xff]
      %v476 = vld [vmem:[%s4] sm:$0xf]
      %v478 = vlaneseq
      %v479 = vshrl.u32 %v478, 7
      %v480 = vsub.s32 0, %v479
      %v481 = vrot.slane %v476, %v480
      %v482 = vlaneseq
      %v483 = vshrl.u32 %v482, 7
      %v484 = vsub.s32 1, %v483
      %v485 = vrot.slane %v476, %v484
      %v486 = vlaneseq
      %v487 = vshrl.u32 %v486, 7
      %v488 = vsub.s32 2, %v487
      %v489 = vrot.slane %v476, %v488
      %v490 = vlaneseq
      %v491 = vshrl.u32 %v490, 7
      %v492 = vsub.s32 3, %v491
      %v493 = vrot.slane %v476, %v492
      %v562 = vunpack.c.l.b16 %v412
      %v563 = vunpack.c.h.b16 %v412
      %v564 = vunpack.c.l.b16 %v413
      %v565 = vunpack.c.h.b16 %v413
      %v566 = vunpack.c.l.b16 %v414
      %v567 = vunpack.c.h.b16 %v414
      %v568 = vunpack.c.l.b16 %v415
      %v569 = vunpack.c.h.b16 %v415
      %v570 = vunpack.c.l.b16 %v416
      %v571 = vunpack.c.h.b16 %v416
      %v572 = vunpack.c.l.b16 %v417
      %v573 = vunpack.c.h.b16 %v417
      %v574 = vunpack.c.l.b16 %v418
      %v575 = vunpack.c.h.b16 %v418
      %v576 = vunpack.c.l.b16 %v419
      %v577 = vunpack.c.h.b16 %v419
      %v578 = vunpack.c.l.b16 %v420
      %v579 = vunpack.c.h.b16 %v420
      %v580 = vunpack.c.l.b16 %v421
      %v581 = vunpack.c.h.b16 %v421
      %v582 = vunpack.c.l.b16 %v422
      %v583 = vunpack.c.h.b16 %v422
      %v584 = vunpack.c.l.b16 %v423
      %v585 = vunpack.c.h.b16 %v423
      %v586 = vunpack.c.l.b16 %v424
      %v587 = vunpack.c.h.b16 %v424
      %v588 = vunpack.c.l.b16 %v425
      %v589 = vunpack.c.h.b16 %v425
      %v590 = vunpack.c.l.b16 %v426
      %v591 = vunpack.c.h.b16 %v426
      %v592 = vunpack.c.l.b16 %v427
      %v593 = vunpack.c.h.b16 %v427
      %v594 = vunpack.c.l.b16 %v428
      %v595 = vunpack.c.h.b16 %v428
      %v596 = vunpack.c.l.b16 %v429
      %v597 = vunpack.c.h.b16 %v429
      %v598 = vunpack.c.l.b16 %v430
      %v599 = vunpack.c.h.b16 %v430
      %v600 = vunpack.c.l.b16 %v431
      %v601 = vunpack.c.h.b16 %v431
      %v602 = vunpack.c.l.b16 %v432
      %v603 = vunpack.c.h.b16 %v432
      %v604 = vunpack.c.l.b16 %v433
      %v605 = vunpack.c.h.b16 %v433
      %v606 = vunpack.c.l.b16 %v434
      %v607 = vunpack.c.h.b16 %v434
      %v608 = vunpack.c.l.b16 %v435
      %v609 = vunpack.c.h.b16 %v435
      %v610 = vunpack.c.l.b16 %v436
      %v611 = vunpack.c.h.b16 %v436
      %v612 = vunpack.c.l.b16 %v437
      %v613 = vunpack.c.h.b16 %v437
      %v614 = vunpack.c.l.b16 %v438
      %v615 = vunpack.c.h.b16 %v438
      %v616 = vunpack.c.l.b16 %v439
      %v617 = vunpack.c.h.b16 %v439
      %v618 = vunpack.c.l.b16 %v440
      %v619 = vunpack.c.h.b16 %v440
      %v620 = vunpack.c.l.b16 %v441
      %v621 = vunpack.c.h.b16 %v441
      %v622 = vunpack.c.l.b16 %v442
      %v623 = vunpack.c.h.b16 %v442
      %v624 = vunpack.c.l.b16 %v443
      %v625 = vunpack.c.h.b16 %v443
      %v626 = vunpack.c.l.b16 %v444
      %v627 = vunpack.c.h.b16 %v444
      %v628 = vunpack.c.l.b16 %v445
      %v629 = vunpack.c.h.b16 %v445
      %v630 = vunpack.c.l.b16 %v446
      %v631 = vunpack.c.h.b16 %v446
      %v632 = vunpack.c.l.b16 %v447
      %v633 = vunpack.c.h.b16 %v447
      %v634 = vunpack.c.l.b16 %v448
      %v635 = vunpack.c.h.b16 %v448
      %v636 = vunpack.c.l.b16 %v449
      %v637 = vunpack.c.h.b16 %v449
      %v638 = vunpack.c.l.b16 %v450
      %v639 = vunpack.c.h.b16 %v450
      %v640 = vunpack.c.l.b16 %v451
      %v641 = vunpack.c.h.b16 %v451
      %v642 = vunpack.c.l.b16 %v452
      %v643 = vunpack.c.h.b16 %v452
      %v644 = vunpack.c.l.b16 %v453
      %v645 = vunpack.c.h.b16 %v453
      %v646 = vunpack.c.l.b16 %v454
      %v647 = vunpack.c.h.b16 %v454
      %v648 = vunpack.c.l.b16 %v455
      %v649 = vunpack.c.h.b16 %v455
      %v650 = vunpack.c.l.b16 %v456
      %v651 = vunpack.c.h.b16 %v456
      %v652 = vunpack.c.l.b16 %v457
      %v653 = vunpack.c.h.b16 %v457
      %v654 = vunpack.c.l.b16 %v458
      %v655 = vunpack.c.h.b16 %v458
      %v656 = vunpack.c.l.b16 %v459
      %v657 = vunpack.c.h.b16 %v459
      %v658 = vunpack.c.l.b16 %v460
      %v659 = vunpack.c.h.b16 %v460
      %v660 = vunpack.c.l.b16 %v461
      %v661 = vunpack.c.h.b16 %v461
      %v662 = vunpack.c.l.b16 %v462
      %v663 = vunpack.c.h.b16 %v462
      %v664 = vunpack.c.l.b16 %v463
      %v665 = vunpack.c.h.b16 %v463
      %v666 = vunpack.c.l.b16 %v464
      %v667 = vunpack.c.h.b16 %v464
      %v668 = vunpack.c.l.b16 %v465
      %v669 = vunpack.c.h.b16 %v465
      %v670 = vunpack.c.l.b16 %v466
      %v671 = vunpack.c.h.b16 %v466
      %v672 = vunpack.c.l.b16 %v467
      %v673 = vunpack.c.h.b16 %v467
      %v674 = vunpack.c.l.b16 %v468
      %v675 = vunpack.c.h.b16 %v468
      %v676 = vunpack.c.l.b16 %v469
      %v677 = vunpack.c.h.b16 %v469
      %v678 = vunpack.c.l.b16 %v470
      %v679 = vunpack.c.h.b16 %v470
      %v680 = vunpack.c.l.b16 %v471
      %v681 = vunpack.c.h.b16 %v471
      %v682 = vunpack.c.l.b16 %v472
      %v683 = vunpack.c.h.b16 %v472
      %v684 = vunpack.c.l.b16 %v473
      %v685 = vunpack.c.h.b16 %v473
      %v686 = vunpack.c.l.b16 %v474
      %v687 = vunpack.c.h.b16 %v474
      %v688 = vunpack.c.l.b16 %v475
      %v689 = vunpack.c.h.b16 %v475
      %v690 = vpack.c.b16 %v566, %v562
      %v691 = vpack.c.b16 %v567, %v563
      %v692 = vpack.c.b16 %v568, %v564
      %v693 = vpack.c.b16 %v569, %v565
      %v694 = vpack.c.b16 %v574, %v570
      %v695 = vpack.c.b16 %v575, %v571
      %v696 = vpack.c.b16 %v576, %v572
      %v697 = vpack.c.b16 %v577, %v573
      %v698 = vpack.c.b16 %v582, %v578
      %v699 = vpack.c.b16 %v583, %v579
      %v700 = vpack.c.b16 %v584, %v580
      %v701 = vpack.c.b16 %v585, %v581
      %v702 = vpack.c.b16 %v590, %v586
      %v703 = vpack.c.b16 %v591, %v587
      %v704 = vpack.c.b16 %v592, %v588
      %v705 = vpack.c.b16 %v593, %v589
      %v706 = vpack.c.b16 %v598, %v594
      %v707 = vpack.c.b16 %v599, %v595
      %v708 = vpack.c.b16 %v600, %v596
      %v709 = vpack.c.b16 %v601, %v597
      %v710 = vpack.c.b16 %v606, %v602
      %v711 = vpack.c.b16 %v607, %v603
      %v712 = vpack.c.b16 %v608, %v604
      %v713 = vpack.c.b16 %v609, %v605
      %v714 = vpack.c.b16 %v614, %v610
      %v715 = vpack.c.b16 %v615, %v611
      %v716 = vpack.c.b16 %v616, %v612
      %v717 = vpack.c.b16 %v617, %v613
      %v718 = vpack.c.b16 %v622, %v618
      %v719 = vpack.c.b16 %v623, %v619
      %v720 = vpack.c.b16 %v624, %v620
      %v721 = vpack.c.b16 %v625, %v621
      %v722 = vpack.c.b16 %v630, %v626
      %v723 = vpack.c.b16 %v631, %v627
      %v724 = vpack.c.b16 %v632, %v628
      %v725 = vpack.c.b16 %v633, %v629
      %v726 = vpack.c.b16 %v638, %v634
      %v727 = vpack.c.b16 %v639, %v635
      %v728 = vpack.c.b16 %v640, %v636
      %v729 = vpack.c.b16 %v641, %v637
      %v730 = vpack.c.b16 %v646, %v642
      %v731 = vpack.c.b16 %v647, %v643
      %v732 = vpack.c.b16 %v648, %v644
      %v733 = vpack.c.b16 %v649, %v645
      %v734 = vpack.c.b16 %v654, %v650
      %v735 = vpack.c.b16 %v655, %v651
      %v736 = vpack.c.b16 %v656, %v652
      %v737 = vpack.c.b16 %v657, %v653
      %v738 = vpack.c.b16 %v662, %v658
      %v739 = vpack.c.b16 %v663, %v659
      %v740 = vpack.c.b16 %v664, %v660
      %v741 = vpack.c.b16 %v665, %v661
      %v742 = vpack.c.b16 %v670, %v666
      %v743 = vpack.c.b16 %v671, %v667
      %v744 = vpack.c.b16 %v672, %v668
      %v745 = vpack.c.b16 %v673, %v669
      %v746 = vpack.c.b16 %v678, %v674
      %v747 = vpack.c.b16 %v679, %v675
      %v748 = vpack.c.b16 %v680, %v676
      %v749 = vpack.c.b16 %v681, %v677
      %v750 = vpack.c.b16 %v686, %v682
      %v751 = vpack.c.b16 %v687, %v683
      %v752 = vpack.c.b16 %v688, %v684
      %v753 = vpack.c.b16 %v689, %v685
      %818 = vmatprep.subr.bf16.mxu0 %v691
      %819 = vmatpush1.bf16.msra.mxu0 %v690
      %820 = vmatprep.subr.bf16.mxu0 %v695
      %821 = vmatpush1.bf16.msra.mxu0 %v694
      %822 = vmatprep.subr.bf16.mxu0 %v699
      %823 = vmatpush1.bf16.msra.mxu0 %v698
      %824 = vmatprep.subr.bf16.mxu0 %v703
      %825 = vmatpush1.bf16.msra.mxu0 %v702
      %826 = vmatprep.subr.bf16.mxu0 %v707
      %827 = vmatpush1.bf16.msra.mxu0 %v706
      %828 = vmatprep.subr.bf16.mxu0 %v711
      %829 = vmatpush1.bf16.msra.mxu0 %v710
      %830 = vmatprep.subr.bf16.mxu0 %v715
      %831 = vmatpush1.bf16.msra.mxu0 %v714
      %832 = vmatprep.subr.bf16.mxu0 %v719
      %833 = vmatpush1.bf16.msra.mxu0 %v718
      %834 = vmatprep.subr.bf16.mxu0 %v723
      %835 = vmatpush1.bf16.msra.mxu0 %v722
      %836 = vmatprep.subr.bf16.mxu0 %v727
      %837 = vmatpush1.bf16.msra.mxu0 %v726
      %838 = vmatprep.subr.bf16.mxu0 %v731
      %839 = vmatpush1.bf16.msra.mxu0 %v730
      %840 = vmatprep.subr.bf16.mxu0 %v735
      %841 = vmatpush1.bf16.msra.mxu0 %v734
      %842 = vmatprep.subr.bf16.mxu0 %v739
      %843 = vmatpush1.bf16.msra.mxu0 %v738
      %844 = vmatprep.subr.bf16.mxu0 %v743
      %845 = vmatpush1.bf16.msra.mxu0 %v742
      %846 = vmatprep.subr.bf16.mxu0 %v747
      %847 = vmatpush1.bf16.msra.mxu0 %v746
      %848 = vmatprep.subr.bf16.mxu0 %v751
      %849 = vmatpush1.bf16.msra.mxu0 %v750
      %850 = vmatprep.mubr.bf16.mxu0 %v405
      %851 = vmatmul.mubr.bf16.gmra.mrb[0].mxu0 %v404
      %v852 = vpop.f32.mrb[0].mxu0
      %v853 = vadd.f32 %v481, %v852
      %v854 = vpop.f32.mrb[0].mxu0
      %v855 = vadd.f32 %v485, %v854
      %v856 = vpop.f32.mrb[0].mxu0
      %v857 = vadd.f32 %v481, %v856
      %v858 = vpop.f32.mrb[0].mxu0
      %v859 = vadd.f32 %v485, %v858
      %860 = vmatprep.mubr.bf16.mxu0 %v407
      %861 = vmatmul.mubr.bf16.gmra.mrb[0].mxu0 %v406
      %v862 = vpop.f32.mrb[0].mxu0
      %v863 = vadd.f32 %v481, %v862
      %v864 = vpop.f32.mrb[0].mxu0
      %v865 = vadd.f32 %v485, %v864
      %v866 = vpop.f32.mrb[0].mxu0
      %v867 = vadd.f32 %v481, %v866
      %v868 = vpop.f32.mrb[0].mxu0
      %v869 = vadd.f32 %v485, %v868
      %870 = vmatprep.mubr.bf16.mxu0 %v409
      %871 = vmatmul.mubr.bf16.gmra.mrb[0].mxu0 %v408
      %v872 = vpop.f32.mrb[0].mxu0
      %v873 = vadd.f32 %v481, %v872
      %v874 = vpop.f32.mrb[0].mxu0
      %v875 = vadd.f32 %v485, %v874
      %v876 = vpop.f32.mrb[0].mxu0
      %v877 = vadd.f32 %v481, %v876
      %v878 = vpop.f32.mrb[0].mxu0
      %v879 = vadd.f32 %v485, %v878
      %880 = vmatprep.mubr.bf16.mxu0 %v411
      %881 = vmatmul.mubr.bf16.gmra.mrb[0].mxu0 %v410
      %v882 = vpop.f32.mrb[0].mxu0
      %v883 = vadd.f32 %v481, %v882
      %v884 = vpop.f32.mrb[0].mxu0
      %v885 = vadd.f32 %v485, %v884
      %v886 = vpop.f32.mrb[0].mxu0
      %v887 = vadd.f32 %v481, %v886
      %v888 = vpop.f32.mrb[0].mxu0
      %v889 = vadd.f32 %v485, %v888
      %890 = vdwg.mxu0
      %891 = vmatprep.subr.bf16.mxu0 %v693
      %892 = vmatpush1.bf16.msra.mxu0 %v692
      %893 = vmatprep.subr.bf16.mxu0 %v697
      %894 = vmatpush1.bf16.msra.mxu0 %v696
      %895 = vmatprep.subr.bf16.mxu0 %v701
      %896 = vmatpush1.bf16.msra.mxu0 %v700
      %897 = vmatprep.subr.bf16.mxu0 %v705
      %898 = vmatpush1.bf16.msra.mxu0 %v704
      %899 = vmatprep.subr.bf16.mxu0 %v709
      %900 = vmatpush1.bf16.msra.mxu0 %v708
      %901 = vmatprep.subr.bf16.mxu0 %v713
      %902 = vmatpush1.bf16.msra.mxu0 %v712
      %903 = vmatprep.subr.bf16.mxu0 %v717
      %904 = vmatpush1.bf16.msra.mxu0 %v716
      %905 = vmatprep.subr.bf16.mxu0 %v721
      %906 = vmatpush1.bf16.msra.mxu0 %v720
      %907 = vmatprep.subr.bf16.mxu0 %v725
      %908 = vmatpush1.bf16.msra.mxu0 %v724
      %909 = vmatprep.subr.bf16.mxu0 %v729
      %910 = vmatpush1.bf16.msra.mxu0 %v728
      %911 = vmatprep.subr.bf16.mxu0 %v733
      %912 = vmatpush1.bf16.msra.mxu0 %v732
      %913 = vmatprep.subr.bf16.mxu0 %v737
      %914 = vmatpush1.bf16.msra.mxu0 %v736
      %915 = vmatprep.subr.bf16.mxu0 %v741
      %916 = vmatpush1.bf16.msra.mxu0 %v740
      %917 = vmatprep.subr.bf16.mxu0 %v745
      %918 = vmatpush1.bf16.msra.mxu0 %v744
      %919 = vmatprep.subr.bf16.mxu0 %v749
      %920 = vmatpush1.bf16.msra.mxu0 %v748
      %921 = vmatprep.subr.bf16.mxu0 %v753
      %922 = vmatpush1.bf16.msra.mxu0 %v752
      %923 = vmatprep.mubr.bf16.mxu0 %v405
      %924 = vmatmul.mubr.bf16.gmra.mrb[0].mxu0 %v404
      %v925 = vpop.f32.mrb[0].mxu0
      %v926 = vadd.f32 %v489, %v925
      %v927 = vpop.f32.mrb[0].mxu0
      %v928 = vadd.f32 %v493, %v927
      %v929 = vpop.f32.mrb[0].mxu0
      %v930 = vadd.f32 %v489, %v929
      %v931 = vpop.f32.mrb[0].mxu0
      %v932 = vadd.f32 %v493, %v931
      %933 = vmatprep.mubr.bf16.mxu0 %v407
      %934 = vmatmul.mubr.bf16.gmra.mrb[0].mxu0 %v406
      %v935 = vpop.f32.mrb[0].mxu0
      %v936 = vadd.f32 %v489, %v935
      %v937 = vpop.f32.mrb[0].mxu0
      %v938 = vadd.f32 %v493, %v937
      %v939 = vpop.f32.mrb[0].mxu0
      %v940 = vadd.f32 %v489, %v939
      %v941 = vpop.f32.mrb[0].mxu0
      %v942 = vadd.f32 %v493, %v941
      %943 = vmatprep.mubr.bf16.mxu0 %v409
      %944 = vmatmul.mubr.bf16.gmra.mrb[0].mxu0 %v408
      %v945 = vpop.f32.mrb[0].mxu0
      %v946 = vadd.f32 %v489, %v945
      %v947 = vpop.f32.mrb[0].mxu0
      %v948 = vadd.f32 %v493, %v947
      %v949 = vpop.f32.mrb[0].mxu0
      %v950 = vadd.f32 %v489, %v949
      %v951 = vpop.f32.mrb[0].mxu0
      %v952 = vadd.f32 %v493, %v951
      %953 = vmatprep.mubr.bf16.mxu0 %v411
      %954 = vmatmul.mubr.bf16.gmra.mrb[0].mxu0 %v410
      %v955 = vpop.f32.mrb[0].mxu0
      %v956 = vadd.f32 %v489, %v955
      %v957 = vpop.f32.mrb[0].mxu0
      %v958 = vadd.f32 %v493, %v957
      %v959 = vpop.f32.mrb[0].mxu0
      %v960 = vadd.f32 %v489, %v959
      %v961 = vpop.f32.mrb[0].mxu0
      %v962 = vadd.f32 %v493, %v961
      %963 = vdwg.mxu0
      %v964 = vpack.c.bf16 %v857, %v853
      %v965 = vpack.c.bf16 %v859, %v855
      %v966 = vpack.c.bf16 %v930, %v926
      %v967 = vpack.c.bf16 %v932, %v928
      %v968 = vpack.c.bf16 %v867, %v863
      %v969 = vpack.c.bf16 %v869, %v865
      %v970 = vpack.c.bf16 %v940, %v936
      %v971 = vpack.c.bf16 %v942, %v938
      %v972 = vpack.c.bf16 %v877, %v873
      %v973 = vpack.c.bf16 %v879, %v875
      %v974 = vpack.c.bf16 %v950, %v946
      %v975 = vpack.c.bf16 %v952, %v948
      %v976 = vpack.c.bf16 %v887, %v883
      %v977 = vpack.c.bf16 %v889, %v885
      %v978 = vpack.c.bf16 %v960, %v956
      %v979 = vpack.c.bf16 %v962, %v958
      %v996 = vunpack.c.l.b16 %v964
      %v997 = vunpack.c.l.b16 %v965
      %v998 = vunpack.c.l.b16 %v966
      %v999 = vunpack.c.l.b16 %v967
      %v1000 = vunpack.c.h.b16 %v964
      %v1001 = vunpack.c.h.b16 %v965
      %v1002 = vunpack.c.h.b16 %v966
      %v1003 = vunpack.c.h.b16 %v967
      %v1004 = vunpack.c.l.b16 %v968
      %v1005 = vunpack.c.l.b16 %v969
      %v1006 = vunpack.c.l.b16 %v970
      %v1007 = vunpack.c.l.b16 %v971
      %v1008 = vunpack.c.h.b16 %v968
      %v1009 = vunpack.c.h.b16 %v969
      %v1010 = vunpack.c.h.b16 %v970
      %v1011 = vunpack.c.h.b16 %v971
      %v1012 = vunpack.c.l.b16 %v972
      %v1013 = vunpack.c.l.b16 %v973
      %v1014 = vunpack.c.l.b16 %v974
      %v1015 = vunpack.c.l.b16 %v975
      %v1016 = vunpack.c.h.b16 %v972
      %v1017 = vunpack.c.h.b16 %v973
      %v1018 = vunpack.c.h.b16 %v974
      %v1019 = vunpack.c.h.b16 %v975
      %v1020 = vunpack.c.l.b16 %v976
      %v1021 = vunpack.c.l.b16 %v977
      %v1022 = vunpack.c.l.b16 %v978
      %v1023 = vunpack.c.l.b16 %v979
      %v1024 = vunpack.c.h.b16 %v976
      %v1025 = vunpack.c.h.b16 %v977
      %v1026 = vunpack.c.h.b16 %v978
      %v1027 = vunpack.c.h.b16 %v979
      %v1028 = vpack.c.b16 %v997, %v996
      %v1029 = vpack.c.b16 %v999, %v998
      %v1030 = vpack.c.b16 %v1001, %v1000
      %v1031 = vpack.c.b16 %v1003, %v1002
      %v1032 = vpack.c.b16 %v1005, %v1004
      %v1033 = vpack.c.b16 %v1007, %v1006
      %v1034 = vpack.c.b16 %v1009, %v1008
      %v1035 = vpack.c.b16 %v1011, %v1010
      %v1036 = vpack.c.b16 %v1013, %v1012
      %v1037 = vpack.c.b16 %v1015, %v1014
      %v1038 = vpack.c.b16 %v1017, %v1016
      %v1039 = vpack.c.b16 %v1019, %v1018
      %v1040 = vpack.c.b16 %v1021, %v1020
      %v1041 = vpack.c.b16 %v1023, %v1022
      %v1042 = vpack.c.b16 %v1025, %v1024
      %v1043 = vpack.c.b16 %v1027, %v1026
      %1060 = vst [vmem:[%s298] sm:$0xff] %v1028
      %1061 = vst [vmem:[%s298 + $0x8] sm:$0xff] %v1029
      %1062 = vst [vmem:[%s298 + $0x10] sm:$0xff] %v1030
      %1063 = vst [vmem:[%s298 + $0x18] sm:$0xff] %v1031
      %1064 = vst [vmem:[%s298 + $0x20] sm:$0xff] %v1032
      %1065 = vst [vmem:[%s298 + $0x28] sm:$0xff] %v1033
      %1066 = vst [vmem:[%s298 + $0x30] sm:$0xff] %v1034
      %1067 = vst [vmem:[%s298 + $0x38] sm:$0xff] %v1035
      %1068 = vst [vmem:[%s298 + $0x40] sm:$0xff] %v1036
      %1069 = vst [vmem:[%s298 + $0x48] sm:$0xff] %v1037
      %1070 = vst [vmem:[%s298 + $0x50] sm:$0xff] %v1038
      %1071 = vst [vmem:[%s298 + $0x58] sm:$0xff] %v1039
      %1072 = vst [vmem:[%s298 + $0x60] sm:$0xff] %v1040
      %1073 = vst [vmem:[%s298 + $0x68] sm:$0xff] %v1041
      %1074 = vst [vmem:[%s298 + $0x70] sm:$0xff] %v1042
      %1075 = vst [vmem:[%s298 + $0x78] sm:$0xff] %v1043
      %v1076 = vunpack.c.l.bf16 %v964
      %v1077 = vunpack.c.l.bf16 %v965
      %v1078 = vunpack.c.l.bf16 %v966
      %v1079 = vunpack.c.l.bf16 %v967
      %v1080 = vunpack.c.h.bf16 %v964
      %v1081 = vunpack.c.h.bf16 %v965
      %v1082 = vunpack.c.h.bf16 %v966
      %v1083 = vunpack.c.h.bf16 %v967
      %v1084 = vunpack.c.l.bf16 %v968
      %v1085 = vunpack.c.l.bf16 %v969
      %v1086 = vunpack.c.l.bf16 %v970
      %v1087 = vunpack.c.l.bf16 %v971
      %v1088 = vunpack.c.h.bf16 %v968
      %v1089 = vunpack.c.h.bf16 %v969
      %v1090 = vunpack.c.h.bf16 %v970
      %v1091 = vunpack.c.h.bf16 %v971
      %v1092 = vunpack.c.l.bf16 %v972
      %v1093 = vunpack.c.l.bf16 %v973
      %v1094 = vunpack.c.l.bf16 %v974
      %v1095 = vunpack.c.l.bf16 %v975
      %v1096 = vunpack.c.h.bf16 %v972
      %v1097 = vunpack.c.h.bf16 %v973
      %v1098 = vunpack.c.h.bf16 %v974
      %v1099 = vunpack.c.h.bf16 %v975
      %v1100 = vunpack.c.l.bf16 %v976
      %v1101 = vunpack.c.l.bf16 %v977
      %v1102 = vunpack.c.l.bf16 %v978
      %v1103 = vunpack.c.l.bf16 %v979
      %v1104 = vunpack.c.h.bf16 %v976
      %v1105 = vunpack.c.h.bf16 %v977
      %v1106 = vunpack.c.h.bf16 %v978
      %v1107 = vunpack.c.h.bf16 %v979
      %vm1108 = vcmask 523264
      %v1110 = vsel %vm1108, 1.0, 0
      %1112 = vmatprep.subr.mxu0 %v1077
      %1113 = vmatpush1.msra.mxu0 %v1076
      %1114 = vmatprep.subr.mxu0 %v1081
      %1115 = vmatpush1.msra.mxu0 %v1080
      %1116 = vmatprep.subr.mxu0 %v1085
      %1117 = vmatpush1.msra.mxu0 %v1084
      %1118 = vmatprep.subr.mxu0 %v1089
      %1119 = vmatpush1.msra.mxu0 %v1088
      %1120 = vmatprep.subr.mxu0 %v1093
      %1121 = vmatpush1.msra.mxu0 %v1092
      %1122 = vmatprep.subr.mxu0 %v1097
      %1123 = vmatpush1.msra.mxu0 %v1096
      %1124 = vmatprep.subr.mxu0 %v1101
      %1125 = vmatpush1.msra.mxu0 %v1100
      %1126 = vmatprep.subr.mxu0 %v1105
      %1127 = vmatpush1.msra.mxu0 %v1104
      %1128 = vmatprep.subr.mxu0 0.0
      %1129 = vmatpush1.msra.mxu0 0.0
      %1130 = vmatprep.subr.mxu0 0.0
      %1131 = vmatpush1.msra.mxu0 0.0
      %1132 = vmatprep.subr.mxu0 0.0
      %1133 = vmatpush1.msra.mxu0 0.0
      %1134 = vmatprep.subr.mxu0 0.0
      %1135 = vmatpush1.msra.mxu0 0.0
      %1136 = vmatprep.subr.mxu0 0.0
      %1137 = vmatpush1.msra.mxu0 0.0
      %1138 = vmatprep.subr.mxu0 0.0
      %1139 = vmatpush1.msra.mxu0 0.0
      %1140 = vmatprep.subr.mxu0 0.0
      %1141 = vmatpush1.msra.mxu0 0.0
      %1142 = vmatprep.subr.mxu0 0.0
      %1143 = vmatpush1.msra.mxu0 0.0
      %1144 = vmatprep.subr.mxu0 0.0
      %1145 = vmatpush1.msra.mxu0 0.0
      %1146 = vmatprep.subr.mxu0 0.0
      %1147 = vmatpush1.msra.mxu0 0.0
      %1148 = vmatprep.subr.mxu0 0.0
      %1149 = vmatpush1.msra.mxu0 0.0
      %1150 = vmatprep.subr.mxu0 0.0
      %1151 = vmatpush1.msra.mxu0 0.0
      %1152 = vmatprep.subr.mxu0 0.0
      %1153 = vmatpush1.msra.mxu0 0.0
      %1154 = vmatprep.subr.mxu0 0.0
      %1155 = vmatpush1.msra.mxu0 0.0
      %1156 = vmatprep.subr.mxu0 0.0
      %1157 = vmatpush1.msra.mxu0 0.0
      %1158 = vmatprep.subr.mxu0 0.0
      %1159 = vmatpush1.msra.mxu0 0.0
      %1160 = vmatprep.subr.mxu0 0.0
      %1161 = vmatpush1.msra.mxu0 0.0
      %1162 = vmatprep.subr.mxu0 0.0
      %1163 = vmatpush1.msra.mxu0 0.0
      %1164 = vmatprep.subr.mxu0 0.0
      %1165 = vmatpush1.msra.mxu0 0.0
      %1166 = vmatprep.subr.mxu0 0.0
      %1167 = vmatpush1.msra.mxu0 0.0
      %1168 = vmatprep.subr.mxu0 0.0
      %1169 = vmatpush1.msra.mxu0 0.0
      %1170 = vmatprep.subr.mxu0 0.0
      %1171 = vmatpush1.msra.mxu0 0.0
      %1172 = vmatprep.subr.mxu0 0.0
      %1173 = vmatpush1.msra.mxu0 0.0
      %1174 = vmatprep.subr.mxu0 0.0
      %1175 = vmatpush1.msra.mxu0 0.0
      %1176 = vmatprep.mubr.f32.mxu0 0.0
      %1177 = vmatmul.mubr.f32.gmra.mrb[0].mxu0 %v1110
      %v1178 = vpop.f32.mrb[0].mxu0
      %v1179 = vadd.f32 0.0, %v1178
      %v1180 = vpop.f32.mrb[0].mxu0
      %v1181 = vadd.f32 0.0, %v1180
      %1182 = vdwg.mxu0
      %1183 = vmatprep.subr.mxu0 %v1079
      %1184 = vmatpush1.msra.mxu0 %v1078
      %1185 = vmatprep.subr.mxu0 %v1083
      %1186 = vmatpush1.msra.mxu0 %v1082
      %1187 = vmatprep.subr.mxu0 %v1087
      %1188 = vmatpush1.msra.mxu0 %v1086
      %1189 = vmatprep.subr.mxu0 %v1091
      %1190 = vmatpush1.msra.mxu0 %v1090
      %1191 = vmatprep.subr.mxu0 %v1095
      %1192 = vmatpush1.msra.mxu0 %v1094
      %1193 = vmatprep.subr.mxu0 %v1099
      %1194 = vmatpush1.msra.mxu0 %v1098
      %1195 = vmatprep.subr.mxu0 %v1103
      %1196 = vmatpush1.msra.mxu0 %v1102
      %1197 = vmatprep.subr.mxu0 %v1107
      %1198 = vmatpush1.msra.mxu0 %v1106
      %1199 = vmatprep.subr.mxu0 0.0
      %1200 = vmatpush1.msra.mxu0 0.0
      %1201 = vmatprep.subr.mxu0 0.0
      %1202 = vmatpush1.msra.mxu0 0.0
      %1203 = vmatprep.subr.mxu0 0.0
      %1204 = vmatpush1.msra.mxu0 0.0
      %1205 = vmatprep.subr.mxu0 0.0
      %1206 = vmatpush1.msra.mxu0 0.0
      %1207 = vmatprep.subr.mxu0 0.0
      %1208 = vmatpush1.msra.mxu0 0.0
      %1209 = vmatprep.subr.mxu0 0.0
      %1210 = vmatpush1.msra.mxu0 0.0
      %1211 = vmatprep.subr.mxu0 0.0
      %1212 = vmatpush1.msra.mxu0 0.0
      %1213 = vmatprep.subr.mxu0 0.0
      %1214 = vmatpush1.msra.mxu0 0.0
      %1215 = vmatprep.subr.mxu0 0.0
      %1216 = vmatpush1.msra.mxu0 0.0
      %1217 = vmatprep.subr.mxu0 0.0
      %1218 = vmatpush1.msra.mxu0 0.0
      %1219 = vmatprep.subr.mxu0 0.0
      %1220 = vmatpush1.msra.mxu0 0.0
      %1221 = vmatprep.subr.mxu0 0.0
      %1222 = vmatpush1.msra.mxu0 0.0
      %1223 = vmatprep.subr.mxu0 0.0
      %1224 = vmatpush1.msra.mxu0 0.0
      %1225 = vmatprep.subr.mxu0 0.0
      %1226 = vmatpush1.msra.mxu0 0.0
      %1227 = vmatprep.subr.mxu0 0.0
      %1228 = vmatpush1.msra.mxu0 0.0
      %1229 = vmatprep.subr.mxu0 0.0
      %1230 = vmatpush1.msra.mxu0 0.0
      %1231 = vmatprep.subr.mxu0 0.0
      %1232 = vmatpush1.msra.mxu0 0.0
      %1233 = vmatprep.subr.mxu0 0.0
      %1234 = vmatpush1.msra.mxu0 0.0
      %1235 = vmatprep.subr.mxu0 0.0
      %1236 = vmatpush1.msra.mxu0 0.0
      %1237 = vmatprep.subr.mxu0 0.0
      %1238 = vmatpush1.msra.mxu0 0.0
      %1239 = vmatprep.subr.mxu0 0.0
      %1240 = vmatpush1.msra.mxu0 0.0
      %1241 = vmatprep.subr.mxu0 0.0
      %1242 = vmatpush1.msra.mxu0 0.0
      %1243 = vmatprep.subr.mxu0 0.0
      %1244 = vmatpush1.msra.mxu0 0.0
      %1245 = vmatprep.subr.mxu0 0.0
      %1246 = vmatpush1.msra.mxu0 0.0
      %1247 = vmatprep.mubr.f32.mxu0 0.0
      %1248 = vmatmul.mubr.f32.gmra.mrb[0].mxu0 %v1110
      %v1249 = vpop.f32.mrb[0].mxu0
      %v1250 = vadd.f32 0.0, %v1249
      %v1251 = vpop.f32.mrb[0].mxu0
      %v1252 = vadd.f32 0.0, %v1251
      %1253 = vdwg.mxu0
      %v1258 = vcombine.low %v1179, %v1181
      %v1259 = vcombine.low %v1250, %v1252
      %v1261 = vunpack.c.l.s4 1966171168
      %v1262 = vunpack.c.0.s8 %v1261
      %v1263 = vlaneseq
      %v1264 = vshrl.u32 %v1263, 7
      %v1265 = vsub.s32 %v1262, %v1264
      %v1266 = vrot.slane %v1258, %v1265
      %v1268 = vunpack.c.l.s4 1966171168
      %v1269 = vunpack.c.0.s8 %v1268
      %v1270 = vlaneseq
      %v1271 = vshrl.u32 %v1270, 7
      %v1272 = vsub.s32 %v1269, %v1271
      %v1273 = vrot.slane %v1259, %v1272
      %v1274 = vcombine.low %v1266, %v1273
      %v1276 = vunpack.c.l.s4 1966171168
      %v1277 = vunpack.c.0.s8 %v1276
      %v1278 = vlaneseq
      %v1279 = vshrl.u32 %v1278, 7
      %v1280 = vsub.s32 %v1277, %v1279
      %v1281 = vrot.slane %v1274, %v1280
      %v1283 = vlaneseq
      %vm1284 = vcmp.ge.s32.totalorder %v1283, 0
      %vm1285 = vcmp.lt.s32.totalorder %v1283, 512
      %vm1286 = vmand %vm1284, %vm1285
      %1287 = vst.msk [vmem:[%s303] sm:$0xf] %vm1286, %v1281
      %v1288 = vmul.f32 %v1076, %v1076
      %v1289 = vmul.f32 %v1077, %v1077
      %v1290 = vmul.f32 %v1078, %v1078
      %v1291 = vmul.f32 %v1079, %v1079
      %v1292 = vmul.f32 %v1080, %v1080
      %v1293 = vmul.f32 %v1081, %v1081
      %v1294 = vmul.f32 %v1082, %v1082
      %v1295 = vmul.f32 %v1083, %v1083
      %v1296 = vmul.f32 %v1084, %v1084
      %v1297 = vmul.f32 %v1085, %v1085
      %v1298 = vmul.f32 %v1086, %v1086
      %v1299 = vmul.f32 %v1087, %v1087
      %v1300 = vmul.f32 %v1088, %v1088
      %v1301 = vmul.f32 %v1089, %v1089
      %v1302 = vmul.f32 %v1090, %v1090
      %v1303 = vmul.f32 %v1091, %v1091
      %v1304 = vmul.f32 %v1092, %v1092
      %v1305 = vmul.f32 %v1093, %v1093
      %v1306 = vmul.f32 %v1094, %v1094
      %v1307 = vmul.f32 %v1095, %v1095
      %v1308 = vmul.f32 %v1096, %v1096
      %v1309 = vmul.f32 %v1097, %v1097
      %v1310 = vmul.f32 %v1098, %v1098
      %v1311 = vmul.f32 %v1099, %v1099
      %v1312 = vmul.f32 %v1100, %v1100
      %v1313 = vmul.f32 %v1101, %v1101
      %v1314 = vmul.f32 %v1102, %v1102
      %v1315 = vmul.f32 %v1103, %v1103
      %v1316 = vmul.f32 %v1104, %v1104
      %v1317 = vmul.f32 %v1105, %v1105
      %v1318 = vmul.f32 %v1106, %v1106
      %v1319 = vmul.f32 %v1107, %v1107
      %1320 = vmatprep.subr.mxu0 %v1289
      %1321 = vmatpush1.msra.mxu0 %v1288
      %1322 = vmatprep.subr.mxu0 %v1293
      %1323 = vmatpush1.msra.mxu0 %v1292
      %1324 = vmatprep.subr.mxu0 %v1297
      %1325 = vmatpush1.msra.mxu0 %v1296
      %1326 = vmatprep.subr.mxu0 %v1301
      %1327 = vmatpush1.msra.mxu0 %v1300
      %1328 = vmatprep.subr.mxu0 %v1305
      %1329 = vmatpush1.msra.mxu0 %v1304
      %1330 = vmatprep.subr.mxu0 %v1309
      %1331 = vmatpush1.msra.mxu0 %v1308
      %1332 = vmatprep.subr.mxu0 %v1313
      %1333 = vmatpush1.msra.mxu0 %v1312
      %1334 = vmatprep.subr.mxu0 %v1317
      %1335 = vmatpush1.msra.mxu0 %v1316
      %1336 = vmatprep.subr.mxu0 0.0
      %1337 = vmatpush1.msra.mxu0 0.0
      %1338 = vmatprep.subr.mxu0 0.0
      %1339 = vmatpush1.msra.mxu0 0.0
      %1340 = vmatprep.subr.mxu0 0.0
      %1341 = vmatpush1.msra.mxu0 0.0
      %1342 = vmatprep.subr.mxu0 0.0
      %1343 = vmatpush1.msra.mxu0 0.0
      %1344 = vmatprep.subr.mxu0 0.0
      %1345 = vmatpush1.msra.mxu0 0.0
      %1346 = vmatprep.subr.mxu0 0.0
      %1347 = vmatpush1.msra.mxu0 0.0
      %1348 = vmatprep.subr.mxu0 0.0
      %1349 = vmatpush1.msra.mxu0 0.0
      %1350 = vmatprep.subr.mxu0 0.0
      %1351 = vmatpush1.msra.mxu0 0.0
      %1352 = vmatprep.subr.mxu0 0.0
      %1353 = vmatpush1.msra.mxu0 0.0
      %1354 = vmatprep.subr.mxu0 0.0
      %1355 = vmatpush1.msra.mxu0 0.0
      %1356 = vmatprep.subr.mxu0 0.0
      %1357 = vmatpush1.msra.mxu0 0.0
      %1358 = vmatprep.subr.mxu0 0.0
      %1359 = vmatpush1.msra.mxu0 0.0
      %1360 = vmatprep.subr.mxu0 0.0
      %1361 = vmatpush1.msra.mxu0 0.0
      %1362 = vmatprep.subr.mxu0 0.0
      %1363 = vmatpush1.msra.mxu0 0.0
      %1364 = vmatprep.subr.mxu0 0.0
      %1365 = vmatpush1.msra.mxu0 0.0
      %1366 = vmatprep.subr.mxu0 0.0
      %1367 = vmatpush1.msra.mxu0 0.0
      %1368 = vmatprep.subr.mxu0 0.0
      %1369 = vmatpush1.msra.mxu0 0.0
      %1370 = vmatprep.subr.mxu0 0.0
      %1371 = vmatpush1.msra.mxu0 0.0
      %1372 = vmatprep.subr.mxu0 0.0
      %1373 = vmatpush1.msra.mxu0 0.0
      %1374 = vmatprep.subr.mxu0 0.0
      %1375 = vmatpush1.msra.mxu0 0.0
      %1376 = vmatprep.subr.mxu0 0.0
      %1377 = vmatpush1.msra.mxu0 0.0
      %1378 = vmatprep.subr.mxu0 0.0
      %1379 = vmatpush1.msra.mxu0 0.0
      %1380 = vmatprep.subr.mxu0 0.0
      %1381 = vmatpush1.msra.mxu0 0.0
      %1382 = vmatprep.subr.mxu0 0.0
      %1383 = vmatpush1.msra.mxu0 0.0
      %1384 = vmatprep.mubr.f32.mxu0 0.0
      %1385 = vmatmul.mubr.f32.gmra.mrb[0].mxu0 %v1110
      %v1386 = vpop.f32.mrb[0].mxu0
      %v1387 = vadd.f32 0.0, %v1386
      %v1388 = vpop.f32.mrb[0].mxu0
      %v1389 = vadd.f32 0.0, %v1388
      %1390 = vdwg.mxu0
      %1391 = vmatprep.subr.mxu0 %v1291
      %1392 = vmatpush1.msra.mxu0 %v1290
      %1393 = vmatprep.subr.mxu0 %v1295
      %1394 = vmatpush1.msra.mxu0 %v1294
      %1395 = vmatprep.subr.mxu0 %v1299
      %1396 = vmatpush1.msra.mxu0 %v1298
      %1397 = vmatprep.subr.mxu0 %v1303
      %1398 = vmatpush1.msra.mxu0 %v1302
      %1399 = vmatprep.subr.mxu0 %v1307
      %1400 = vmatpush1.msra.mxu0 %v1306
      %1401 = vmatprep.subr.mxu0 %v1311
      %1402 = vmatpush1.msra.mxu0 %v1310
      %1403 = vmatprep.subr.mxu0 %v1315
      %1404 = vmatpush1.msra.mxu0 %v1314
      %1405 = vmatprep.subr.mxu0 %v1319
      %1406 = vmatpush1.msra.mxu0 %v1318
      %1407 = vmatprep.subr.mxu0 0.0
      %1408 = vmatpush1.msra.mxu0 0.0
      %1409 = vmatprep.subr.mxu0 0.0
      %1410 = vmatpush1.msra.mxu0 0.0
      %1411 = vmatprep.subr.mxu0 0.0
      %1412 = vmatpush1.msra.mxu0 0.0
      %1413 = vmatprep.subr.mxu0 0.0
      %1414 = vmatpush1.msra.mxu0 0.0
      %1415 = vmatprep.subr.mxu0 0.0
      %1416 = vmatpush1.msra.mxu0 0.0
      %1417 = vmatprep.subr.mxu0 0.0
      %1418 = vmatpush1.msra.mxu0 0.0
      %1419 = vmatprep.subr.mxu0 0.0
      %1420 = vmatpush1.msra.mxu0 0.0
      %1421 = vmatprep.subr.mxu0 0.0
      %1422 = vmatpush1.msra.mxu0 0.0
      %1423 = vmatprep.subr.mxu0 0.0
      %1424 = vmatpush1.msra.mxu0 0.0
      %1425 = vmatprep.subr.mxu0 0.0
      %1426 = vmatpush1.msra.mxu0 0.0
      %1427 = vmatprep.subr.mxu0 0.0
      %1428 = vmatpush1.msra.mxu0 0.0
      %1429 = vmatprep.subr.mxu0 0.0
      %1430 = vmatpush1.msra.mxu0 0.0
      %1431 = vmatprep.subr.mxu0 0.0
      %1432 = vmatpush1.msra.mxu0 0.0
      %1433 = vmatprep.subr.mxu0 0.0
      %1434 = vmatpush1.msra.mxu0 0.0
      %1435 = vmatprep.subr.mxu0 0.0
      %1436 = vmatpush1.msra.mxu0 0.0
      %1437 = vmatprep.subr.mxu0 0.0
      %1438 = vmatpush1.msra.mxu0 0.0
      %1439 = vmatprep.subr.mxu0 0.0
      %1440 = vmatpush1.msra.mxu0 0.0
      %1441 = vmatprep.subr.mxu0 0.0
      %1442 = vmatpush1.msra.mxu0 0.0
      %1443 = vmatprep.subr.mxu0 0.0
      %1444 = vmatpush1.msra.mxu0 0.0
      %1445 = vmatprep.subr.mxu0 0.0
      %1446 = vmatpush1.msra.mxu0 0.0
      %1447 = vmatprep.subr.mxu0 0.0
      %1448 = vmatpush1.msra.mxu0 0.0
      %1449 = vmatprep.subr.mxu0 0.0
      %1450 = vmatpush1.msra.mxu0 0.0
      %1451 = vmatprep.subr.mxu0 0.0
      %1452 = vmatpush1.msra.mxu0 0.0
      %1453 = vmatprep.subr.mxu0 0.0
      %1454 = vmatpush1.msra.mxu0 0.0
      %1455 = vmatprep.mubr.f32.mxu0 0.0
      %1456 = vmatmul.mubr.f32.gmra.mrb[0].mxu0 %v1110
      %v1457 = vpop.f32.mrb[0].mxu0
      %v1458 = vadd.f32 0.0, %v1457
      %v1459 = vpop.f32.mrb[0].mxu0
      %v1460 = vadd.f32 0.0, %v1459
      %1461 = vdwg.mxu0
      %v1466 = vcombine.low %v1387, %v1389
      %v1467 = vcombine.low %v1458, %v1460
      %v1469 = vunpack.c.l.s4 1966171168
      %v1470 = vunpack.c.0.s8 %v1469
      %v1471 = vlaneseq
      %v1472 = vshrl.u32 %v1471, 7
      %v1473 = vsub.s32 %v1470, %v1472
      %v1474 = vrot.slane %v1466, %v1473
      %v1476 = vunpack.c.l.s4 1966171168
      %v1477 = vunpack.c.0.s8 %v1476
      %v1478 = vlaneseq
      %v1479 = vshrl.u32 %v1478, 7
      %v1480 = vsub.s32 %v1477, %v1479
      %v1481 = vrot.slane %v1467, %v1480
      %v1482 = vcombine.low %v1474, %v1481
      %v1484 = vunpack.c.l.s4 1966171168
      %v1485 = vunpack.c.0.s8 %v1484
      %v1486 = vlaneseq
      %v1487 = vshrl.u32 %v1486, 7
      %v1488 = vsub.s32 %v1485, %v1487
      %v1489 = vrot.slane %v1482, %v1488
      %1491 = vst.msk [vmem:[%s307] sm:$0xf] %vm1286, %v1489
      %s1492 = smul.u32 8, %s19
      %p1493 = scmp.lt.s32.totalorder %s1492, 55
      %s1494 = scalar_select %p1493, %s1492, 55
      %s1495 = smul.addr %s1494, 4
      %s1496 = smul.addr %s1495, 4
      %s1497 = scalar_lea.vmem %s5, %s1496
      %p1498 = scmp.lt.s32.totalorder %s19, 6
      %s1499 = scalar_select %p1498, %s19, 6
      %s1500 = smul.addr %s1499, 4
      %s1501 = scalar_lea.vmem %s6, %s1500
      %p1502 = scmp.lt.s32.totalorder %s19, 6
      %s1503 = scalar_select %p1502, %s19, 6
      %s1504 = smul.addr %s1503, 4
      %s1505 = scalar_lea.vmem %s7, %s1504
      // Predicated region
      $region41: #{pointnet_forward.6} parent=39 // pred_check
        %p1506 = pneg %p147
      $region42: #{pointnet_forward.6} parent=39 // pred_check_branch
        %1508 = sbr.rel (%p1506) target = $region44
      $region43: #{pointnet_forward.6} parent=39 // pred_region
        %s1509 = smul.u32 8, %s19
      $region44: #{pointnet_forward.6} parent=39 // pred_fallthru
        _
      // Predicated region
      $region45: #{pointnet_forward.6} parent=39 // pred_check
        %p1510 = pneg %p173
      $region46: #{pointnet_forward.6} parent=39 // pred_check_branch
        %1512 = sbr.rel (%p1510) target = $region48
      $region47: #{pointnet_forward.6} parent=39 // pred_region
        _
      $region48: #{pointnet_forward.6} parent=39 // pred_fallthru
        _
      // Predicated region
      $region49: #{pointnet_forward.6} parent=39 // pred_check
        %p1513 = pneg %p199
      $region50: #{pointnet_forward.6} parent=39 // pred_check_branch
        %1515 = sbr.rel (%p1513) target = $region52
      $region51: #{pointnet_forward.6} parent=39 // pred_region
        _
      $region52: #{pointnet_forward.6} parent=39 // pred_fallthru
        _
    $region40: #{pointnet_forward.6} parent=5 // pred_fallthru
      _
    %p1516 = scmp.le.s32.totalorder 2, %s14
    // Predicated region
    $region53: #{pointnet_forward.6} parent=5 // pred_check
      %p1517 = pneg %p1516
    $region54: #{pointnet_forward.6} parent=5 // pred_check_branch
      %1519 = sbr.rel (%p1517) target = $region56
    $region55: #{pointnet_forward.6} parent=5 // pred_region
      %s1520 = ssub.s32 %s14, 2
      // Predicated region
      $region57: #{pointnet_forward.6} parent=55 // pred_check
        %p1521 = pneg %p153
      $region58: #{pointnet_forward.6} parent=55 // pred_check_branch
        %1523 = sbr.rel (%p1521) target = $region60
      $region59: #{pointnet_forward.6} parent=55 // pred_region
        %s1524 = smul.u32 8, %s20
        %p1525 = scmp.lt.s32.totalorder %s1524, 55
        %s1526 = scalar_select %p1525, %s1524, 55
        %s1527 = smul.addr %s1526, 4
        %s1528 = smul.addr %s1527, 4
        %s1529 = scalar_lea.vmem %s5, %s1528
      $region60: #{pointnet_forward.6} parent=55 // pred_fallthru
        _
      // Predicated region
      $region61: #{pointnet_forward.6} parent=55 // pred_check
        %p1530 = pneg %p179
      $region62: #{pointnet_forward.6} parent=55 // pred_check_branch
        %1532 = sbr.rel (%p1530) target = $region64
      $region63: #{pointnet_forward.6} parent=55 // pred_region
        %p1533 = scmp.lt.s32.totalorder %s20, 6
        %s1534 = scalar_select %p1533, %s20, 6
        %s1535 = smul.addr %s1534, 4
        %s1536 = scalar_lea.vmem %s6, %s1535
      $region64: #{pointnet_forward.6} parent=55 // pred_fallthru
        _
      // Predicated region
      $region65: #{pointnet_forward.6} parent=55 // pred_check
        %p1537 = pneg %p205
      $region66: #{pointnet_forward.6} parent=55 // pred_check_branch
        %1539 = sbr.rel (%p1537) target = $region68
      $region67: #{pointnet_forward.6} parent=55 // pred_region
        %p1540 = scmp.lt.s32.totalorder %s20, 6
        %s1541 = scalar_select %p1540, %s20, 6
        %s1542 = smul.addr %s1541, 4
        %s1543 = scalar_lea.vmem %s7, %s1542
      $region68: #{pointnet_forward.6} parent=55 // pred_fallthru
        _
    $region56: #{pointnet_forward.6} parent=5 // pred_fallthru
      _
  $region6: #{pointnet_forward.6} parent=0 // loop_footer
    %s18 = sadd.s32 1, %s14
  $region7: #{pointnet_forward.6} parent=0 // loop_footer_branch
    %13 = sbr.rel target = $region3
  $region8: #{pointnet_forward.6} parent=0 // loop_exit
    _

// kernel: pointnet_forward.7
$region0: #{pointnet_forward.7}
  #allocation0 [shape = 'u32[]', space=smem, size = 0x4, offset = 0x4, fixed_abs, tag = 'smem constant byte address 0x4 - core index']
  #allocation1 [shape = 'u32[144,128]{1,0:T(1,128)}', space=vmem, size = 0x12000, scoped, tag = 'internal scratch']
  %s0 = inlined_call_operand.vmem [shape: bf16[448,512], index: 0, kind: input, shape index: {}]
  %s1 = inlined_call_operand.vmem [shape: f32[1,512], index: 1, kind: input, shape index: {}]
  %s2 = inlined_call_operand.vmem [shape: f32[1,512], index: 2, kind: input, shape index: {}]
  %s3 = inlined_call_operand.vmem [shape: bf16[512,128], index: 3, kind: input, shape index: {}]
  %s4 = inlined_call_operand.vmem [shape: f32[1,128], index: 4, kind: input, shape index: {}]
  %s5 = inlined_call_operand.vmem [shape: f32[448,128], index: 5, kind: output, shape index: {}]
  %s6 = sld [smem:[#allocation0]]
  $region53: #{pointnet_forward.7} parent=0
    _
  %s8 = ssub.s32 1, %s6
  %s9 = scalar_select 0, %s8, %s6
  loop: start=0, step=1, limit=9
  $region2: #{pointnet_forward.7} parent=0 // loop_pre_header
    _
  $region3: #{pointnet_forward.7} parent=0 // loop_header
    %s11 = sphi 0, %s15
    %p12 = scmp.ge.s32.totalorder %s11, 9
    %s21 = sphi 0, %s23
    %s24 = sphi 0, %s21
    %s25 = sphi 0, %s24
    %s41 = sphi 0, %s25
    %s45 = sphi 0, %s45
    %s47 = sphi 0, %s45
    %s48 = sphi 0, %s47
    %s62 = sphi 0, %s48
    %s66 = sphi 0, %s66
    %s68 = sphi 0, %s66
    %s69 = sphi 0, %s68
    %s83 = sphi 0, %s69
    %s87 = sphi 0, %s87
    %s89 = sphi 0, %s87
    %s90 = sphi 0, %s89
    %s104 = sphi 0, %s90
    %s108 = sphi 0, %s108
    %s110 = sphi 0, %s108
    %s111 = sphi 0, %s110
    %s125 = sphi 0, %s111
    %s131 = sphi 0, %s133
    %s134 = sphi 0, %s131
    %s135 = sphi 0, %s134
    %s151 = sphi 0, %s135
  $region4: #{pointnet_forward.7} parent=0 // loop_header_branch
    %14 = sbr.rel (%p12) target = $region8
  $region5: #{pointnet_forward.7} parent=0 // loop_body
    %s16 = ssub.s32 %s11, 1
    %s17 = ssub.s32 %s11, 2
    %s18 = sadd.s32 %s11, 1
    %s19 = ssub.s32 %s11, %s18
    %p20 = scmp.eq.s32.totalorder %s19, 0
    %s22 = sadd.s32 %s21, 1
    %s23 = scalar_select %p20, %s21, %s22
    %p26 = pneg %p20
    %p27 = scmp.eq.s32.totalorder %s11, 6
    %p28 = por %p26, %p27
    %p29 = scmp.ne.s32.totalorder %s21, %s24
    %p30 = scmp.eq.s32.totalorder %s11, 0
    %p31 = por %p29, %p30
    %p32 = scmp.ne.s32.totalorder %s21, %s24
    %p33 = scmp.eq.s32.totalorder %s16, 6
    %p34 = por %p32, %p33
    %p35 = scmp.ne.s32.totalorder %s24, %s25
    %p36 = scmp.eq.s32.totalorder %s16, 0
    %p37 = por %p35, %p36
    %p38 = scmp.ne.s32.totalorder %s24, %s25
    %p39 = scmp.eq.s32.totalorder %s17, 6
    %p40 = por %p38, %p39
    %p42 = scmp.ne.s32.totalorder %s25, %s41
    %p43 = scmp.eq.s32.totalorder %s17, 0
    %p44 = por %p42, %p43
    %s46 = sadd.s32 %s45, 1
    %p49 = scmp.eq.s32.totalorder %s11, 6
    %p50 = scmp.ne.s32.totalorder %s45, %s47
    %p51 = scmp.eq.s32.totalorder %s11, 0
    %p52 = por %p50, %p51
    %p53 = scmp.ne.s32.totalorder %s45, %s47
    %p54 = scmp.eq.s32.totalorder %s16, 6
    %p55 = por %p53, %p54
    %p56 = scmp.ne.s32.totalorder %s47, %s48
    %p57 = scmp.eq.s32.totalorder %s16, 0
    %p58 = por %p56, %p57
    %p59 = scmp.ne.s32.totalorder %s47, %s48
    %p60 = scmp.eq.s32.totalorder %s17, 6
    %p61 = por %p59, %p60
    %p63 = scmp.ne.s32.totalorder %s48, %s62
    %p64 = scmp.eq.s32.totalorder %s17, 0
    %p65 = por %p63, %p64
    %s67 = sadd.s32 %s66, 1
    %p70 = scmp.eq.s32.totalorder %s11, 6
    %p71 = scmp.ne.s32.totalorder %s66, %s68
    %p72 = scmp.eq.s32.totalorder %s11, 0
    %p73 = por %p71, %p72
    %p74 = scmp.ne.s32.totalorder %s66, %s68
    %p75 = scmp.eq.s32.totalorder %s16, 6
    %p76 = por %p74, %p75
    %p77 = scmp.ne.s32.totalorder %s68, %s69
    %p78 = scmp.eq.s32.totalorder %s16, 0
    %p79 = por %p77, %p78
    %p80 = scmp.ne.s32.totalorder %s68, %s69
    %p81 = scmp.eq.s32.totalorder %s17, 6
    %p82 = por %p80, %p81
    %p84 = scmp.ne.s32.totalorder %s69, %s83
    %p85 = scmp.eq.s32.totalorder %s17, 0
    %p86 = por %p84, %p85
    %s88 = sadd.s32 %s87, 1
    %p91 = scmp.eq.s32.totalorder %s11, 6
    %p92 = scmp.ne.s32.totalorder %s87, %s89
    %p93 = scmp.eq.s32.totalorder %s11, 0
    %p94 = por %p92, %p93
    %p95 = scmp.ne.s32.totalorder %s87, %s89
    %p96 = scmp.eq.s32.totalorder %s16, 6
    %p97 = por %p95, %p96
    %p98 = scmp.ne.s32.totalorder %s89, %s90
    %p99 = scmp.eq.s32.totalorder %s16, 0
    %p100 = por %p98, %p99
    %p101 = scmp.ne.s32.totalorder %s89, %s90
    %p102 = scmp.eq.s32.totalorder %s17, 6
    %p103 = por %p101, %p102
    %p105 = scmp.ne.s32.totalorder %s90, %s104
    %p106 = scmp.eq.s32.totalorder %s17, 0
    %p107 = por %p105, %p106
    %s109 = sadd.s32 %s108, 1
    %p112 = scmp.eq.s32.totalorder %s11, 6
    %p113 = scmp.ne.s32.totalorder %s108, %s110
    %p114 = scmp.eq.s32.totalorder %s11, 0
    %p115 = por %p113, %p114
    %p116 = scmp.ne.s32.totalorder %s108, %s110
    %p117 = scmp.eq.s32.totalorder %s16, 6
    %p118 = por %p116, %p117
    %p119 = scmp.ne.s32.totalorder %s110, %s111
    %p120 = scmp.eq.s32.totalorder %s16, 0
    %p121 = por %p119, %p120
    %p122 = scmp.ne.s32.totalorder %s110, %s111
    %p123 = scmp.eq.s32.totalorder %s17, 6
    %p124 = por %p122, %p123
    %p126 = scmp.ne.s32.totalorder %s111, %s125
    %p127 = scmp.eq.s32.totalorder %s17, 0
    %p128 = por %p126, %p127
    %s129 = ssub.s32 %s11, %s18
    %p130 = scmp.eq.s32.totalorder %s129, 0
    %s132 = sadd.s32 %s131, 1
    %s133 = scalar_select %p130, %s131, %s132
    %p136 = pneg %p130
    %p137 = scmp.eq.s32.totalorder %s11, 6
    %p138 = por %p136, %p137
    %p139 = scmp.ne.s32.totalorder %s131, %s134
    %p140 = scmp.eq.s32.totalorder %s11, 0
    %p141 = por %p139, %p140
    %p142 = scmp.ne.s32.totalorder %s131, %s134
    %p143 = scmp.eq.s32.totalorder %s16, 6
    %p144 = por %p142, %p143
    %p145 = scmp.ne.s32.totalorder %s134, %s135
    %p146 = scmp.eq.s32.totalorder %s16, 0
    %p147 = por %p145, %p146
    %p148 = scmp.ne.s32.totalorder %s134, %s135
    %p149 = scmp.eq.s32.totalorder %s17, 6
    %p150 = por %p148, %p149
    %p152 = scmp.ne.s32.totalorder %s135, %s151
    %p153 = scmp.eq.s32.totalorder %s17, 0
    %p154 = por %p152, %p153
    %p155 = scmp.le.s32.totalorder 1, %s11
    %p156 = scmp.lt.s32.totalorder %s11, 8
    %p157 = pnand %p155, %p156
    %p158 = pneg %p157
    // Predicated region
    $region9: #{pointnet_forward.7} parent=5 // pred_check
      _
    $region10: #{pointnet_forward.7} parent=5 // pred_check_branch
      %160 = sbr.rel (%p157) target = $region12
    $region11: #{pointnet_forward.7} parent=5 // pred_region
      %s161 = ssub.s32 %s11, 1
      // Predicated region
      $region13: #{pointnet_forward.7} parent=11 // pred_check
        %p162 = pneg %p58
      $region14: #{pointnet_forward.7} parent=11 // pred_check_branch
        %164 = sbr.rel (%p162) target = $region16
      $region15: #{pointnet_forward.7} parent=11 // pred_region
        _
      $region16: #{pointnet_forward.7} parent=11 // pred_fallthru
        _
      // Predicated region
      $region17: #{pointnet_forward.7} parent=11 // pred_check
        %p165 = pneg %p79
      $region18: #{pointnet_forward.7} parent=11 // pred_check_branch
        %167 = sbr.rel (%p165) target = $region20
      $region19: #{pointnet_forward.7} parent=11 // pred_region
        _
      $region20: #{pointnet_forward.7} parent=11 // pred_fallthru
        _
      // Predicated region
      $region21: #{pointnet_forward.7} parent=11 // pred_check
        %p168 = pneg %p100
      $region22: #{pointnet_forward.7} parent=11 // pred_check_branch
        %170 = sbr.rel (%p168) target = $region24
      $region23: #{pointnet_forward.7} parent=11 // pred_region
        _
      $region24: #{pointnet_forward.7} parent=11 // pred_fallthru
        _
      // Predicated region
      $region25: #{pointnet_forward.7} parent=11 // pred_check
        %p171 = pneg %p121
      $region26: #{pointnet_forward.7} parent=11 // pred_check_branch
        %173 = sbr.rel (%p171) target = $region28
      $region27: #{pointnet_forward.7} parent=11 // pred_region
        _
      $region28: #{pointnet_forward.7} parent=11 // pred_fallthru
        _
    $region12: #{pointnet_forward.7} parent=5 // pred_fallthru
      _
    %p174 = scmp.lt.s32.totalorder %s11, 7
    // Predicated region
    $region29: #{pointnet_forward.7} parent=5 // pred_check
      %p175 = pneg %p174
    $region30: #{pointnet_forward.7} parent=5 // pred_check_branch
      %177 = sbr.rel (%p175) target = $region32
    $region31: #{pointnet_forward.7} parent=5 // pred_region
      // Predicated region
      $region33: #{pointnet_forward.7} parent=31 // pred_check
        %p178 = pneg %p31
      $region34: #{pointnet_forward.7} parent=31 // pred_check_branch
        %180 = sbr.rel (%p178) target = $region36
      $region35: #{pointnet_forward.7} parent=31 // pred_region
        %s181 = smul.u32 8, %s11
        %p182 = scmp.lt.s32.totalorder %s181, 55
        %s183 = scalar_select %p182, %s181, 55
        %s184 = smul.addr %s183, 4
        %s185 = smul.addr %s184, 4
        %s186 = scalar_lea.vmem %s0, %s185
        %s187 = smul.u32 8, %s11
      $region36: #{pointnet_forward.7} parent=31 // pred_fallthru
        _
    $region32: #{pointnet_forward.7} parent=5 // pred_fallthru
      _
    %p188 = scmp.le.s32.totalorder 1, %s11
    %p189 = scmp.lt.s32.totalorder %s11, 8
    %p190 = pnand %p188, %p189
    %p191 = pneg %p190
    // Predicated region
    $region37: #{pointnet_forward.7} parent=5 // pred_check
      _
    $region38: #{pointnet_forward.7} parent=5 // pred_check_branch
      %193 = sbr.rel (%p190) target = $region40
    $region39: #{pointnet_forward.7} parent=5 // pred_region
      %s194 = ssub.s32 %s11, 1
      %s195 = smul.u32 8, %s16
      %p196 = scmp.lt.s32.totalorder %s195, 55
      %s197 = scalar_select %p196, %s195, 55
      %s198 = smul.addr %s197, 4
      %s199 = smul.addr %s198, 4
      %s200 = scalar_lea.vmem %s0, %s199
      %p201 = pneg %p37
      %p202 = pneg %p34
      %p203 = pneg %p58
      %p204 = pneg %p55
      %p205 = pneg %p79
      %p206 = pneg %p76
      %p207 = pneg %p100
      %p208 = pneg %p97
      %p209 = pneg %p121
      %p210 = pneg %p118
      %p211 = pneg %p147
      %p212 = pneg %p144
      %s213 = smul.u32 8, %s16
      %p214 = scmp.lt.s32.totalorder %s213, 55
      %s215 = scalar_select %p214, %s213, 55
      %s216 = smul.addr %s215, 8
      %s217 = scalar_lea.vmem %s5, %s216
      %s218 = smul.u32 8, %s16
      %p219 = scmp.lt.s32.totalorder %s218, 55
      %s220 = scalar_select %p219, %s218, 55
      %s221 = smul.addr %s220, 4
      %s222 = smul.addr %s221, 4
      %s223 = scalar_lea.vmem %s0, %s222
      %s224 = smul.u32 8, %s16
      %s225 = smul.u32 8, %s16
      %p226 = scmp.lt.s32.totalorder %s225, 55
      %s227 = scalar_select %p226, %s225, 55
      %s228 = smul.addr %s227, 8
      %s229 = scalar_lea.vmem %s5, %s228
      %s230 = smul.u32 8, %s16
      %v232 = vld [vmem:[%s223] sm:$0xff]
      %v233 = vld [vmem:[%s223 + $0x8] sm:$0xff]
      %v234 = vld [vmem:[%s223 + $0x10] sm:$0xff]
      %v235 = vld [vmem:[%s223 + $0x18] sm:$0xff]
      %v236 = vld [vmem:[%s223 + $0x20] sm:$0xff]
      %v237 = vld [vmem:[%s223 + $0x28] sm:$0xff]
      %v238 = vld [vmem:[%s223 + $0x30] sm:$0xff]
      %v239 = vld [vmem:[%s223 + $0x38] sm:$0xff]
      %v240 = vld [vmem:[%s223 + $0x40] sm:$0xff]
      %v241 = vld [vmem:[%s223 + $0x48] sm:$0xff]
      %v242 = vld [vmem:[%s223 + $0x50] sm:$0xff]
      %v243 = vld [vmem:[%s223 + $0x58] sm:$0xff]
      %v244 = vld [vmem:[%s223 + $0x60] sm:$0xff]
      %v245 = vld [vmem:[%s223 + $0x68] sm:$0xff]
      %v246 = vld [vmem:[%s223 + $0x70] sm:$0xff]
      %v247 = vld [vmem:[%s223 + $0x78] sm:$0xff]
      %v248 = vunpack.c.l.bf16 %v232
      %v249 = vunpack.c.h.bf16 %v232
      %v250 = vunpack.c.l.bf16 %v233
      %v251 = vunpack.c.h.bf16 %v233
      %v252 = vunpack.c.l.bf16 %v234
      %v253 = vunpack.c.h.bf16 %v234
      %v254 = vunpack.c.l.bf16 %v235
      %v255 = vunpack.c.h.bf16 %v235
      %v256 = vunpack.c.l.bf16 %v236
      %v257 = vunpack.c.h.bf16 %v236
      %v258 = vunpack.c.l.bf16 %v237
      %v259 = vunpack.c.h.bf16 %v237
      %v260 = vunpack.c.l.bf16 %v238
      %v261 = vunpack.c.h.bf16 %v238
      %v262 = vunpack.c.l.bf16 %v239
      %v263 = vunpack.c.h.bf16 %v239
      %v264 = vunpack.c.l.bf16 %v240
      %v265 = vunpack.c.h.bf16 %v240
      %v266 = vunpack.c.l.bf16 %v241
      %v267 = vunpack.c.h.bf16 %v241
      %v268 = vunpack.c.l.bf16 %v242
      %v269 = vunpack.c.h.bf16 %v242
      %v270 = vunpack.c.l.bf16 %v243
      %v271 = vunpack.c.h.bf16 %v243
      %v272 = vunpack.c.l.bf16 %v244
      %v273 = vunpack.c.h.bf16 %v244
      %v274 = vunpack.c.l.bf16 %v245
      %v275 = vunpack.c.h.bf16 %v245
      %v276 = vunpack.c.l.bf16 %v246
      %v277 = vunpack.c.h.bf16 %v246
      %v278 = vunpack.c.l.bf16 %v247
      %v279 = vunpack.c.h.bf16 %v247
      %v280 = vld [vmem:[%s1] sm:$0xf]
      %v282 = vlaneseq
      %v283 = vshrl.u32 %v282, 7
      %v284 = vsub.s32 0, %v283
      %v285 = vrot.slane %v280, %v284
      %v286 = vlaneseq
      %v287 = vshrl.u32 %v286, 7
      %v288 = vsub.s32 1, %v287
      %v289 = vrot.slane %v280, %v288
      %v290 = vlaneseq
      %v291 = vshrl.u32 %v290, 7
      %v292 = vsub.s32 2, %v291
      %v293 = vrot.slane %v280, %v292
      %v294 = vlaneseq
      %v295 = vshrl.u32 %v294, 7
      %v296 = vsub.s32 3, %v295
      %v297 = vrot.slane %v280, %v296
      %v302 = vmul.f32 %v248, %v285
      %v303 = vmul.f32 %v249, %v289
      %v304 = vmul.f32 %v250, %v293
      %v305 = vmul.f32 %v251, %v297
      %v306 = vmul.f32 %v252, %v285
      %v307 = vmul.f32 %v253, %v289
      %v308 = vmul.f32 %v254, %v293
      %v309 = vmul.f32 %v255, %v297
      %v310 = vmul.f32 %v256, %v285
      %v311 = vmul.f32 %v257, %v289
      %v312 = vmul.f32 %v258, %v293
      %v313 = vmul.f32 %v259, %v297
      %v314 = vmul.f32 %v260, %v285
      %v315 = vmul.f32 %v261, %v289
      %v316 = vmul.f32 %v262, %v293
      %v317 = vmul.f32 %v263, %v297
      %v318 = vmul.f32 %v264, %v285
      %v319 = vmul.f32 %v265, %v289
      %v320 = vmul.f32 %v266, %v293
      %v321 = vmul.f32 %v267, %v297
      %v322 = vmul.f32 %v268, %v285
      %v323 = vmul.f32 %v269, %v289
      %v324 = vmul.f32 %v270, %v293
      %v325 = vmul.f32 %v271, %v297
      %v326 = vmul.f32 %v272, %v285
      %v327 = vmul.f32 %v273, %v289
      %v328 = vmul.f32 %v274, %v293
      %v329 = vmul.f32 %v275, %v297
      %v330 = vmul.f32 %v276, %v285
      %v331 = vmul.f32 %v277, %v289
      %v332 = vmul.f32 %v278, %v293
      %v333 = vmul.f32 %v279, %v297
      %v334 = vld [vmem:[%s2] sm:$0xf]
      %v336 = vlaneseq
      %v337 = vshrl.u32 %v336, 7
      %v338 = vsub.s32 0, %v337
      %v339 = vrot.slane %v334, %v338
      %v340 = vlaneseq
      %v341 = vshrl.u32 %v340, 7
      %v342 = vsub.s32 1, %v341
      %v343 = vrot.slane %v334, %v342
      %v344 = vlaneseq
      %v345 = vshrl.u32 %v344, 7
      %v346 = vsub.s32 2, %v345
      %v347 = vrot.slane %v334, %v346
      %v348 = vlaneseq
      %v349 = vshrl.u32 %v348, 7
      %v350 = vsub.s32 3, %v349
      %v351 = vrot.slane %v334, %v350
      %v356 = vadd.f32 %v302, %v339
      %v357 = vadd.f32 %v303, %v343
      %v358 = vadd.f32 %v304, %v347
      %v359 = vadd.f32 %v305, %v351
      %v360 = vadd.f32 %v306, %v339
      %v361 = vadd.f32 %v307, %v343
      %v362 = vadd.f32 %v308, %v347
      %v363 = vadd.f32 %v309, %v351
      %v364 = vadd.f32 %v310, %v339
      %v365 = vadd.f32 %v311, %v343
      %v366 = vadd.f32 %v312, %v347
      %v367 = vadd.f32 %v313, %v351
      %v368 = vadd.f32 %v314, %v339
      %v369 = vadd.f32 %v315, %v343
      %v370 = vadd.f32 %v316, %v347
      %v371 = vadd.f32 %v317, %v351
      %v372 = vadd.f32 %v318, %v339
      %v373 = vadd.f32 %v319, %v343
      %v374 = vadd.f32 %v320, %v347
      %v375 = vadd.f32 %v321, %v351
      %v376 = vadd.f32 %v322, %v339
      %v377 = vadd.f32 %v323, %v343
      %v378 = vadd.f32 %v324, %v347
      %v379 = vadd.f32 %v325, %v351
      %v380 = vadd.f32 %v326, %v339
      %v381 = vadd.f32 %v327, %v343
      %v382 = vadd.f32 %v328, %v347
      %v383 = vadd.f32 %v329, %v351
      %v384 = vadd.f32 %v330, %v339
      %v385 = vadd.f32 %v331, %v343
      %v386 = vadd.f32 %v332, %v347
      %v387 = vadd.f32 %v333, %v351
      %v388 = vmax.f32 %v356, 0.0
      %v389 = vmax.f32 %v357, 0.0
      %v390 = vmax.f32 %v358, 0.0
      %v391 = vmax.f32 %v359, 0.0
      %v392 = vmax.f32 %v360, 0.0
      %v393 = vmax.f32 %v361, 0.0
      %v394 = vmax.f32 %v362, 0.0
      %v395 = vmax.f32 %v363, 0.0
      %v396 = vmax.f32 %v364, 0.0
      %v397 = vmax.f32 %v365, 0.0
      %v398 = vmax.f32 %v366, 0.0
      %v399 = vmax.f32 %v367, 0.0
      %v400 = vmax.f32 %v368, 0.0
      %v401 = vmax.f32 %v369, 0.0
      %v402 = vmax.f32 %v370, 0.0
      %v403 = vmax.f32 %v371, 0.0
      %v404 = vmax.f32 %v372, 0.0
      %v405 = vmax.f32 %v373, 0.0
      %v406 = vmax.f32 %v374, 0.0
      %v407 = vmax.f32 %v375, 0.0
      %v408 = vmax.f32 %v376, 0.0
      %v409 = vmax.f32 %v377, 0.0
      %v410 = vmax.f32 %v378, 0.0
      %v411 = vmax.f32 %v379, 0.0
      %v412 = vmax.f32 %v380, 0.0
      %v413 = vmax.f32 %v381, 0.0
      %v414 = vmax.f32 %v382, 0.0
      %v415 = vmax.f32 %v383, 0.0
      %v416 = vmax.f32 %v384, 0.0
      %v417 = vmax.f32 %v385, 0.0
      %v418 = vmax.f32 %v386, 0.0
      %v419 = vmax.f32 %v387, 0.0
      %v420 = vpack.c.bf16 %v392, %v388
      %v421 = vpack.c.bf16 %v393, %v389
      %v422 = vpack.c.bf16 %v394, %v390
      %v423 = vpack.c.bf16 %v395, %v391
      %v424 = vpack.c.bf16 %v400, %v396
      %v425 = vpack.c.bf16 %v401, %v397
      %v426 = vpack.c.bf16 %v402, %v398
      %v427 = vpack.c.bf16 %v403, %v399
      %v428 = vpack.c.bf16 %v408, %v404
      %v429 = vpack.c.bf16 %v409, %v405
      %v430 = vpack.c.bf16 %v410, %v406
      %v431 = vpack.c.bf16 %v411, %v407
      %v432 = vpack.c.bf16 %v416, %v412
      %v433 = vpack.c.bf16 %v417, %v413
      %v434 = vpack.c.bf16 %v418, %v414
      %v435 = vpack.c.bf16 %v419, %v415
      %v436 = vld [vmem:[%s3] sm:$0xf]
      %v437 = vld [vmem:[%s3 + $0x4] sm:$0xf]
      %v438 = vld [vmem:[%s3 + $0x8] sm:$0xf]
      %v439 = vld [vmem:[%s3 + $0xc] sm:$0xf]
      %v440 = vld [vmem:[%s3 + $0x10] sm:$0xf]
      %v441 = vld [vmem:[%s3 + $0x14] sm:$0xf]
      %v442 = vld [vmem:[%s3 + $0x18] sm:$0xf]
      %v443 = vld [vmem:[%s3 + $0x1c] sm:$0xf]
      %v444 = vld [vmem:[%s3 + $0x20] sm:$0xf]
      %v445 = vld [vmem:[%s3 + $0x24] sm:$0xf]
      %v446 = vld [vmem:[%s3 + $0x28] sm:$0xf]
      %v447 = vld [vmem:[%s3 + $0x2c] sm:$0xf]
      %v448 = vld [vmem:[%s3 + $0x30] sm:$0xf]
      %v449 = vld [vmem:[%s3 + $0x34] sm:$0xf]
      %v450 = vld [vmem:[%s3 + $0x38] sm:$0xf]
      %v451 = vld [vmem:[%s3 + $0x3c] sm:$0xf]
      %v452 = vld [vmem:[%s3 + $0x40] sm:$0xf]
      %v453 = vld [vmem:[%s3 + $0x44] sm:$0xf]
      %v454 = vld [vmem:[%s3 + $0x48] sm:$0xf]
      %v455 = vld [vmem:[%s3 + $0x4c] sm:$0xf]
      %v456 = vld [vmem:[%s3 + $0x50] sm:$0xf]
      %v457 = vld [vmem:[%s3 + $0x54] sm:$0xf]
      %v458 = vld [vmem:[%s3 + $0x58] sm:$0xf]
      %v459 = vld [vmem:[%s3 + $0x5c] sm:$0xf]
      %v460 = vld [vmem:[%s3 + $0x60] sm:$0xf]
      %v461 = vld [vmem:[%s3 + $0x64] sm:$0xf]
      %v462 = vld [vmem:[%s3 + $0x68] sm:$0xf]
      %v463 = vld [vmem:[%s3 + $0x6c] sm:$0xf]
      %v464 = vld [vmem:[%s3 + $0x70] sm:$0xf]
      %v465 = vld [vmem:[%s3 + $0x74] sm:$0xf]
      %v466 = vld [vmem:[%s3 + $0x78] sm:$0xf]
      %v467 = vld [vmem:[%s3 + $0x7c] sm:$0xf]
      %v468 = vld [vmem:[%s3 + $0x80] sm:$0xf]
      %v469 = vld [vmem:[%s3 + $0x84] sm:$0xf]
      %v470 = vld [vmem:[%s3 + $0x88] sm:$0xf]
      %v471 = vld [vmem:[%s3 + $0x8c] sm:$0xf]
      %v472 = vld [vmem:[%s3 + $0x90] sm:$0xf]
      %v473 = vld [vmem:[%s3 + $0x94] sm:$0xf]
      %v474 = vld [vmem:[%s3 + $0x98] sm:$0xf]
      %v475 = vld [vmem:[%s3 + $0x9c] sm:$0xf]
      %v476 = vld [vmem:[%s3 + $0xa0] sm:$0xf]
      %v477 = vld [vmem:[%s3 + $0xa4] sm:$0xf]
      %v478 = vld [vmem:[%s3 + $0xa8] sm:$0xf]
      %v479 = vld [vmem:[%s3 + $0xac] sm:$0xf]
      %v480 = vld [vmem:[%s3 + $0xb0] sm:$0xf]
      %v481 = vld [vmem:[%s3 + $0xb4] sm:$0xf]
      %v482 = vld [vmem:[%s3 + $0xb8] sm:$0xf]
      %v483 = vld [vmem:[%s3 + $0xbc] sm:$0xf]
      %v484 = vld [vmem:[%s3 + $0xc0] sm:$0xf]
      %v485 = vld [vmem:[%s3 + $0xc4] sm:$0xf]
      %v486 = vld [vmem:[%s3 + $0xc8] sm:$0xf]
      %v487 = vld [vmem:[%s3 + $0xcc] sm:$0xf]
      %v488 = vld [vmem:[%s3 + $0xd0] sm:$0xf]
      %v489 = vld [vmem:[%s3 + $0xd4] sm:$0xf]
      %v490 = vld [vmem:[%s3 + $0xd8] sm:$0xf]
      %v491 = vld [vmem:[%s3 + $0xdc] sm:$0xf]
      %v492 = vld [vmem:[%s3 + $0xe0] sm:$0xf]
      %v493 = vld [vmem:[%s3 + $0xe4] sm:$0xf]
      %v494 = vld [vmem:[%s3 + $0xe8] sm:$0xf]
      %v495 = vld [vmem:[%s3 + $0xec] sm:$0xf]
      %v496 = vld [vmem:[%s3 + $0xf0] sm:$0xf]
      %v497 = vld [vmem:[%s3 + $0xf4] sm:$0xf]
      %v498 = vld [vmem:[%s3 + $0xf8] sm:$0xf]
      %v499 = vld [vmem:[%s3 + $0xfc] sm:$0xf]
      %v500 = vld [vmem:[%s4] sm:$0x1]
      %v502 = vlaneseq
      %v503 = vshrl.u32 %v502, 7
      %v504 = vsub.s32 0, %v503
      %v505 = vrot.slane %v500, %v504
      %v571 = vunpack.c.l.b16 %v436
      %v572 = vunpack.c.l.b16 %v437
      %v573 = vunpack.c.l.b16 %v438
      %v574 = vunpack.c.l.b16 %v439
      %v575 = vunpack.c.l.b16 %v440
      %v576 = vunpack.c.l.b16 %v441
      %v577 = vunpack.c.l.b16 %v442
      %v578 = vunpack.c.l.b16 %v443
      %v579 = vunpack.c.l.b16 %v444
      %v580 = vunpack.c.l.b16 %v445
      %v581 = vunpack.c.l.b16 %v446
      %v582 = vunpack.c.l.b16 %v447
      %v583 = vunpack.c.l.b16 %v448
      %v584 = vunpack.c.l.b16 %v449
      %v585 = vunpack.c.l.b16 %v450
      %v586 = vunpack.c.l.b16 %v451
      %v587 = vunpack.c.l.b16 %v452
      %v588 = vunpack.c.l.b16 %v453
      %v589 = vunpack.c.l.b16 %v454
      %v590 = vunpack.c.l.b16 %v455
      %v591 = vunpack.c.l.b16 %v456
      %v592 = vunpack.c.l.b16 %v457
      %v593 = vunpack.c.l.b16 %v458
      %v594 = vunpack.c.l.b16 %v459
      %v595 = vunpack.c.l.b16 %v460
      %v596 = vunpack.c.l.b16 %v461
      %v597 = vunpack.c.l.b16 %v462
      %v598 = vunpack.c.l.b16 %v463
      %v599 = vunpack.c.l.b16 %v464
      %v600 = vunpack.c.l.b16 %v465
      %v601 = vunpack.c.l.b16 %v466
      %v602 = vunpack.c.l.b16 %v467
      %v603 = vunpack.c.l.b16 %v468
      %v604 = vunpack.c.l.b16 %v469
      %v605 = vunpack.c.l.b16 %v470
      %v606 = vunpack.c.l.b16 %v471
      %v607 = vunpack.c.l.b16 %v472
      %v608 = vunpack.c.l.b16 %v473
      %v609 = vunpack.c.l.b16 %v474
      %v610 = vunpack.c.l.b16 %v475
      %v611 = vunpack.c.l.b16 %v476
      %v612 = vunpack.c.l.b16 %v477
      %v613 = vunpack.c.l.b16 %v478
      %v614 = vunpack.c.l.b16 %v479
      %v615 = vunpack.c.l.b16 %v480
      %v616 = vunpack.c.l.b16 %v481
      %v617 = vunpack.c.l.b16 %v482
      %v618 = vunpack.c.l.b16 %v483
      %v619 = vunpack.c.l.b16 %v484
      %v620 = vunpack.c.l.b16 %v485
      %v621 = vunpack.c.l.b16 %v486
      %v622 = vunpack.c.l.b16 %v487
      %v623 = vunpack.c.l.b16 %v488
      %v624 = vunpack.c.l.b16 %v489
      %v625 = vunpack.c.l.b16 %v490
      %v626 = vunpack.c.l.b16 %v491
      %v627 = vunpack.c.l.b16 %v492
      %v628 = vunpack.c.l.b16 %v493
      %v629 = vunpack.c.l.b16 %v494
      %v630 = vunpack.c.l.b16 %v495
      %v631 = vunpack.c.l.b16 %v496
      %v632 = vunpack.c.l.b16 %v497
      %v633 = vunpack.c.l.b16 %v498
      %v634 = vunpack.c.l.b16 %v499
      %v635 = vpack.c.b16 %v572, %v571
      %v636 = vpack.c.b16 %v574, %v573
      %v637 = vpack.c.b16 %v576, %v575
      %v638 = vpack.c.b16 %v578, %v577
      %v639 = vpack.c.b16 %v580, %v579
      %v640 = vpack.c.b16 %v582, %v581
      %v641 = vpack.c.b16 %v584, %v583
      %v642 = vpack.c.b16 %v586, %v585
      %v643 = vpack.c.b16 %v588, %v587
      %v644 = vpack.c.b16 %v590, %v589
      %v645 = vpack.c.b16 %v592, %v591
      %v646 = vpack.c.b16 %v594, %v593
      %v647 = vpack.c.b16 %v596, %v595
      %v648 = vpack.c.b16 %v598, %v597
      %v649 = vpack.c.b16 %v600, %v599
      %v650 = vpack.c.b16 %v602, %v601
      %v651 = vpack.c.b16 %v604, %v603
      %v652 = vpack.c.b16 %v606, %v605
      %v653 = vpack.c.b16 %v608, %v607
      %v654 = vpack.c.b16 %v610, %v609
      %v655 = vpack.c.b16 %v612, %v611
      %v656 = vpack.c.b16 %v614, %v613
      %v657 = vpack.c.b16 %v616, %v615
      %v658 = vpack.c.b16 %v618, %v617
      %v659 = vpack.c.b16 %v620, %v619
      %v660 = vpack.c.b16 %v622, %v621
      %v661 = vpack.c.b16 %v624, %v623
      %v662 = vpack.c.b16 %v626, %v625
      %v663 = vpack.c.b16 %v628, %v627
      %v664 = vpack.c.b16 %v630, %v629
      %v665 = vpack.c.b16 %v632, %v631
      %v666 = vpack.c.b16 %v634, %v633
      %699 = vmatprep.subr.bf16.mxu0 0
      %700 = vmatpush1.bf16.msra.mxu0 %v635
      %701 = vmatprep.subr.bf16.mxu0 0
      %702 = vmatpush1.bf16.msra.mxu0 %v636
      %703 = vmatprep.subr.bf16.mxu0 0
      %704 = vmatpush1.bf16.msra.mxu0 %v637
      %705 = vmatprep.subr.bf16.mxu0 0
      %706 = vmatpush1.bf16.msra.mxu0 %v638
      %707 = vmatprep.subr.bf16.mxu0 0
      %708 = vmatpush1.bf16.msra.mxu0 %v639
      %709 = vmatprep.subr.bf16.mxu0 0
      %710 = vmatpush1.bf16.msra.mxu0 %v640
      %711 = vmatprep.subr.bf16.mxu0 0
      %712 = vmatpush1.bf16.msra.mxu0 %v641
      %713 = vmatprep.subr.bf16.mxu0 0
      %714 = vmatpush1.bf16.msra.mxu0 %v642
      %715 = vmatprep.subr.bf16.mxu0 0
      %716 = vmatpush1.bf16.msra.mxu0 %v643
      %717 = vmatprep.subr.bf16.mxu0 0
      %718 = vmatpush1.bf16.msra.mxu0 %v644
      %719 = vmatprep.subr.bf16.mxu0 0
      %720 = vmatpush1.bf16.msra.mxu0 %v645
      %721 = vmatprep.subr.bf16.mxu0 0
      %722 = vmatpush1.bf16.msra.mxu0 %v646
      %723 = vmatprep.subr.bf16.mxu0 0
      %724 = vmatpush1.bf16.msra.mxu0 %v647
      %725 = vmatprep.subr.bf16.mxu0 0
      %726 = vmatpush1.bf16.msra.mxu0 %v648
      %727 = vmatprep.subr.bf16.mxu0 0
      %728 = vmatpush1.bf16.msra.mxu0 %v649
      %729 = vmatprep.subr.bf16.mxu0 0
      %730 = vmatpush1.bf16.msra.mxu0 %v650
      %731 = vmatprep.mubr.bf16.mxu0 %v421
      %732 = vmatmul.mubr.bf16.gmra.mrb[0].mxu0 %v420
      %v733 = vpop.f32.mrb[0].mxu0
      %v734 = vadd.f32 %v505, %v733
      %v735 = vpop.f32.mrb[0].mxu0
      %v736 = vpop.f32.mrb[0].mxu0
      %v737 = vadd.f32 %v505, %v736
      %v738 = vpop.f32.mrb[0].mxu0
      %739 = vmatprep.mubr.bf16.mxu0 %v425
      %740 = vmatmul.mubr.bf16.gmra.mrb[0].mxu0 %v424
      %v741 = vpop.f32.mrb[0].mxu0
      %v742 = vadd.f32 %v505, %v741
      %v743 = vpop.f32.mrb[0].mxu0
      %v744 = vpop.f32.mrb[0].mxu0
      %v745 = vadd.f32 %v505, %v744
      %v746 = vpop.f32.mrb[0].mxu0
      %747 = vmatprep.mubr.bf16.mxu0 %v429
      %748 = vmatmul.mubr.bf16.gmra.mrb[0].mxu0 %v428
      %v749 = vpop.f32.mrb[0].mxu0
      %v750 = vadd.f32 %v505, %v749
      %v751 = vpop.f32.mrb[0].mxu0
      %v752 = vpop.f32.mrb[0].mxu0
      %v753 = vadd.f32 %v505, %v752
      %v754 = vpop.f32.mrb[0].mxu0
      %755 = vmatprep.mubr.bf16.mxu0 %v433
      %756 = vmatmul.mubr.bf16.gmra.mrb[0].mxu0 %v432
      %v757 = vpop.f32.mrb[0].mxu0
      %v758 = vadd.f32 %v505, %v757
      %v759 = vpop.f32.mrb[0].mxu0
      %v760 = vpop.f32.mrb[0].mxu0
      %v761 = vadd.f32 %v505, %v760
      %v762 = vpop.f32.mrb[0].mxu0
      %763 = vdwg.mxu0
      %764 = vmatprep.subr.bf16.mxu0 0
      %765 = vmatpush1.bf16.msra.mxu0 %v651
      %766 = vmatprep.subr.bf16.mxu0 0
      %767 = vmatpush1.bf16.msra.mxu0 %v652
      %768 = vmatprep.subr.bf16.mxu0 0
      %769 = vmatpush1.bf16.msra.mxu0 %v653
      %770 = vmatprep.subr.bf16.mxu0 0
      %771 = vmatpush1.bf16.msra.mxu0 %v654
      %772 = vmatprep.subr.bf16.mxu0 0
      %773 = vmatpush1.bf16.msra.mxu0 %v655
      %774 = vmatprep.subr.bf16.mxu0 0
      %775 = vmatpush1.bf16.msra.mxu0 %v656
      %776 = vmatprep.subr.bf16.mxu0 0
      %777 = vmatpush1.bf16.msra.mxu0 %v657
      %778 = vmatprep.subr.bf16.mxu0 0
      %779 = vmatpush1.bf16.msra.mxu0 %v658
      %780 = vmatprep.subr.bf16.mxu0 0
      %781 = vmatpush1.bf16.msra.mxu0 %v659
      %782 = vmatprep.subr.bf16.mxu0 0
      %783 = vmatpush1.bf16.msra.mxu0 %v660
      %784 = vmatprep.subr.bf16.mxu0 0
      %785 = vmatpush1.bf16.msra.mxu0 %v661
      %786 = vmatprep.subr.bf16.mxu0 0
      %787 = vmatpush1.bf16.msra.mxu0 %v662
      %788 = vmatprep.subr.bf16.mxu0 0
      %789 = vmatpush1.bf16.msra.mxu0 %v663
      %790 = vmatprep.subr.bf16.mxu0 0
      %791 = vmatpush1.bf16.msra.mxu0 %v664
      %792 = vmatprep.subr.bf16.mxu0 0
      %793 = vmatpush1.bf16.msra.mxu0 %v665
      %794 = vmatprep.subr.bf16.mxu0 0
      %795 = vmatpush1.bf16.msra.mxu0 %v666
      %796 = vmatprep.mubr.bf16.mxu0 %v423
      %797 = vmatmul.mubr.bf16.gmra.mrb[0].mxu0 %v422
      %v798 = vpop.f32.mrb[0].mxu0
      %v799 = vadd.f32 %v734, %v798
      %v800 = vpop.f32.mrb[0].mxu0
      %v801 = vpop.f32.mrb[0].mxu0
      %v802 = vadd.f32 %v737, %v801
      %v803 = vpop.f32.mrb[0].mxu0
      %804 = vmatprep.mubr.bf16.mxu0 %v427
      %805 = vmatmul.mubr.bf16.gmra.mrb[0].mxu0 %v426
      %v806 = vpop.f32.mrb[0].mxu0
      %v807 = vadd.f32 %v742, %v806
      %v808 = vpop.f32.mrb[0].mxu0
      %v809 = vpop.f32.mrb[0].mxu0
      %v810 = vadd.f32 %v745, %v809
      %v811 = vpop.f32.mrb[0].mxu0
      %812 = vmatprep.mubr.bf16.mxu0 %v431
      %813 = vmatmul.mubr.bf16.gmra.mrb[0].mxu0 %v430
      %v814 = vpop.f32.mrb[0].mxu0
      %v815 = vadd.f32 %v750, %v814
      %v816 = vpop.f32.mrb[0].mxu0
      %v817 = vpop.f32.mrb[0].mxu0
      %v818 = vadd.f32 %v753, %v817
      %v819 = vpop.f32.mrb[0].mxu0
      %820 = vmatprep.mubr.bf16.mxu0 %v435
      %821 = vmatmul.mubr.bf16.gmra.mrb[0].mxu0 %v434
      %v822 = vpop.f32.mrb[0].mxu0
      %v823 = vadd.f32 %v758, %v822
      %v824 = vpop.f32.mrb[0].mxu0
      %v825 = vpop.f32.mrb[0].mxu0
      %v826 = vadd.f32 %v761, %v825
      %v827 = vpop.f32.mrb[0].mxu0
      %828 = vdwg.mxu0
      %829 = vst [vmem:[%s229] sm:$0xff] %v799
      %830 = vst [vmem:[%s229 + $0x8] sm:$0xff] %v802
      %831 = vst [vmem:[%s229 + $0x10] sm:$0xff] %v807
      %832 = vst [vmem:[%s229 + $0x18] sm:$0xff] %v810
      %833 = vst [vmem:[%s229 + $0x20] sm:$0xff] %v815
      %834 = vst [vmem:[%s229 + $0x28] sm:$0xff] %v818
      %835 = vst [vmem:[%s229 + $0x30] sm:$0xff] %v823
      %836 = vst [vmem:[%s229 + $0x38] sm:$0xff] %v826
      %s837 = smul.u32 8, %s16
      %p838 = scmp.lt.s32.totalorder %s837, 55
      %s839 = scalar_select %p838, %s837, 55
      %s840 = smul.addr %s839, 8
      %s841 = scalar_lea.vmem %s5, %s840
      // Predicated region
      $region41: #{pointnet_forward.7} parent=39 // pred_check
        %p842 = pneg %p144
      $region42: #{pointnet_forward.7} parent=39 // pred_check_branch
        %844 = sbr.rel (%p842) target = $region44
      $region43: #{pointnet_forward.7} parent=39 // pred_region
        %s845 = smul.u32 8, %s16
      $region44: #{pointnet_forward.7} parent=39 // pred_fallthru
        _
    $region40: #{pointnet_forward.7} parent=5 // pred_fallthru
      _
    %p846 = scmp.le.s32.totalorder 2, %s11
    // Predicated region
    $region45: #{pointnet_forward.7} parent=5 // pred_check
      %p847 = pneg %p846
    $region46: #{pointnet_forward.7} parent=5 // pred_check_branch
      %849 = sbr.rel (%p847) target = $region48
    $region47: #{pointnet_forward.7} parent=5 // pred_region
      %s850 = ssub.s32 %s11, 2
      // Predicated region
      $region49: #{pointnet_forward.7} parent=47 // pred_check
        %p851 = pneg %p150
      $region50: #{pointnet_forward.7} parent=47 // pred_check_branch
        %853 = sbr.rel (%p851) target = $region52
      $region51: #{pointnet_forward.7} parent=47 // pred_region
        %s854 = smul.u32 8, %s17
        %p855 = scmp.lt.s32.totalorder %s854, 55
        %s856 = scalar_select %p855, %s854, 55
        %s857 = smul.addr %s856, 8
        %s858 = scalar_lea.vmem %s5, %s857
      $region52: #{pointnet_forward.7} parent=47 // pred_fallthru
        _
    $region48: #{pointnet_forward.7} parent=5 // pred_fallthru
      _
  $region6: #{pointnet_forward.7} parent=0 // loop_footer
    %s15 = sadd.s32 1, %s11
  $region7: #{pointnet_forward.7} parent=0 // loop_footer_branch
    %10 = sbr.rel target = $region3
  $region8: #{pointnet_forward.7} parent=0 // loop_exit
    _

</llo_original>
